<compile_context>
chip_gen: v6e
topology: v6e:2x2x1
jax: 0.10.0
libtpu: 0.0.40
codegen_flags: <defaults>
</compile_context>

<pallas_src>
import functools

import numpy as np
import jax
import jax.numpy as jnp
from jax import lax
from jax.experimental import pallas as pl
from jax.experimental.pallas import tpu as pltpu

C_PAD = 128  # class axis padded to one full lane width -> lane-dense h / output stores


# ----------------- fused MLP + GPR propagation + masked log_softmax kernel -----------------
def _gprgnn_kernel(nclass, tm, k_hops,
                   temp_ref, x_ref, w1t_ref, b1_ref, w2t_ref, b2_ref, adj_hbm,
                   o_hbm,
                   adj_vmem, hbuf, hid_ref, otile, sems):
    kh = pl.program_id(0)            # 0 = MLP phase, 1..K = propagation hops
    i = pl.program_id(1)             # row tile
    r0 = pl.multiple_of(i * tm, tm)
    cur = kh % 2                     # ping-pong slot written by this phase

    adj_copy = pltpu.make_async_copy(adj_hbm, adj_vmem, sems.at[0])

    # -------- phase 0: fused MLP  z = lin2(relu(lin1(x))), hid = temp[0]*z ----------------
    @pl.when(kh == 0)
    def _():
        @pl.when(i == 0)
        def _():
            adj_copy.start()                         # overlap the big adj fetch with the MLP

        h = jnp.dot(x_ref[pl.ds(r0, tm), :], w1t_ref[...],
                    preferred_element_type=jnp.float32)
        h = jnp.maximum(h + b1_ref[...], 0.0)
        z = jnp.dot(h.astype(jnp.bfloat16), w2t_ref[...],
                    preferred_element_type=jnp.float32) + b2_ref[...]
        hbuf[0, pl.ds(r0, tm), :] = z.astype(hbuf.dtype)     # bf16 MXU operand for hop 1
        hid_ref[pl.ds(r0, tm), :] = temp_ref[0] * z          # f32 z for the temp[0] term

    # -------- phases 1..K: h_k = adj @ h_{k-1};  hid += temp[k] * h_k ----------------------
    @pl.when(kh > 0)
    def _():
        @pl.when(jnp.logical_and(kh == 1, i == 0))
        def _():
            adj_copy.wait()                          # adjacency now VMEM-resident for all hops

        prev = 1 - cur
        hk = jnp.dot(adj_vmem[pl.ds(r0, tm), :], hbuf[prev],
                     preferred_element_type=jnp.float32)     # (tm, C_PAD) f32
        hid_new = hid_ref[pl.ds(r0, tm), :] + temp_ref[kh] * hk

        @pl.when(kh < k_hops)
        def _():
            hbuf[cur, pl.ds(r0, tm), :] = hk.astype(hbuf.dtype)
            hid_ref[pl.ds(r0, tm), :] = hid_new

        @pl.when(kh == k_hops)
        def _():
            # Fused log_softmax over the real class lanes only, then one explicit
            # lane-dense DMA per row tile (the output is never touched on earlier hops).
            lane = lax.broadcasted_iota(jnp.int32, (tm, C_PAD), 1)
            valid = lane < nclass
            t = jnp.where(valid, hid_new, jnp.float32(-1e30))
            m = jnp.max(t, axis=1, keepdims=True)
            e = jnp.where(valid, jnp.exp(t - m), 0.0)
            lse = jnp.log(jnp.sum(e, axis=1, keepdims=True))
            otile[...] = t - m - lse
            out_copy = pltpu.make_async_copy(otile, o_hbm.at[pl.ds(r0, tm)], sems.at[1])
            out_copy.start()
            out_copy.wait()


# --------------------------------------- wrapper --------------------------------------------
def gprgnn_forward(x, adj_norm, w1, b1, w2, b2, temp, *, tile=512):
    """x: [N,F] f32, adj_norm: [N,N] f32 (dense gcn_norm), w1: [H,F], b1: [H],
    w2: [C,H], b2: [C], temp: [K+1] GPR coefficients.  Returns log-probs [N,C]."""
    n, nfeat = x.shape
    hidden = w1.shape[0]
    nclass = w2.shape[0]
    k_hops = int(temp.shape[0]) - 1
    assert k_hops >= 1 and nclass <= C_PAD
    assert tile % 128 == 0

    n_pad = ((n + tile - 1) // tile) * tile
    ni = n_pad // tile

    # Pad nodes to the tile size and the class axis to a full lane width (zeros).
    xp = jnp.pad(x.astype(jnp.float32), ((0, n_pad - n), (0, 0))).astype(jnp.bfloat16)
    adjp = jnp.pad(adj_norm, ((0, n_pad - n), (0, n_pad - n))).astype(jnp.bfloat16)
    w1t = jnp.transpose(w1).astype(jnp.bfloat16)                       # [F,H]
    b1r = b1.reshape(1, hidden).astype(jnp.float32)
    w2tp = jnp.pad(jnp.transpose(w2), ((0, 0), (0, C_PAD - nclass))).astype(jnp.bfloat16)
    b2p = jnp.pad(b2, (0, C_PAD - nclass)).reshape(1, C_PAD).astype(jnp.float32)
    temp32 = temp.astype(jnp.float32)

    # ---- VMEM budget: resident adjacency + ping-pong h + hid + pipelined inputs ----
    resident = (n_pad * n_pad * 2                 # adjacency (bf16, single-buffered scratch)
                + 2 * n_pad * C_PAD * 2           # h_k ping-pong (bf16)
                + n_pad * C_PAD * 4               # gamma-weighted hidden (f32)
                + tile * C_PAD * 4                # log-softmax output tile (f32)
                + 2 * n_pad * nfeat * 2           # resident x (worst-case double-buffered)
                + 2 * (nfeat * hidden + hidden * C_PAD) * 2   # weights (bf16)
                + 4 * (hidden + C_PAD) * 4)       # biases
    try:
        vmem_cap = int(pltpu.get_tpu_info().vmem_capacity_bytes)
    except Exception:
        vmem_cap = 64 * 1024 * 1024               # conservative (v7x-sized) fallback
    if resident + (8 << 20) > int(0.9 * vmem_cap):
        # TODO(synk): graphs whose normalized adjacency exceeds VMEM need a streamed
        # (tile, n_pad) adjacency variant (re-fetched per hop) instead of the resident one.
        raise ValueError("adjacency does not fit the VMEM budget for the resident kernel")
    vmem_limit = min(int(0.9 * vmem_cap), max(resident + (8 << 20), 16 << 20))

    cost = pl.CostEstimate(
        flops=2 * n_pad * (nfeat * hidden + hidden * C_PAD)
              + 2 * k_hops * n_pad * n_pad * C_PAD,
        transcendentals=n_pad * C_PAD,
        bytes_accessed=n_pad * n_pad * 2 + n_pad * nfeat * 2 + n_pad * C_PAD * 4,
    )

    kernel = functools.partial(_gprgnn_kernel, nclass, tile, k_hops)
    out_pad = pl.pallas_call(
        kernel,
        out_shape=jax.ShapeDtypeStruct((n_pad, C_PAD), jnp.float32),
        grid=(k_hops + 1, ni),
        in_specs=[
            pl.BlockSpec(memory_space=pltpu.MemorySpace.SMEM),        # temp (K+1,)
            pl.BlockSpec((n_pad, nfeat), lambda kh, i: (0, 0)),       # x, VMEM-resident
            pl.BlockSpec((nfeat, hidden), lambda kh, i: (0, 0)),      # w1^T, resident
            pl.BlockSpec((1, hidden), lambda kh, i: (0, 0)),          # b1
            pl.BlockSpec((hidden, C_PAD), lambda kh, i: (0, 0)),      # w2^T (lane-padded)
            pl.BlockSpec((1, C_PAD), lambda kh, i: (0, 0)),           # b2 (lane-padded)
            pl.BlockSpec(memory_space=pl.ANY),                        # adjacency, raw HBM ref
        ],
        out_specs=pl.BlockSpec(memory_space=pl.ANY),                  # written by manual DMA
        scratch_shapes=[
            pltpu.VMEM((n_pad, n_pad), jnp.bfloat16),                 # resident adjacency
            pltpu.VMEM((2, n_pad, C_PAD), jnp.bfloat16),              # h_k ping-pong buffers
            pltpu.VMEM((n_pad, C_PAD), jnp.float32),                  # gamma-weighted hidden
            pltpu.VMEM((tile, C_PAD), jnp.float32),                   # log-softmax out tile
            pltpu.SemaphoreType.DMA((2,)),                            # [adj copy, out store]
        ],
        compiler_params=pltpu.CompilerParams(
            # Hop k reads ALL row tiles of hop k-1 from core-local VMEM scratch, so the
            # grid must stay sequential on one TensorCore in this fused form.
            # TODO(synk): v7x 2-TC split (VMEM_SHARED h buffers + core_barrier per hop).
            dimension_semantics=("arbitrary", "arbitrary"),
            vmem_limit_bytes=vmem_limit,
        ),
        cost_estimate=cost,
    )(temp32, xp, w1t, b1r, w2tp, b2p, adjp)

    return out_pad[:n, :nclass]


# ------------------------------------ pure-JAX reference ------------------------------------
def gprgnn_ref(x, adj_norm, w1, b1, w2, b2, temp):
    h = jnp.maximum(x @ w1.T + b1, 0.0)
    z = h @ w2.T + b2
    hid = temp[0] * z
    cur = z
    for k in range(temp.shape[0] - 1):
        cur = adj_norm @ cur
        hid = hid + temp[k + 1] * cur
    return jax.nn.log_softmax(hid, axis=1)


if __name__ == "__main__":
    # Small, module-consistent shapes: N nodes, nfeat features, args.hidden, nclass classes.
    N, nfeat, hidden, nclass = 300, 32, 64, 8
    K, alpha = 4, 0.1                      # GPR_prop(K, alpha, Init='PPR')

    key = jax.random.PRNGKey(0)
    kx, ka, kw1, kb1, kw2, kb2 = jax.random.split(key, 6)

    x = jax.random.normal(kx, (N, nfeat), dtype=jnp.float32)

    # TODO(synk): sparse edge_index + gcn_norm (scatter) have no clean dense-Pallas
    # equivalent; the normalized adjacency is materialized densely here (preprocessing).
    a = (jax.random.uniform(ka, (N, N)) < 0.05).astype(jnp.float32)
    a = jnp.maximum(a, a.T) * (1.0 - jnp.eye(N, dtype=jnp.float32))
    a_hat = a + jnp.eye(N, dtype=jnp.float32)
    d_inv_sqrt = 1.0 / jnp.sqrt(jnp.sum(a_hat, axis=1))
    adj_norm = d_inv_sqrt[:, None] * a_hat * d_inv_sqrt[None, :]

    # torch.nn.Linear default init (uniform +-1/sqrt(fan_in)); dropout is identity (eval).
    bnd1 = 1.0 / np.sqrt(nfeat)
    w1 = jax.random.uniform(kw1, (hidden, nfeat), minval=-bnd1, maxval=bnd1, dtype=jnp.float32)
    b1 = jax.random.uniform(kb1, (hidden,), minval=-bnd1, maxval=bnd1, dtype=jnp.float32)
    bnd2 = 1.0 / np.sqrt(hidden)
    w2 = jax.random.uniform(kw2, (nclass, hidden), minval=-bnd2, maxval=bnd2, dtype=jnp.float32)
    b2 = jax.random.uniform(kb2, (nclass,), minval=-bnd2, maxval=bnd2, dtype=jnp.float32)

    # GPR_prop 'PPR' init: temp[k] = alpha*(1-alpha)^k, temp[K] = (1-alpha)^K
    temp_np = alpha * (1.0 - alpha) ** np.arange(K + 1)
    temp_np[-1] = (1.0 - alpha) ** K
    temp = jnp.asarray(temp_np, dtype=jnp.float32)

    out = gprgnn_forward(x, adj_norm, w1, b1, w2, b2, temp)
    out = jax.block_until_ready(out)

    ref = gprgnn_ref(x, adj_norm, w1, b1, w2, b2, temp)
    assert out.shape == (N, nclass)
    max_err = float(jnp.max(jnp.abs(out - ref)))
    # bf16 adjacency / h_k / MLP operands (f32 accumulate) vs pure-f32 reference.
    assert max_err < 5e-2, f"max abs err vs f32 reference: {max_err}"
    # log-probs must normalize.
    assert float(jnp.max(jnp.abs(jnp.sum(jnp.exp(out), axis=1) - 1.0))) < 1e-3

    print("KERNEL_OK")
</pallas_src>

<mosaic_0001>
module attributes {stable_mosaic.version = 11 : i64} {
  func.func @_gprgnn_kernel(%arg0: i32, %arg1: i32, %arg2: memref<5xf32, #tpu.memory_space<smem>>, %arg3: memref<512x32xbf16, #tpu.memory_space<vmem>>, %arg4: memref<32x64xbf16, #tpu.memory_space<vmem>>, %arg5: memref<1x64xf32, #tpu.memory_space<vmem>>, %arg6: memref<64x128xbf16, #tpu.memory_space<vmem>>, %arg7: memref<1x128xf32, #tpu.memory_space<vmem>>, %arg8: memref<512x512xbf16, #tpu.memory_space<any>>, %arg9: memref<512x128xf32, #tpu.memory_space<any>>, %arg10: memref<512x512xbf16, #tpu.memory_space<vmem>>, %arg11: memref<2x512x128xbf16, #tpu.memory_space<vmem>>, %arg12: memref<512x128xf32, #tpu.memory_space<vmem>>, %arg13: memref<512x128xf32, #tpu.memory_space<vmem>>, %arg14: memref<2x!tpu.dma_semaphore, #tpu.memory_space<semaphore_mem>>) attributes {dimension_semantics = [#tpu.dimension_semantics<arbitrary>, #tpu.dimension_semantics<arbitrary>], iteration_bounds = array<i64: 5, 1>, scalar_prefetch = 0 : i64, scratch_operands = 5 : i64, tpu.core_type = #tpu.core_type<tc>, window_params = [{transform_indices = @transform_0, window_bounds = array<i64: 5>}, {pipeline_mode = #tpu.pipeline_mode<synchronous>, transform_indices = @transform_1, window_bounds = array<i64: 512, 32>}, {pipeline_mode = #tpu.pipeline_mode<synchronous>, transform_indices = @transform_2, window_bounds = array<i64: 32, 64>}, {pipeline_mode = #tpu.pipeline_mode<synchronous>, transform_indices = @transform_3, window_bounds = array<i64: 1, 64>}, {pipeline_mode = #tpu.pipeline_mode<synchronous>, transform_indices = @transform_4, window_bounds = array<i64: 64, 128>}, {pipeline_mode = #tpu.pipeline_mode<synchronous>, transform_indices = @transform_5, window_bounds = array<i64: 1, 128>}, {}, {}]} {
    %c512_i32 = arith.constant 512 : i32
    %0 = arith.muli %arg1, %c512_i32 : i32
    %1 = tpu.assume_multiple %0, 512 : i32
    %c2_i32 = arith.constant 2 : i32
    %c0_i32 = arith.constant 0 : i32
    %2 = arith.cmpi eq, %c2_i32, %c0_i32 : i32
    %c1_i32 = arith.constant 1 : i32
    %3 = arith.select %2, %c1_i32, %c2_i32 : i32
    %4 = arith.remsi %arg0, %3 : i32
    %c0_i32_0 = arith.constant 0 : i32
    %5 = arith.cmpi ne, %4, %c0_i32_0 : i32
    %c0_i32_1 = arith.constant 0 : i32
    %6 = arith.cmpi slt, %4, %c0_i32_1 : i32
    %c0_i32_2 = arith.constant 0 : i32
    %7 = arith.cmpi slt, %3, %c0_i32_2 : i32
    %8 = arith.xori %6, %7 : i1
    %9 = arith.andi %8, %5 : i1
    %10 = arith.addi %4, %3 : i32
    %11 = arith.select %9, %10, %4 : i32
    %c0_i32_3 = arith.constant 0 : i32
    %12 = arith.cmpi eq, %arg0, %c0_i32_3 : i32
    %13 = arith.extui %12 : i1 to i32
    %c0_i32_4 = arith.constant 0 : i32
    %c0_i32_5 = arith.constant 0 : i32
    %14 = arith.cmpi ne, %13, %c0_i32_5 : i32
    scf.if %14 {
      %c0_i32_9 = arith.constant 0 : i32
      %18 = arith.cmpi eq, %arg1, %c0_i32_9 : i32
      %19 = arith.extui %18 : i1 to i32
      %c0_i32_10 = arith.constant 0 : i32
      %20 = arith.cmpi ne, %19, %c0_i32_10 : i32
      scf.if %20 {
        %46 = tpu.memref_slice %arg14[%c0_i32_4] : memref<2x!tpu.dma_semaphore, #tpu.memory_space<semaphore_mem>> -> memref<1x!tpu.dma_semaphore, #tpu.memory_space<semaphore_mem>>
        %47 = tpu.memref_squeeze %46 : memref<1x!tpu.dma_semaphore, #tpu.memory_space<semaphore_mem>> -> memref<!tpu.dma_semaphore, #tpu.memory_space<semaphore_mem>>
        tpu.enqueue_dma source(%arg8 : memref<512x512xbf16, #tpu.memory_space<any>>) target(%arg10 : memref<512x512xbf16, #tpu.memory_space<vmem>>) target_semaphore(%47 : memref<!tpu.dma_semaphore, #tpu.memory_space<semaphore_mem>>)
      } else {
      }
      %21 = arith.index_cast %1 : i32 to index
      %c0 = arith.constant 0 : index
      %22 = vector.load %arg3[%21, %c0] : memref<512x32xbf16, #tpu.memory_space<vmem>>, vector<512x32xbf16>
      %c0_11 = arith.constant 0 : index
      %c0_12 = arith.constant 0 : index
      %23 = vector.load %arg4[%c0_11, %c0_12] : memref<32x64xbf16, #tpu.memory_space<vmem>>, vector<32x64xbf16>
      %cst = arith.constant dense<0.000000e+00> : vector<512x64xf32>
      %24 = tpu.matmul %22, %23, %cst {dimension_numbers = #tpu.dot_dimension_numbers<[1], [0], [0], [1], [0, 0, 1, 1], [], []>} : vector<512x32xbf16>, vector<32x64xbf16>, vector<512x64xf32> -> vector<512x64xf32>
      %c0_13 = arith.constant 0 : index
      %c0_14 = arith.constant 0 : index
      %25 = vector.load %arg5[%c0_13, %c0_14] : memref<1x64xf32, #tpu.memory_space<vmem>>, vector<1x64xf32>
      %26 = vector.broadcast %25 : vector<1x64xf32> to vector<512x64xf32>
      %27 = arith.addf %24, %26 : vector<512x64xf32>
      %cst_15 = arith.constant 0.000000e+00 : f32
      %28 = vector.broadcast %cst_15 : f32 to vector<512x64xf32>
      %29 = arith.maximumf %27, %28 : vector<512x64xf32>
      %30 = arith.truncf %29 : vector<512x64xf32> to vector<512x64xbf16>
      %c0_16 = arith.constant 0 : index
      %c0_17 = arith.constant 0 : index
      %31 = vector.load %arg6[%c0_16, %c0_17] : memref<64x128xbf16, #tpu.memory_space<vmem>>, vector<64x128xbf16>
      %cst_18 = arith.constant dense<0.000000e+00> : vector<512x128xf32>
      %32 = tpu.matmul %30, %31, %cst_18 {dimension_numbers = #tpu.dot_dimension_numbers<[1], [0], [0], [1], [0, 0, 1, 1], [], []>} : vector<512x64xbf16>, vector<64x128xbf16>, vector<512x128xf32> -> vector<512x128xf32>
      %c0_19 = arith.constant 0 : index
      %c0_20 = arith.constant 0 : index
      %33 = vector.load %arg7[%c0_19, %c0_20] : memref<1x128xf32, #tpu.memory_space<vmem>>, vector<1x128xf32>
      %34 = vector.broadcast %33 : vector<1x128xf32> to vector<512x128xf32>
      %35 = arith.addf %32, %34 : vector<512x128xf32>
      %36 = arith.truncf %35 : vector<512x128xf32> to vector<512x128xbf16>
      %c0_21 = arith.constant 0 : index
      %37 = arith.index_cast %1 : i32 to index
      %c0_22 = arith.constant 0 : index
      %38 = vector.load %arg11[%c0_21, %37, %c0_22] : memref<2x512x128xbf16, #tpu.memory_space<vmem>>, vector<1x512x128xbf16>
      %39 = vector.shape_cast %38 : vector<1x512x128xbf16> to vector<512x128xbf16>
      %40 = vector.shape_cast %36 : vector<512x128xbf16> to vector<1x512x128xbf16>
      tpu.vector_store %arg11[%c0_21, %37, %c0_22], %40 {strides = array<i32>} : memref<2x512x128xbf16, #tpu.memory_space<vmem>>, vector<1x512x128xbf16>,
      %c0_23 = arith.constant 0 : index
      %41 = memref.load %arg2[%c0_23] : memref<5xf32, #tpu.memory_space<smem>>
      %42 = vector.broadcast %41 : f32 to vector<512x128xf32>
      %43 = arith.mulf %42, %35 : vector<512x128xf32>
      %44 = arith.index_cast %1 : i32 to index
      %c0_24 = arith.constant 0 : index
      %45 = vector.load %arg12[%44, %c0_24] : memref<512x128xf32, #tpu.memory_space<vmem>>, vector<512x128xf32>
      tpu.vector_store %arg12[%44, %c0_24], %43 {strides = array<i32>} : memref<512x128xf32, #tpu.memory_space<vmem>>, vector<512x128xf32>,
    } else {
    }
    %c0_i32_6 = arith.constant 0 : i32
    %15 = arith.cmpi sgt, %arg0, %c0_i32_6 : i32
    %16 = arith.extui %15 : i1 to i32
    %c0_i32_7 = arith.constant 0 : i32
    %c0_i32_8 = arith.constant 0 : i32
    %17 = arith.cmpi ne, %16, %c0_i32_8 : i32
    scf.if %17 {
      %c1_i32_9 = arith.constant 1 : i32
      %18 = arith.cmpi eq, %arg0, %c1_i32_9 : i32
      %c0_i32_10 = arith.constant 0 : i32
      %19 = arith.cmpi eq, %arg1, %c0_i32_10 : i32
      %20 = arith.andi %18, %19 : i1
      %21 = arith.extui %20 : i1 to i32
      %c0_i32_11 = arith.constant 0 : i32
      %22 = arith.cmpi ne, %21, %c0_i32_11 : i32
      scf.if %22 {
        %43 = tpu.memref_slice %arg14[%c0_i32_7] : memref<2x!tpu.dma_semaphore, #tpu.memory_space<semaphore_mem>> -> memref<1x!tpu.dma_semaphore, #tpu.memory_space<semaphore_mem>>
        %44 = tpu.memref_squeeze %43 : memref<1x!tpu.dma_semaphore, #tpu.memory_space<semaphore_mem>> -> memref<!tpu.dma_semaphore, #tpu.memory_space<semaphore_mem>>
        tpu.wait_dma2 semaphore(%44 : memref<!tpu.dma_semaphore, #tpu.memory_space<semaphore_mem>>) src(%arg8 : memref<512x512xbf16, #tpu.memory_space<any>>) dst(%arg10 : memref<512x512xbf16, #tpu.memory_space<vmem>>)
      } else {
      }
      %c1_i32_12 = arith.constant 1 : i32
      %23 = arith.subi %c1_i32_12, %11 : i32
      %24 = arith.index_cast %1 : i32 to index
      %c0 = arith.constant 0 : index
      %25 = vector.load %arg10[%24, %c0] : memref<512x512xbf16, #tpu.memory_space<vmem>>, vector<512x512xbf16>
      %26 = arith.index_cast %23 : i32 to index
      %c0_13 = arith.constant 0 : index
      %c0_14 = arith.constant 0 : index
      %27 = vector.load %arg11[%26, %c0_13, %c0_14] : memref<2x512x128xbf16, #tpu.memory_space<vmem>>, vector<1x512x128xbf16>
      %28 = vector.shape_cast %27 : vector<1x512x128xbf16> to vector<512x128xbf16>
      %cst = arith.constant dense<0.000000e+00> : vector<512x128xf32>
      %29 = tpu.matmul %25, %28, %cst {dimension_numbers = #tpu.dot_dimension_numbers<[1], [0], [0], [1], [0, 0, 1, 1], [], []>} : vector<512x512xbf16>, vector<512x128xbf16>, vector<512x128xf32> -> vector<512x128xf32>
      %30 = arith.index_cast %1 : i32 to index
      %c0_15 = arith.constant 0 : index
      %31 = vector.load %arg12[%30, %c0_15] : memref<512x128xf32, #tpu.memory_space<vmem>>, vector<512x128xf32>
      %32 = arith.index_cast %arg0 : i32 to index
      %33 = memref.load %arg2[%32] : memref<5xf32, #tpu.memory_space<smem>>
      %34 = vector.broadcast %33 : f32 to vector<512x128xf32>
      %35 = arith.mulf %34, %29 : vector<512x128xf32>
      %36 = arith.addf %31, %35 : vector<512x128xf32>
      %c4_i32 = arith.constant 4 : i32
      %37 = arith.cmpi slt, %arg0, %c4_i32 : i32
      %38 = arith.extui %37 : i1 to i32
      %c0_i32_16 = arith.constant 0 : i32
      %39 = arith.cmpi ne, %38, %c0_i32_16 : i32
      scf.if %39 {
        %43 = arith.truncf %29 : vector<512x128xf32> to vector<512x128xbf16>
        %44 = arith.index_cast %11 : i32 to index
        %45 = arith.index_cast %1 : i32 to index
        %c0_19 = arith.constant 0 : index
        %46 = vector.load %arg11[%44, %45, %c0_19] : memref<2x512x128xbf16, #tpu.memory_space<vmem>>, vector<1x512x128xbf16>
        %47 = vector.shape_cast %46 : vector<1x512x128xbf16> to vector<512x128xbf16>
        %48 = vector.shape_cast %43 : vector<512x128xbf16> to vector<1x512x128xbf16>
        tpu.vector_store %arg11[%44, %45, %c0_19], %48 {strides = array<i32>} : memref<2x512x128xbf16, #tpu.memory_space<vmem>>, vector<1x512x128xbf16>,
        %49 = arith.index_cast %1 : i32 to index
        %c0_20 = arith.constant 0 : index
        %50 = vector.load %arg12[%49, %c0_20] : memref<512x128xf32, #tpu.memory_space<vmem>>, vector<512x128xf32>
        tpu.vector_store %arg12[%49, %c0_20], %36 {strides = array<i32>} : memref<512x128xf32, #tpu.memory_space<vmem>>, vector<512x128xf32>,
      } else {
      }
      %c4_i32_17 = arith.constant 4 : i32
      %40 = arith.cmpi eq, %arg0, %c4_i32_17 : i32
      %41 = arith.extui %40 : i1 to i32
      %c0_i32_18 = arith.constant 0 : i32
      %42 = arith.cmpi ne, %41, %c0_i32_18 : i32
      scf.if %42 {
        %43 = tpu.iota {dimensions = array<i32: 1>} : vector<512x128xi32>
        %c8_i32 = arith.constant 8 : i32
        %44 = vector.broadcast %c8_i32 : i32 to vector<512x128xi32>
        %45 = arith.cmpi slt, %43, %44 : vector<512x128xi32>
        %cst_19 = arith.constant -1.000000e+30 : f32
        %46 = vector.broadcast %cst_19 : f32 to vector<512x128xf32>
        %47 = arith.select %45, %36, %46 : vector<512x128xi1>, vector<512x128xf32>
        %cst_20 = arith.constant dense<0xFF800000> : vector<512xf32>
        %48 = vector.multi_reduction <maximumf>, %47, %cst_20 [1] : vector<512x128xf32> to vector<512xf32>
        %49 = vector.shape_cast %48 : vector<512xf32> to vector<512x1xf32>
        %50 = vector.broadcast %49 : vector<512x1xf32> to vector<512x128xf32>
        %51 = arith.subf %47, %50 : vector<512x128xf32>
        %52 = math.exp %51 : vector<512x128xf32>
        %cst_21 = arith.constant 0.000000e+00 : f32
        %53 = vector.broadcast %cst_21 : f32 to vector<512x128xf32>
        %54 = arith.select %45, %52, %53 : vector<512x128xi1>, vector<512x128xf32>
        %cst_22 = arith.constant dense<0.000000e+00> : vector<512xf32>
        %55 = vector.multi_reduction <add>, %54, %cst_22 [1] : vector<512x128xf32> to vector<512xf32>
        %56 = vector.shape_cast %55 : vector<512xf32> to vector<512x1xf32>
        %57 = math.log %56 : vector<512x1xf32>
        %58 = vector.broadcast %49 : vector<512x1xf32> to vector<512x128xf32>
        %59 = arith.subf %47, %58 : vector<512x128xf32>
        %60 = vector.broadcast %57 : vector<512x1xf32> to vector<512x128xf32>
        %61 = arith.subf %59, %60 : vector<512x128xf32>
        %c0_23 = arith.constant 0 : index
        %c0_24 = arith.constant 0 : index
        %62 = vector.load %arg13[%c0_23, %c0_24] : memref<512x128xf32, #tpu.memory_space<vmem>>, vector<512x128xf32>
        tpu.vector_store %arg13[%c0_23, %c0_24], %61 {strides = array<i32>} : memref<512x128xf32, #tpu.memory_space<vmem>>, vector<512x128xf32>,
        %c1_i32_25 = arith.constant 1 : i32
        %c0_i32_26 = arith.constant 0 : i32
        %63 = tpu.memref_slice %arg9[%1, %c0_i32_26] : memref<512x128xf32, #tpu.memory_space<any>> -> memref<512x128xf32, #tpu.memory_space<any>>
        %64 = tpu.memref_slice %arg14[%c1_i32_25] : memref<2x!tpu.dma_semaphore, #tpu.memory_space<semaphore_mem>> -> memref<1x!tpu.dma_semaphore, #tpu.memory_space<semaphore_mem>>
        %65 = tpu.memref_squeeze %64 : memref<1x!tpu.dma_semaphore, #tpu.memory_space<semaphore_mem>> -> memref<!tpu.dma_semaphore, #tpu.memory_space<semaphore_mem>>
        tpu.enqueue_dma source(%arg13 : memref<512x128xf32, #tpu.memory_space<vmem>>) target(%63 : memref<512x128xf32, #tpu.memory_space<any>>) target_semaphore(%65 : memref<!tpu.dma_semaphore, #tpu.memory_space<semaphore_mem>>)
        %c1_i32_27 = arith.constant 1 : i32
        %c0_i32_28 = arith.constant 0 : i32
        %66 = tpu.memref_slice %arg9[%1, %c0_i32_28] : memref<512x128xf32, #tpu.memory_space<any>> -> memref<512x128xf32, #tpu.memory_space<any>>
        %67 = tpu.memref_slice %arg14[%c1_i32_27] : memref<2x!tpu.dma_semaphore, #tpu.memory_space<semaphore_mem>> -> memref<1x!tpu.dma_semaphore, #tpu.memory_space<semaphore_mem>>
        %68 = tpu.memref_squeeze %67 : memref<1x!tpu.dma_semaphore, #tpu.memory_space<semaphore_mem>> -> memref<!tpu.dma_semaphore, #tpu.memory_space<semaphore_mem>>
        tpu.wait_dma2 semaphore(%68 : memref<!tpu.dma_semaphore, #tpu.memory_space<semaphore_mem>>) src(%arg13 : memref<512x128xf32, #tpu.memory_space<vmem>>) dst(%66 : memref<512x128xf32, #tpu.memory_space<any>>)
      } else {
      }
    } else {
    }
    return
  }
  func.func @transform_0(%arg0: i32, %arg1: i32) -> i32 {
    %c0_i32 = arith.constant 0 : i32
    %c0_i32_0 = arith.constant 0 : i32
    return %c0_i32 : i32
  }
  func.func @transform_1(%arg0: i32, %arg1: i32) -> (i32, i32) {
    %c0_i32 = arith.constant 0 : i32
    %c0_i32_0 = arith.constant 0 : i32
    %c0_i32_1 = arith.constant 0 : i32
    return %c0_i32, %c0_i32_0 : i32, i32
  }
  func.func @transform_2(%arg0: i32, %arg1: i32) -> (i32, i32) {
    %c0_i32 = arith.constant 0 : i32
    %c0_i32_0 = arith.constant 0 : i32
    %c0_i32_1 = arith.constant 0 : i32
    return %c0_i32, %c0_i32_0 : i32, i32
  }
  func.func @transform_3(%arg0: i32, %arg1: i32) -> (i32, i32) {
    %c0_i32 = arith.constant 0 : i32
    %c0_i32_0 = arith.constant 0 : i32
    %c0_i32_1 = arith.constant 0 : i32
    return %c0_i32, %c0_i32_0 : i32, i32
  }
  func.func @transform_4(%arg0: i32, %arg1: i32) -> (i32, i32) {
    %c0_i32 = arith.constant 0 : i32
    %c0_i32_0 = arith.constant 0 : i32
    %c0_i32_1 = arith.constant 0 : i32
    return %c0_i32, %c0_i32_0 : i32, i32
  }
  func.func @transform_5(%arg0: i32, %arg1: i32) -> (i32, i32) {
    %c0_i32 = arith.constant 0 : i32
    %c0_i32_0 = arith.constant 0 : i32
    %c0_i32_1 = arith.constant 0 : i32
    return %c0_i32, %c0_i32_0 : i32, i32
  }
}

</mosaic_0001>

<llo_original>
// kernel: tpu_custom_call.1
$region0: #{tpu_custom_call.1}
  #allocation0 [shape = 'u32[]', space=smem, size = 0x4, offset = 0x4, fixed_abs, tag = 'smem constant byte address 0x4 - core index']
  #allocation1 [shape = 'u32[144,128]{1,0:T(1,128)}', space=vmem, size = 0x12000, scoped, tag = 'internal scratch']
  #allocation2 [shape = 'bf16[512,512]{1,0:T(8,128)(2,1)}', space=vmem, size = 0x80000, scoped, tag = 'scratch operand']
  #allocation3 [shape = 'bf16[2,512,128]{2,1,0:T(8,128)(2,1)}', space=vmem, size = 0x40000, scoped, tag = 'scratch operand']
  #allocation4 [shape = 'f32[512,128]{1,0:T(8,128)}', space=vmem, size = 0x40000, scoped, tag = 'scratch operand']
  #allocation5 [shape = 'f32[512,128]{1,0:T(8,128)}', space=vmem, size = 0x40000, scoped, tag = 'scratch operand']
  #allocation6 [shape = 's32[2]{0}', space=sflag, size = 0x8, scoped, tag = 'scratch operand']
  #allocation9 [shape = 's32[]', space=sflag, size = 0x4, offset = 0, fixed_abs, tag = 'sflag constant byte address 0x0 - dummy sync flag']
  #allocation10 [shape = 's32[]', space=sflag, size = 0x4, offset = 0, fixed_abs, tag = 'sflag constant byte address 0x0 - dummy sync flag']
  #allocation11 [shape = 'u32[]', space=smem, size = 0x4, offset = 0x44, fixed_abs, tag = 'smem constant byte address 0x44 - assertion arg 0']
  #allocation12 [shape = 'u32[]', space=smem, size = 0x4, offset = 0x48, fixed_abs, tag = 'smem constant byte address 0x48 - assertion arg 1']
  #allocation13 [shape = 's32[]', space=sflag, size = 0x4, offset = 0, fixed_abs, tag = 'sflag constant byte address 0x0 - dummy sync flag']
  #allocation14 [shape = 's32[]', space=sflag, size = 0x4, offset = 0, fixed_abs, tag = 'sflag constant byte address 0x0 - dummy sync flag']
  %s0 = inlined_call_operand.vmem [shape: f32[5], index: 0, kind: input, shape index: {}]
  %s1 = inlined_call_operand.vmem [shape: bf16[512,32], index: 1, kind: input, shape index: {}]
  %s2 = inlined_call_operand.vmem [shape: bf16[32,64], index: 2, kind: input, shape index: {}]
  %s3 = inlined_call_operand.vmem [shape: f32[1,64], index: 3, kind: input, shape index: {}]
  %s4 = inlined_call_operand.vmem [shape: bf16[64,128], index: 4, kind: input, shape index: {}]
  %s5 = inlined_call_operand.vmem [shape: f32[1,128], index: 5, kind: input, shape index: {}]
  %s6 = inlined_call_operand.hbm [shape: bf16[512,512], index: 6, kind: input, shape index: {}]
  %s7 = inlined_call_operand.hbm [shape: f32[512,128], index: 7, kind: output, shape index: {}]
  %s8 = sld [smem:[#allocation0]]
  $region81: #{tpu_custom_call.1} parent=0
    _
  %s10 = ssub.s32 1, %s8
  %s11 = scalar_select 0, %s10, %s8
  $region1: #{tpu_custom_call.1} parent=0
    #allocation7 [shape = 'u8[512]{0}', space=smem, size = 0x200, scoped, tag = 'input window, operand 0, single buffered']
    #allocation8 [shape = 's32[2]{0}', space=sflag, size = 0x8, scoped, tag = 'scoped memory for tpu_custom_call.1']
    %12 = vsyncpa [#allocation8], 0
    loop: start=0, step=1, limit=6
    $region2: #{tpu_custom_call.1} parent=1 // loop_pre_header
      _
    $region3: #{tpu_custom_call.1} parent=1 // loop_header
      %s14 = sphi 0, %s18
      %p15 = scmp.ge.s32.totalorder %s14, 6
      %s20 = sphi 0, %s30
      %s21 = sphi 0, %s26
      %s22 = sphi 0, %s20
      %s23 = sphi 0, %s21
      %s31 = sphi 0, %s31
      %s33 = sphi 0, %s31
      %s41 = sphi 0, %s33
      %s45 = sphi 0, %s45
      %s47 = sphi 0, %s45
      %s55 = sphi 0, %s47
      %s59 = sphi 0, %s59
      %s61 = sphi 0, %s59
      %s69 = sphi 0, %s61
      %s73 = sphi 0, %s73
      %s75 = sphi 0, %s73
      %s83 = sphi 0, %s75
      %s87 = sphi 0, %s87
      %s89 = sphi 0, %s87
      %s97 = sphi 0, %s89
      %s101 = sphi 0, %s101
      %s103 = sphi 0, %s101
      %s111 = sphi 0, %s103
    $region4: #{tpu_custom_call.1} parent=1 // loop_header_branch
      %17 = sbr.rel (%p15) target = $region8
    $region5: #{tpu_custom_call.1} parent=1 // loop_body
      %s19 = ssub.s32 %s14, 1
      %s24 = sadd.s32 1, %s21
      %p25 = scmp.ge.s32.totalorder %s24, 1
      %s26 = scalar_select %p25, 0, %s24
      %s27 = sadd.s32 1, %s20
      %s28 = scalar_select %p25, %s27, %s20
      %p29 = scmp.ge.s32.totalorder %s28, 5
      %s30 = scalar_select %p29, 0, %s28
      %s32 = sadd.s32 %s31, 1
      %p34 = scmp.eq.s32.totalorder %s14, 4
      %p35 = scmp.ne.s32.totalorder %s31, %s33
      %p36 = scmp.eq.s32.totalorder %s14, 0
      %p37 = por %p35, %p36
      %p38 = scmp.ne.s32.totalorder %s31, %s33
      %p39 = scmp.eq.s32.totalorder %s19, 4
      %p40 = por %p38, %p39
      %p42 = scmp.ne.s32.totalorder %s33, %s41
      %p43 = scmp.eq.s32.totalorder %s19, 0
      %p44 = por %p42, %p43
      %s46 = sadd.s32 %s45, 1
      %p48 = scmp.eq.s32.totalorder %s14, 4
      %p49 = scmp.ne.s32.totalorder %s45, %s47
      %p50 = scmp.eq.s32.totalorder %s14, 0
      %p51 = por %p49, %p50
      %p52 = scmp.ne.s32.totalorder %s45, %s47
      %p53 = scmp.eq.s32.totalorder %s19, 4
      %p54 = por %p52, %p53
      %p56 = scmp.ne.s32.totalorder %s47, %s55
      %p57 = scmp.eq.s32.totalorder %s19, 0
      %p58 = por %p56, %p57
      %s60 = sadd.s32 %s59, 1
      %p62 = scmp.eq.s32.totalorder %s14, 4
      %p63 = scmp.ne.s32.totalorder %s59, %s61
      %p64 = scmp.eq.s32.totalorder %s14, 0
      %p65 = por %p63, %p64
      %p66 = scmp.ne.s32.totalorder %s59, %s61
      %p67 = scmp.eq.s32.totalorder %s19, 4
      %p68 = por %p66, %p67
      %p70 = scmp.ne.s32.totalorder %s61, %s69
      %p71 = scmp.eq.s32.totalorder %s19, 0
      %p72 = por %p70, %p71
      %s74 = sadd.s32 %s73, 1
      %p76 = scmp.eq.s32.totalorder %s14, 4
      %p77 = scmp.ne.s32.totalorder %s73, %s75
      %p78 = scmp.eq.s32.totalorder %s14, 0
      %p79 = por %p77, %p78
      %p80 = scmp.ne.s32.totalorder %s73, %s75
      %p81 = scmp.eq.s32.totalorder %s19, 4
      %p82 = por %p80, %p81
      %p84 = scmp.ne.s32.totalorder %s75, %s83
      %p85 = scmp.eq.s32.totalorder %s19, 0
      %p86 = por %p84, %p85
      %s88 = sadd.s32 %s87, 1
      %p90 = scmp.eq.s32.totalorder %s14, 4
      %p91 = scmp.ne.s32.totalorder %s87, %s89
      %p92 = scmp.eq.s32.totalorder %s14, 0
      %p93 = por %p91, %p92
      %p94 = scmp.ne.s32.totalorder %s87, %s89
      %p95 = scmp.eq.s32.totalorder %s19, 4
      %p96 = por %p94, %p95
      %p98 = scmp.ne.s32.totalorder %s89, %s97
      %p99 = scmp.eq.s32.totalorder %s19, 0
      %p100 = por %p98, %p99
      %s102 = sadd.s32 %s101, 1
      %p104 = scmp.eq.s32.totalorder %s14, 4
      %p105 = scmp.ne.s32.totalorder %s101, %s103
      %p106 = scmp.eq.s32.totalorder %s14, 0
      %p107 = por %p105, %p106
      %p108 = scmp.ne.s32.totalorder %s101, %s103
      %p109 = scmp.eq.s32.totalorder %s19, 4
      %p110 = por %p108, %p109
      %p112 = scmp.ne.s32.totalorder %s103, %s111
      %p113 = scmp.eq.s32.totalorder %s19, 0
      %p114 = por %p112, %p113
      %p115 = scmp.le.s32.totalorder 1, %s14
      // Predicated region
      $region9: #{tpu_custom_call.1} parent=5 // pred_check
        %p116 = pneg %p115
      $region10: #{tpu_custom_call.1} parent=5 // pred_check_branch
        %118 = sbr.rel (%p116) target = $region12
      $region11: #{tpu_custom_call.1} parent=5 // pred_region
        %s119 = ssub.s32 %s14, 1
        // Predicated region
        $region13: #{tpu_custom_call.1} parent=11 // pred_check
          %p120 = pneg %p44
        $region14: #{tpu_custom_call.1} parent=11 // pred_check_branch
          %122 = sbr.rel (%p120) target = $region16
        $region15: #{tpu_custom_call.1} parent=11 // pred_region
          %s124 = ssub.s32 16, 16
          %125 = vsyncadd [#allocation8], %s124
          %s127 = sshll.u32 %s0, 4
          %s128 = int_to_ptr.vmem [resolvable:$true] %s127
          %130 = dma.vmem_to_smem %s128, 16, [#allocation7], [#allocation8]
        $region16: #{tpu_custom_call.1} parent=11 // pred_fallthru
          _
        // Predicated region
        $region17: #{tpu_custom_call.1} parent=11 // pred_check
          %p131 = pneg %p58
        $region18: #{tpu_custom_call.1} parent=11 // pred_check_branch
          %133 = sbr.rel (%p131) target = $region20
        $region19: #{tpu_custom_call.1} parent=11 // pred_region
          _
        $region20: #{tpu_custom_call.1} parent=11 // pred_fallthru
          _
        // Predicated region
        $region21: #{tpu_custom_call.1} parent=11 // pred_check
          %p134 = pneg %p72
        $region22: #{tpu_custom_call.1} parent=11 // pred_check_branch
          %136 = sbr.rel (%p134) target = $region24
        $region23: #{tpu_custom_call.1} parent=11 // pred_region
          _
        $region24: #{tpu_custom_call.1} parent=11 // pred_fallthru
          _
        // Predicated region
        $region25: #{tpu_custom_call.1} parent=11 // pred_check
          %p137 = pneg %p86
        $region26: #{tpu_custom_call.1} parent=11 // pred_check_branch
          %139 = sbr.rel (%p137) target = $region28
        $region27: #{tpu_custom_call.1} parent=11 // pred_region
          _
        $region28: #{tpu_custom_call.1} parent=11 // pred_fallthru
          _
        // Predicated region
        $region29: #{tpu_custom_call.1} parent=11 // pred_check
          %p140 = pneg %p100
        $region30: #{tpu_custom_call.1} parent=11 // pred_check_branch
          %142 = sbr.rel (%p140) target = $region32
        $region31: #{tpu_custom_call.1} parent=11 // pred_region
          _
        $region32: #{tpu_custom_call.1} parent=11 // pred_fallthru
          _
        // Predicated region
        $region33: #{tpu_custom_call.1} parent=11 // pred_check
          %p143 = pneg %p114
        $region34: #{tpu_custom_call.1} parent=11 // pred_check_branch
          %145 = sbr.rel (%p143) target = $region36
        $region35: #{tpu_custom_call.1} parent=11 // pred_region
          _
        $region36: #{tpu_custom_call.1} parent=11 // pred_fallthru
          _
      $region12: #{tpu_custom_call.1} parent=5 // pred_fallthru
        _
      %p146 = scmp.lt.s32.totalorder %s14, 5
      // Predicated region
      $region37: #{tpu_custom_call.1} parent=5 // pred_check
        %p147 = pneg %p146
      $region38: #{tpu_custom_call.1} parent=5 // pred_check_branch
        %149 = sbr.rel (%p147) target = $region40
      $region39: #{tpu_custom_call.1} parent=5 // pred_region
        _
      $region40: #{tpu_custom_call.1} parent=5 // pred_fallthru
        _
      %p150 = scmp.le.s32.totalorder 1, %s14
      // Predicated region
      $region41: #{tpu_custom_call.1} parent=5 // pred_check
        %p151 = pneg %p150
      $region42: #{tpu_custom_call.1} parent=5 // pred_check_branch
        %153 = sbr.rel (%p151) target = $region44
      $region43: #{tpu_custom_call.1} parent=5 // pred_region
        %s154 = ssub.s32 %s14, 1
        // Predicated region
        $region45: #{tpu_custom_call.1} parent=43 // pred_check
          %p155 = pneg %p44
        $region46: #{tpu_custom_call.1} parent=43 // pred_check_branch
          %157 = sbr.rel (%p155) target = $region48
        $region47: #{tpu_custom_call.1} parent=43 // pred_region
          %158 = dma.done [#allocation8], 16
        $region48: #{tpu_custom_call.1} parent=43 // pred_fallthru
          _
        %159 = sfence
        %p160 = pneg %p44
        %p161 = pneg %p40
        %p162 = pneg %p58
        %p163 = pneg %p54
        %p164 = pneg %p72
        %p165 = pneg %p68
        %p166 = pneg %p86
        %p167 = pneg %p82
        %p168 = pneg %p100
        %p169 = pneg %p96
        %p170 = pneg %p114
        %p171 = pneg %p110
        %s173 = smul.u32 %s23, 512
        %p174 = scmp.lt.s32.totalorder %s22, 0
        %s175 = ssub.s32 0, %s22
        %s176 = scalar_select %p174, %s175, %s22
        %s177 = sand.u32 %s176, 1
        %s178 = ssub.s32 0, %s177
        %s179 = scalar_select %p174, %s178, %s177
        %p180 = scmp.ne.s32.totalorder %s179, 0
        %p181 = scmp.lt.s32.totalorder %s179, 0
        %p182 = pnand %p181, %p180
        %p183 = pneg %p182
        %s184 = sadd.s32 %s179, 2
        %s185 = scalar_select %p183, %s184, %s179
        %p186 = scmp.eq.s32.totalorder %s22, 0
        // Predicated region
        $region49: #{tpu_custom_call.1} parent=43 // pred_check
          %p187 = pneg %p186
        $region50: #{tpu_custom_call.1} parent=43 // pred_check_branch
          %189 = sbr.rel (%p187) target = $region52
        $region51: #{tpu_custom_call.1} parent=43 // pred_region
          %p190 = scmp.eq.s32.totalorder %s23, 0
          // Predicated region
          $region53: #{tpu_custom_call.1} parent=51 // pred_check
            %p191 = pneg %p190
          $region54: #{tpu_custom_call.1} parent=51 // pred_check_branch
            %193 = sbr.rel (%p191) target = $region56
          $region55: #{tpu_custom_call.1} parent=51 // pred_region
            // Predicated region
            $region57: #{tpu_custom_call.1} parent=55 // pred_check
              _
            $region58: #{tpu_custom_call.1} parent=55 // pred_check_branch
              %195 = sbr.rel target = $region60
            $region59: #{tpu_custom_call.1} parent=55 // pred_region
              %196 = sst [smem:[#allocation11]] [#allocation10]
              %197 = sst [smem:[#allocation12]] [#allocation9]
            $region60: #{tpu_custom_call.1} parent=55 // pred_fallthru
              _
            %199 = shalt.err (0)
            %s201 = sshll.u32 [#allocation2], 4
            %s202 = int_to_ptr.vmem [resolvable:$true] %s201
            %204 = dma.hbm_to_vmem [thread:$0]  %s6, 16384, %s202, [#allocation6]
          $region56: #{tpu_custom_call.1} parent=51 // pred_fallthru
            _
          %s205 = sshra.s32 %s173, 3
          %s206 = sand.u32 %s173, 7
          %s207 = smul.addr %s205, 4
          %s208 = scalar_lea.vmem %s1, %s207
          %v209 = vld [vmem:[%s208] sm:$0xf]
          %v210 = vld [vmem:[%s208 + $0x4] sm:$0xf]
          %v211 = vld [vmem:[%s208 + $0x8] sm:$0xf]
          %v212 = vld [vmem:[%s208 + $0xc] sm:$0xf]
          %v213 = vld [vmem:[%s208 + $0x10] sm:$0xf]
          %v214 = vld [vmem:[%s208 + $0x14] sm:$0xf]
          %v215 = vld [vmem:[%s208 + $0x18] sm:$0xf]
          %v216 = vld [vmem:[%s208 + $0x1c] sm:$0xf]
          %v217 = vld [vmem:[%s208 + $0x20] sm:$0xf]
          %v218 = vld [vmem:[%s208 + $0x24] sm:$0xf]
          %v219 = vld [vmem:[%s208 + $0x28] sm:$0xf]
          %v220 = vld [vmem:[%s208 + $0x2c] sm:$0xf]
          %v221 = vld [vmem:[%s208 + $0x30] sm:$0xf]
          %v222 = vld [vmem:[%s208 + $0x34] sm:$0xf]
          %v223 = vld [vmem:[%s208 + $0x38] sm:$0xf]
          %v224 = vld [vmem:[%s208 + $0x3c] sm:$0xf]
          %v225 = vld [vmem:[%s208 + $0x40] sm:$0xf]
          %v226 = vld [vmem:[%s208 + $0x44] sm:$0xf]
          %v227 = vld [vmem:[%s208 + $0x48] sm:$0xf]
          %v228 = vld [vmem:[%s208 + $0x4c] sm:$0xf]
          %v229 = vld [vmem:[%s208 + $0x50] sm:$0xf]
          %v230 = vld [vmem:[%s208 + $0x54] sm:$0xf]
          %v231 = vld [vmem:[%s208 + $0x58] sm:$0xf]
          %v232 = vld [vmem:[%s208 + $0x5c] sm:$0xf]
          %v233 = vld [vmem:[%s208 + $0x60] sm:$0xf]
          %v234 = vld [vmem:[%s208 + $0x64] sm:$0xf]
          %v235 = vld [vmem:[%s208 + $0x68] sm:$0xf]
          %v236 = vld [vmem:[%s208 + $0x6c] sm:$0xf]
          %v237 = vld [vmem:[%s208 + $0x70] sm:$0xf]
          %v238 = vld [vmem:[%s208 + $0x74] sm:$0xf]
          %v239 = vld [vmem:[%s208 + $0x78] sm:$0xf]
          %v240 = vld [vmem:[%s208 + $0x7c] sm:$0xf]
          %v241 = vld [vmem:[%s208 + $0x80] sm:$0xf]
          %v242 = vld [vmem:[%s208 + $0x84] sm:$0xf]
          %v243 = vld [vmem:[%s208 + $0x88] sm:$0xf]
          %v244 = vld [vmem:[%s208 + $0x8c] sm:$0xf]
          %v245 = vld [vmem:[%s208 + $0x90] sm:$0xf]
          %v246 = vld [vmem:[%s208 + $0x94] sm:$0xf]
          %v247 = vld [vmem:[%s208 + $0x98] sm:$0xf]
          %v248 = vld [vmem:[%s208 + $0x9c] sm:$0xf]
          %v249 = vld [vmem:[%s208 + $0xa0] sm:$0xf]
          %v250 = vld [vmem:[%s208 + $0xa4] sm:$0xf]
          %v251 = vld [vmem:[%s208 + $0xa8] sm:$0xf]
          %v252 = vld [vmem:[%s208 + $0xac] sm:$0xf]
          %v253 = vld [vmem:[%s208 + $0xb0] sm:$0xf]
          %v254 = vld [vmem:[%s208 + $0xb4] sm:$0xf]
          %v255 = vld [vmem:[%s208 + $0xb8] sm:$0xf]
          %v256 = vld [vmem:[%s208 + $0xbc] sm:$0xf]
          %v257 = vld [vmem:[%s208 + $0xc0] sm:$0xf]
          %v258 = vld [vmem:[%s208 + $0xc4] sm:$0xf]
          %v259 = vld [vmem:[%s208 + $0xc8] sm:$0xf]
          %v260 = vld [vmem:[%s208 + $0xcc] sm:$0xf]
          %v261 = vld [vmem:[%s208 + $0xd0] sm:$0xf]
          %v262 = vld [vmem:[%s208 + $0xd4] sm:$0xf]
          %v263 = vld [vmem:[%s208 + $0xd8] sm:$0xf]
          %v264 = vld [vmem:[%s208 + $0xdc] sm:$0xf]
          %v265 = vld [vmem:[%s208 + $0xe0] sm:$0xf]
          %v266 = vld [vmem:[%s208 + $0xe4] sm:$0xf]
          %v267 = vld [vmem:[%s208 + $0xe8] sm:$0xf]
          %v268 = vld [vmem:[%s208 + $0xec] sm:$0xf]
          %v269 = vld [vmem:[%s208 + $0xf0] sm:$0xf]
          %v270 = vld [vmem:[%s208 + $0xf4] sm:$0xf]
          %v271 = vld [vmem:[%s208 + $0xf8] sm:$0xf]
          %v272 = vld [vmem:[%s208 + $0xfc] sm:$0xf]
          %v273 = vld [vmem:[%s2] sm:$0xf]
          %v274 = vld [vmem:[%s2 + $0x4] sm:$0xf]
          %v275 = vld [vmem:[%s2 + $0x8] sm:$0xf]
          %v276 = vld [vmem:[%s2 + $0xc] sm:$0xf]
          %v277 = vld [vmem:[%s3] sm:$0x1]
          %v279 = vlaneseq
          %v280 = vshrl.u32 %v279, 7
          %v281 = vsub.s32 0, %v280
          %v282 = vrot.slane %v277, %v281
          %v348 = vunpack.c.l.b16 %v209
          %v349 = vunpack.c.l.b16 %v210
          %v350 = vunpack.c.l.b16 %v211
          %v351 = vunpack.c.l.b16 %v212
          %v352 = vunpack.c.l.b16 %v213
          %v353 = vunpack.c.l.b16 %v214
          %v354 = vunpack.c.l.b16 %v215
          %v355 = vunpack.c.l.b16 %v216
          %v356 = vunpack.c.l.b16 %v217
          %v357 = vunpack.c.l.b16 %v218
          %v358 = vunpack.c.l.b16 %v219
          %v359 = vunpack.c.l.b16 %v220
          %v360 = vunpack.c.l.b16 %v221
          %v361 = vunpack.c.l.b16 %v222
          %v362 = vunpack.c.l.b16 %v223
          %v363 = vunpack.c.l.b16 %v224
          %v364 = vunpack.c.l.b16 %v225
          %v365 = vunpack.c.l.b16 %v226
          %v366 = vunpack.c.l.b16 %v227
          %v367 = vunpack.c.l.b16 %v228
          %v368 = vunpack.c.l.b16 %v229
          %v369 = vunpack.c.l.b16 %v230
          %v370 = vunpack.c.l.b16 %v231
          %v371 = vunpack.c.l.b16 %v232
          %v372 = vunpack.c.l.b16 %v233
          %v373 = vunpack.c.l.b16 %v234
          %v374 = vunpack.c.l.b16 %v235
          %v375 = vunpack.c.l.b16 %v236
          %v376 = vunpack.c.l.b16 %v237
          %v377 = vunpack.c.l.b16 %v238
          %v378 = vunpack.c.l.b16 %v239
          %v379 = vunpack.c.l.b16 %v240
          %v380 = vunpack.c.l.b16 %v241
          %v381 = vunpack.c.l.b16 %v242
          %v382 = vunpack.c.l.b16 %v243
          %v383 = vunpack.c.l.b16 %v244
          %v384 = vunpack.c.l.b16 %v245
          %v385 = vunpack.c.l.b16 %v246
          %v386 = vunpack.c.l.b16 %v247
          %v387 = vunpack.c.l.b16 %v248
          %v388 = vunpack.c.l.b16 %v249
          %v389 = vunpack.c.l.b16 %v250
          %v390 = vunpack.c.l.b16 %v251
          %v391 = vunpack.c.l.b16 %v252
          %v392 = vunpack.c.l.b16 %v253
          %v393 = vunpack.c.l.b16 %v254
          %v394 = vunpack.c.l.b16 %v255
          %v395 = vunpack.c.l.b16 %v256
          %v396 = vunpack.c.l.b16 %v257
          %v397 = vunpack.c.l.b16 %v258
          %v398 = vunpack.c.l.b16 %v259
          %v399 = vunpack.c.l.b16 %v260
          %v400 = vunpack.c.l.b16 %v261
          %v401 = vunpack.c.l.b16 %v262
          %v402 = vunpack.c.l.b16 %v263
          %v403 = vunpack.c.l.b16 %v264
          %v404 = vunpack.c.l.b16 %v265
          %v405 = vunpack.c.l.b16 %v266
          %v406 = vunpack.c.l.b16 %v267
          %v407 = vunpack.c.l.b16 %v268
          %v408 = vunpack.c.l.b16 %v269
          %v409 = vunpack.c.l.b16 %v270
          %v410 = vunpack.c.l.b16 %v271
          %v411 = vunpack.c.l.b16 %v272
          %v412 = vpack.c.b16 %v349, %v348
          %v413 = vpack.c.b16 %v351, %v350
          %v414 = vpack.c.b16 %v353, %v352
          %v415 = vpack.c.b16 %v355, %v354
          %v416 = vpack.c.b16 %v357, %v356
          %v417 = vpack.c.b16 %v359, %v358
          %v418 = vpack.c.b16 %v361, %v360
          %v419 = vpack.c.b16 %v363, %v362
          %v420 = vpack.c.b16 %v365, %v364
          %v421 = vpack.c.b16 %v367, %v366
          %v422 = vpack.c.b16 %v369, %v368
          %v423 = vpack.c.b16 %v371, %v370
          %v424 = vpack.c.b16 %v373, %v372
          %v425 = vpack.c.b16 %v375, %v374
          %v426 = vpack.c.b16 %v377, %v376
          %v427 = vpack.c.b16 %v379, %v378
          %v428 = vpack.c.b16 %v381, %v380
          %v429 = vpack.c.b16 %v383, %v382
          %v430 = vpack.c.b16 %v385, %v384
          %v431 = vpack.c.b16 %v387, %v386
          %v432 = vpack.c.b16 %v389, %v388
          %v433 = vpack.c.b16 %v391, %v390
          %v434 = vpack.c.b16 %v393, %v392
          %v435 = vpack.c.b16 %v395, %v394
          %v436 = vpack.c.b16 %v397, %v396
          %v437 = vpack.c.b16 %v399, %v398
          %v438 = vpack.c.b16 %v401, %v400
          %v439 = vpack.c.b16 %v403, %v402
          %v440 = vpack.c.b16 %v405, %v404
          %v441 = vpack.c.b16 %v407, %v406
          %v442 = vpack.c.b16 %v409, %v408
          %v443 = vpack.c.b16 %v411, %v410
          %v448 = vunpack.c.l.b16 %v273
          %v449 = vunpack.c.l.b16 %v274
          %v450 = vunpack.c.l.b16 %v275
          %v451 = vunpack.c.l.b16 %v276
          %v452 = vpack.c.b16 %v449, %v448
          %v453 = vpack.c.b16 %v451, %v450
          %vm456 = vcmask 261120
          %v458 = vsel %vm456, %v412, 0
          %v461 = vsel %vm456, %v413, 0
          %v464 = vsel %vm456, %v414, 0
          %v467 = vsel %vm456, %v415, 0
          %v470 = vsel %vm456, %v416, 0
          %v473 = vsel %vm456, %v417, 0
          %v476 = vsel %vm456, %v418, 0
          %v479 = vsel %vm456, %v419, 0
          %v482 = vsel %vm456, %v420, 0
          %v485 = vsel %vm456, %v421, 0
          %v488 = vsel %vm456, %v422, 0
          %v491 = vsel %vm456, %v423, 0
          %v494 = vsel %vm456, %v424, 0
          %v497 = vsel %vm456, %v425, 0
          %v500 = vsel %vm456, %v426, 0
          %v503 = vsel %vm456, %v427, 0
          %v506 = vsel %vm456, %v428, 0
          %v509 = vsel %vm456, %v429, 0
          %v512 = vsel %vm456, %v430, 0
          %v515 = vsel %vm456, %v431, 0
          %v518 = vsel %vm456, %v432, 0
          %v521 = vsel %vm456, %v433, 0
          %v524 = vsel %vm456, %v434, 0
          %v527 = vsel %vm456, %v435, 0
          %v530 = vsel %vm456, %v436, 0
          %v533 = vsel %vm456, %v437, 0
          %v536 = vsel %vm456, %v438, 0
          %v539 = vsel %vm456, %v439, 0
          %v542 = vsel %vm456, %v440, 0
          %v545 = vsel %vm456, %v441, 0
          %v548 = vsel %vm456, %v442, 0
          %v551 = vsel %vm456, %v443, 0
          %553 = vmatprep.subr.bf16.mxu0 0
          %554 = vmatpush1.bf16.msra.mxu0 0
          %555 = vmatprep.subr.bf16.mxu0 0
          %556 = vmatpush1.bf16.msra.mxu0 0
          %557 = vmatprep.subr.bf16.mxu0 0
          %558 = vmatpush1.bf16.msra.mxu0 0
          %559 = vmatprep.subr.bf16.mxu0 0
          %560 = vmatpush1.bf16.msra.mxu0 0
          %561 = vmatprep.subr.bf16.mxu0 0
          %562 = vmatpush1.bf16.msra.mxu0 0
          %563 = vmatprep.subr.bf16.mxu0 0
          %564 = vmatpush1.bf16.msra.mxu0 0
          %565 = vmatprep.subr.bf16.mxu0 0
          %566 = vmatpush1.bf16.msra.mxu0 %v453
          %567 = vmatprep.subr.bf16.mxu0 0
          %568 = vmatpush1.bf16.msra.mxu0 %v452
          %569 = vmatprep.subr.bf16.mxu0 0
          %570 = vmatpush2.bf16.msra.mxu0 0
          %571 = vmatprep.subr.bf16.mxu0 0
          %572 = vmatpush2.bf16.msra.mxu0 0
          %573 = vmatprep.subr.bf16.mxu0 0
          %574 = vmatpush2.bf16.msra.mxu0 0
          %575 = vmatprep.subr.bf16.mxu0 0
          %576 = vmatpush2.bf16.msra.mxu0 0
          %577 = vmatprep.subr.bf16.mxu0 0
          %578 = vmatpush2.bf16.msra.mxu0 0
          %579 = vmatprep.subr.bf16.mxu0 0
          %580 = vmatpush2.bf16.msra.mxu0 0
          %581 = vmatprep.subr.bf16.mxu0 0
          %582 = vmatpush2.bf16.msra.mxu0 0
          %583 = vmatprep.subr.bf16.mxu0 0
          %584 = vmatpush2.bf16.msra.mxu0 0
          %585 = vmatprep.mubr.bf16.mxu0 0
          %586 = vmatmul.mubr.bf16.gmra.mxu0 %v458
          %v587 = vpop.f32.mrf.mxu0
          %v588 = vadd.f32 %v282, %v587
          %v589 = vpop.f32.mrf.mxu0
          %v590 = vpop.f32.mrf.mxu0
          %v591 = vadd.f32 %v282, %v590
          %v592 = vpop.f32.mrf.mxu0
          %593 = vmatprep.mubr.bf16.mxu0 0
          %594 = vmatmul.mubr.bf16.gmra.mxu0 %v461
          %v595 = vpop.f32.mrf.mxu0
          %v596 = vadd.f32 %v282, %v595
          %v597 = vpop.f32.mrf.mxu0
          %v598 = vpop.f32.mrf.mxu0
          %v599 = vadd.f32 %v282, %v598
          %v600 = vpop.f32.mrf.mxu0
          %601 = vmatprep.mubr.bf16.mxu0 0
          %602 = vmatmul.mubr.bf16.gmra.mxu0 %v464
          %v603 = vpop.f32.mrf.mxu0
          %v604 = vadd.f32 %v282, %v603
          %v605 = vpop.f32.mrf.mxu0
          %v606 = vpop.f32.mrf.mxu0
          %v607 = vadd.f32 %v282, %v606
          %v608 = vpop.f32.mrf.mxu0
          %609 = vmatprep.mubr.bf16.mxu0 0
          %610 = vmatmul.mubr.bf16.gmra.mxu0 %v467
          %v611 = vpop.f32.mrf.mxu0
          %v612 = vadd.f32 %v282, %v611
          %v613 = vpop.f32.mrf.mxu0
          %v614 = vpop.f32.mrf.mxu0
          %v615 = vadd.f32 %v282, %v614
          %v616 = vpop.f32.mrf.mxu0
          %617 = vmatprep.mubr.bf16.mxu0 0
          %618 = vmatmul.mubr.bf16.gmra.mxu0 %v470
          %v619 = vpop.f32.mrf.mxu0
          %v620 = vadd.f32 %v282, %v619
          %v621 = vpop.f32.mrf.mxu0
          %v622 = vpop.f32.mrf.mxu0
          %v623 = vadd.f32 %v282, %v622
          %v624 = vpop.f32.mrf.mxu0
          %625 = vmatprep.mubr.bf16.mxu0 0
          %626 = vmatmul.mubr.bf16.gmra.mxu0 %v473
          %v627 = vpop.f32.mrf.mxu0
          %v628 = vadd.f32 %v282, %v627
          %v629 = vpop.f32.mrf.mxu0
          %v630 = vpop.f32.mrf.mxu0
          %v631 = vadd.f32 %v282, %v630
          %v632 = vpop.f32.mrf.mxu0
          %633 = vmatprep.mubr.bf16.mxu0 0
          %634 = vmatmul.mubr.bf16.gmra.mxu0 %v476
          %v635 = vpop.f32.mrf.mxu0
          %v636 = vadd.f32 %v282, %v635
          %v637 = vpop.f32.mrf.mxu0
          %v638 = vpop.f32.mrf.mxu0
          %v639 = vadd.f32 %v282, %v638
          %v640 = vpop.f32.mrf.mxu0
          %641 = vmatprep.mubr.bf16.mxu0 0
          %642 = vmatmul.mubr.bf16.gmra.mxu0 %v479
          %v643 = vpop.f32.mrf.mxu0
          %v644 = vadd.f32 %v282, %v643
          %v645 = vpop.f32.mrf.mxu0
          %v646 = vpop.f32.mrf.mxu0
          %v647 = vadd.f32 %v282, %v646
          %v648 = vpop.f32.mrf.mxu0
          %649 = vmatprep.mubr.bf16.mxu0 0
          %650 = vmatmul.mubr.bf16.gmra.mxu0 %v482
          %v651 = vpop.f32.mrf.mxu0
          %v652 = vadd.f32 %v282, %v651
          %v653 = vpop.f32.mrf.mxu0
          %v654 = vpop.f32.mrf.mxu0
          %v655 = vadd.f32 %v282, %v654
          %v656 = vpop.f32.mrf.mxu0
          %657 = vmatprep.mubr.bf16.mxu0 0
          %658 = vmatmul.mubr.bf16.gmra.mxu0 %v485
          %v659 = vpop.f32.mrf.mxu0
          %v660 = vadd.f32 %v282, %v659
          %v661 = vpop.f32.mrf.mxu0
          %v662 = vpop.f32.mrf.mxu0
          %v663 = vadd.f32 %v282, %v662
          %v664 = vpop.f32.mrf.mxu0
          %665 = vmatprep.mubr.bf16.mxu0 0
          %666 = vmatmul.mubr.bf16.gmra.mxu0 %v488
          %v667 = vpop.f32.mrf.mxu0
          %v668 = vadd.f32 %v282, %v667
          %v669 = vpop.f32.mrf.mxu0
          %v670 = vpop.f32.mrf.mxu0
          %v671 = vadd.f32 %v282, %v670
          %v672 = vpop.f32.mrf.mxu0
          %673 = vmatprep.mubr.bf16.mxu0 0
          %674 = vmatmul.mubr.bf16.gmra.mxu0 %v491
          %v675 = vpop.f32.mrf.mxu0
          %v676 = vadd.f32 %v282, %v675
          %v677 = vpop.f32.mrf.mxu0
          %v678 = vpop.f32.mrf.mxu0
          %v679 = vadd.f32 %v282, %v678
          %v680 = vpop.f32.mrf.mxu0
          %681 = vmatprep.mubr.bf16.mxu0 0
          %682 = vmatmul.mubr.bf16.gmra.mxu0 %v494
          %v683 = vpop.f32.mrf.mxu0
          %v684 = vadd.f32 %v282, %v683
          %v685 = vpop.f32.mrf.mxu0
          %v686 = vpop.f32.mrf.mxu0
          %v687 = vadd.f32 %v282, %v686
          %v688 = vpop.f32.mrf.mxu0
          %689 = vmatprep.mubr.bf16.mxu0 0
          %690 = vmatmul.mubr.bf16.gmra.mxu0 %v497
          %v691 = vpop.f32.mrf.mxu0
          %v692 = vadd.f32 %v282, %v691
          %v693 = vpop.f32.mrf.mxu0
          %v694 = vpop.f32.mrf.mxu0
          %v695 = vadd.f32 %v282, %v694
          %v696 = vpop.f32.mrf.mxu0
          %697 = vmatprep.mubr.bf16.mxu0 0
          %698 = vmatmul.mubr.bf16.gmra.mxu0 %v500
          %v699 = vpop.f32.mrf.mxu0
          %v700 = vadd.f32 %v282, %v699
          %v701 = vpop.f32.mrf.mxu0
          %v702 = vpop.f32.mrf.mxu0
          %v703 = vadd.f32 %v282, %v702
          %v704 = vpop.f32.mrf.mxu0
          %705 = vmatprep.mubr.bf16.mxu0 0
          %706 = vmatmul.mubr.bf16.gmra.mxu0 %v503
          %v707 = vpop.f32.mrf.mxu0
          %v708 = vadd.f32 %v282, %v707
          %v709 = vpop.f32.mrf.mxu0
          %v710 = vpop.f32.mrf.mxu0
          %v711 = vadd.f32 %v282, %v710
          %v712 = vpop.f32.mrf.mxu0
          %713 = vmatprep.mubr.bf16.mxu0 0
          %714 = vmatmul.mubr.bf16.gmra.mxu0 %v506
          %v715 = vpop.f32.mrf.mxu0
          %v716 = vadd.f32 %v282, %v715
          %v717 = vpop.f32.mrf.mxu0
          %v718 = vpop.f32.mrf.mxu0
          %v719 = vadd.f32 %v282, %v718
          %v720 = vpop.f32.mrf.mxu0
          %721 = vmatprep.mubr.bf16.mxu0 0
          %722 = vmatmul.mubr.bf16.gmra.mxu0 %v509
          %v723 = vpop.f32.mrf.mxu0
          %v724 = vadd.f32 %v282, %v723
          %v725 = vpop.f32.mrf.mxu0
          %v726 = vpop.f32.mrf.mxu0
          %v727 = vadd.f32 %v282, %v726
          %v728 = vpop.f32.mrf.mxu0
          %729 = vmatprep.mubr.bf16.mxu0 0
          %730 = vmatmul.mubr.bf16.gmra.mxu0 %v512
          %v731 = vpop.f32.mrf.mxu0
          %v732 = vadd.f32 %v282, %v731
          %v733 = vpop.f32.mrf.mxu0
          %v734 = vpop.f32.mrf.mxu0
          %v735 = vadd.f32 %v282, %v734
          %v736 = vpop.f32.mrf.mxu0
          %737 = vmatprep.mubr.bf16.mxu0 0
          %738 = vmatmul.mubr.bf16.gmra.mxu0 %v515
          %v739 = vpop.f32.mrf.mxu0
          %v740 = vadd.f32 %v282, %v739
          %v741 = vpop.f32.mrf.mxu0
          %v742 = vpop.f32.mrf.mxu0
          %v743 = vadd.f32 %v282, %v742
          %v744 = vpop.f32.mrf.mxu0
          %745 = vmatprep.mubr.bf16.mxu0 0
          %746 = vmatmul.mubr.bf16.gmra.mxu0 %v518
          %v747 = vpop.f32.mrf.mxu0
          %v748 = vadd.f32 %v282, %v747
          %v749 = vpop.f32.mrf.mxu0
          %v750 = vpop.f32.mrf.mxu0
          %v751 = vadd.f32 %v282, %v750
          %v752 = vpop.f32.mrf.mxu0
          %753 = vmatprep.mubr.bf16.mxu0 0
          %754 = vmatmul.mubr.bf16.gmra.mxu0 %v521
          %v755 = vpop.f32.mrf.mxu0
          %v756 = vadd.f32 %v282, %v755
          %v757 = vpop.f32.mrf.mxu0
          %v758 = vpop.f32.mrf.mxu0
          %v759 = vadd.f32 %v282, %v758
          %v760 = vpop.f32.mrf.mxu0
          %761 = vmatprep.mubr.bf16.mxu0 0
          %762 = vmatmul.mubr.bf16.gmra.mxu0 %v524
          %v763 = vpop.f32.mrf.mxu0
          %v764 = vadd.f32 %v282, %v763
          %v765 = vpop.f32.mrf.mxu0
          %v766 = vpop.f32.mrf.mxu0
          %v767 = vadd.f32 %v282, %v766
          %v768 = vpop.f32.mrf.mxu0
          %769 = vmatprep.mubr.bf16.mxu0 0
          %770 = vmatmul.mubr.bf16.gmra.mxu0 %v527
          %v771 = vpop.f32.mrf.mxu0
          %v772 = vadd.f32 %v282, %v771
          %v773 = vpop.f32.mrf.mxu0
          %v774 = vpop.f32.mrf.mxu0
          %v775 = vadd.f32 %v282, %v774
          %v776 = vpop.f32.mrf.mxu0
          %777 = vmatprep.mubr.bf16.mxu0 0
          %778 = vmatmul.mubr.bf16.gmra.mxu0 %v530
          %v779 = vpop.f32.mrf.mxu0
          %v780 = vadd.f32 %v282, %v779
          %v781 = vpop.f32.mrf.mxu0
          %v782 = vpop.f32.mrf.mxu0
          %v783 = vadd.f32 %v282, %v782
          %v784 = vpop.f32.mrf.mxu0
          %785 = vmatprep.mubr.bf16.mxu0 0
          %786 = vmatmul.mubr.bf16.gmra.mxu0 %v533
          %v787 = vpop.f32.mrf.mxu0
          %v788 = vadd.f32 %v282, %v787
          %v789 = vpop.f32.mrf.mxu0
          %v790 = vpop.f32.mrf.mxu0
          %v791 = vadd.f32 %v282, %v790
          %v792 = vpop.f32.mrf.mxu0
          %793 = vmatprep.mubr.bf16.mxu0 0
          %794 = vmatmul.mubr.bf16.gmra.mxu0 %v536
          %v795 = vpop.f32.mrf.mxu0
          %v796 = vadd.f32 %v282, %v795
          %v797 = vpop.f32.mrf.mxu0
          %v798 = vpop.f32.mrf.mxu0
          %v799 = vadd.f32 %v282, %v798
          %v800 = vpop.f32.mrf.mxu0
          %801 = vmatprep.mubr.bf16.mxu0 0
          %802 = vmatmul.mubr.bf16.gmra.mxu0 %v539
          %v803 = vpop.f32.mrf.mxu0
          %v804 = vadd.f32 %v282, %v803
          %v805 = vpop.f32.mrf.mxu0
          %v806 = vpop.f32.mrf.mxu0
          %v807 = vadd.f32 %v282, %v806
          %v808 = vpop.f32.mrf.mxu0
          %809 = vmatprep.mubr.bf16.mxu0 0
          %810 = vmatmul.mubr.bf16.gmra.mxu0 %v542
          %v811 = vpop.f32.mrf.mxu0
          %v812 = vadd.f32 %v282, %v811
          %v813 = vpop.f32.mrf.mxu0
          %v814 = vpop.f32.mrf.mxu0
          %v815 = vadd.f32 %v282, %v814
          %v816 = vpop.f32.mrf.mxu0
          %817 = vmatprep.mubr.bf16.mxu0 0
          %818 = vmatmul.mubr.bf16.gmra.mxu0 %v545
          %v819 = vpop.f32.mrf.mxu0
          %v820 = vadd.f32 %v282, %v819
          %v821 = vpop.f32.mrf.mxu0
          %v822 = vpop.f32.mrf.mxu0
          %v823 = vadd.f32 %v282, %v822
          %v824 = vpop.f32.mrf.mxu0
          %825 = vmatprep.mubr.bf16.mxu0 0
          %826 = vmatmul.mubr.bf16.gmra.mxu0 %v548
          %v827 = vpop.f32.mrf.mxu0
          %v828 = vadd.f32 %v282, %v827
          %v829 = vpop.f32.mrf.mxu0
          %v830 = vpop.f32.mrf.mxu0
          %v831 = vadd.f32 %v282, %v830
          %v832 = vpop.f32.mrf.mxu0
          %833 = vmatprep.mubr.bf16.mxu0 0
          %834 = vmatmul.mubr.bf16.gmra.mxu0 %v551
          %v835 = vpop.f32.mrf.mxu0
          %v836 = vadd.f32 %v282, %v835
          %v837 = vpop.f32.mrf.mxu0
          %v838 = vpop.f32.mrf.mxu0
          %v839 = vadd.f32 %v282, %v838
          %v840 = vpop.f32.mrf.mxu0
          %841 = vdwg.mxu0
          %v842 = vmax.f32 %v588, 0.0
          %v843 = vmax.f32 %v591, 0.0
          %v844 = vmax.f32 %v596, 0.0
          %v845 = vmax.f32 %v599, 0.0
          %v846 = vmax.f32 %v604, 0.0
          %v847 = vmax.f32 %v607, 0.0
          %v848 = vmax.f32 %v612, 0.0
          %v849 = vmax.f32 %v615, 0.0
          %v850 = vmax.f32 %v620, 0.0
          %v851 = vmax.f32 %v623, 0.0
          %v852 = vmax.f32 %v628, 0.0
          %v853 = vmax.f32 %v631, 0.0
          %v854 = vmax.f32 %v636, 0.0
          %v855 = vmax.f32 %v639, 0.0
          %v856 = vmax.f32 %v644, 0.0
          %v857 = vmax.f32 %v647, 0.0
          %v858 = vmax.f32 %v652, 0.0
          %v859 = vmax.f32 %v655, 0.0
          %v860 = vmax.f32 %v660, 0.0
          %v861 = vmax.f32 %v663, 0.0
          %v862 = vmax.f32 %v668, 0.0
          %v863 = vmax.f32 %v671, 0.0
          %v864 = vmax.f32 %v676, 0.0
          %v865 = vmax.f32 %v679, 0.0
          %v866 = vmax.f32 %v684, 0.0
          %v867 = vmax.f32 %v687, 0.0
          %v868 = vmax.f32 %v692, 0.0
          %v869 = vmax.f32 %v695, 0.0
          %v870 = vmax.f32 %v700, 0.0
          %v871 = vmax.f32 %v703, 0.0
          %v872 = vmax.f32 %v708, 0.0
          %v873 = vmax.f32 %v711, 0.0
          %v874 = vmax.f32 %v716, 0.0
          %v875 = vmax.f32 %v719, 0.0
          %v876 = vmax.f32 %v724, 0.0
          %v877 = vmax.f32 %v727, 0.0
          %v878 = vmax.f32 %v732, 0.0
          %v879 = vmax.f32 %v735, 0.0
          %v880 = vmax.f32 %v740, 0.0
          %v881 = vmax.f32 %v743, 0.0
          %v882 = vmax.f32 %v748, 0.0
          %v883 = vmax.f32 %v751, 0.0
          %v884 = vmax.f32 %v756, 0.0
          %v885 = vmax.f32 %v759, 0.0
          %v886 = vmax.f32 %v764, 0.0
          %v887 = vmax.f32 %v767, 0.0
          %v888 = vmax.f32 %v772, 0.0
          %v889 = vmax.f32 %v775, 0.0
          %v890 = vmax.f32 %v780, 0.0
          %v891 = vmax.f32 %v783, 0.0
          %v892 = vmax.f32 %v788, 0.0
          %v893 = vmax.f32 %v791, 0.0
          %v894 = vmax.f32 %v796, 0.0
          %v895 = vmax.f32 %v799, 0.0
          %v896 = vmax.f32 %v804, 0.0
          %v897 = vmax.f32 %v807, 0.0
          %v898 = vmax.f32 %v812, 0.0
          %v899 = vmax.f32 %v815, 0.0
          %v900 = vmax.f32 %v820, 0.0
          %v901 = vmax.f32 %v823, 0.0
          %v902 = vmax.f32 %v828, 0.0
          %v903 = vmax.f32 %v831, 0.0
          %v904 = vmax.f32 %v836, 0.0
          %v905 = vmax.f32 %v839, 0.0
          %v906 = vpack.c.bf16 %v843, %v842
          %v907 = vpack.c.bf16 %v845, %v844
          %v908 = vpack.c.bf16 %v847, %v846
          %v909 = vpack.c.bf16 %v849, %v848
          %v910 = vpack.c.bf16 %v851, %v850
          %v911 = vpack.c.bf16 %v853, %v852
          %v912 = vpack.c.bf16 %v855, %v854
          %v913 = vpack.c.bf16 %v857, %v856
          %v914 = vpack.c.bf16 %v859, %v858
          %v915 = vpack.c.bf16 %v861, %v860
          %v916 = vpack.c.bf16 %v863, %v862
          %v917 = vpack.c.bf16 %v865, %v864
          %v918 = vpack.c.bf16 %v867, %v866
          %v919 = vpack.c.bf16 %v869, %v868
          %v920 = vpack.c.bf16 %v871, %v870
          %v921 = vpack.c.bf16 %v873, %v872
          %v922 = vpack.c.bf16 %v875, %v874
          %v923 = vpack.c.bf16 %v877, %v876
          %v924 = vpack.c.bf16 %v879, %v878
          %v925 = vpack.c.bf16 %v881, %v880
          %v926 = vpack.c.bf16 %v883, %v882
          %v927 = vpack.c.bf16 %v885, %v884
          %v928 = vpack.c.bf16 %v887, %v886
          %v929 = vpack.c.bf16 %v889, %v888
          %v930 = vpack.c.bf16 %v891, %v890
          %v931 = vpack.c.bf16 %v893, %v892
          %v932 = vpack.c.bf16 %v895, %v894
          %v933 = vpack.c.bf16 %v897, %v896
          %v934 = vpack.c.bf16 %v899, %v898
          %v935 = vpack.c.bf16 %v901, %v900
          %v936 = vpack.c.bf16 %v903, %v902
          %v937 = vpack.c.bf16 %v905, %v904
          %v938 = vld [vmem:[%s4] sm:$0xf]
          %v939 = vld [vmem:[%s4 + $0x4] sm:$0xf]
          %v940 = vld [vmem:[%s4 + $0x8] sm:$0xf]
          %v941 = vld [vmem:[%s4 + $0xc] sm:$0xf]
          %v942 = vld [vmem:[%s4 + $0x10] sm:$0xf]
          %v943 = vld [vmem:[%s4 + $0x14] sm:$0xf]
          %v944 = vld [vmem:[%s4 + $0x18] sm:$0xf]
          %v945 = vld [vmem:[%s4 + $0x1c] sm:$0xf]
          %v946 = vld [vmem:[%s5] sm:$0x1]
          %v948 = vlaneseq
          %v949 = vshrl.u32 %v948, 7
          %v950 = vsub.s32 0, %v949
          %v951 = vrot.slane %v946, %v950
          %v961 = vunpack.c.l.b16 %v938
          %v962 = vunpack.c.l.b16 %v939
          %v963 = vunpack.c.l.b16 %v940
          %v964 = vunpack.c.l.b16 %v941
          %v965 = vunpack.c.l.b16 %v942
          %v966 = vunpack.c.l.b16 %v943
          %v967 = vunpack.c.l.b16 %v944
          %v968 = vunpack.c.l.b16 %v945
          %v969 = vpack.c.b16 %v962, %v961
          %v970 = vpack.c.b16 %v964, %v963
          %v971 = vpack.c.b16 %v966, %v965
          %v972 = vpack.c.b16 %v968, %v967
          %vm977 = vcmask 523264
          %v979 = vsel %vm977, %v906, 0
          %v982 = vsel %vm977, %v907, 0
          %v985 = vsel %vm977, %v908, 0
          %v988 = vsel %vm977, %v909, 0
          %v991 = vsel %vm977, %v910, 0
          %v994 = vsel %vm977, %v911, 0
          %v997 = vsel %vm977, %v912, 0
          %v1000 = vsel %vm977, %v913, 0
          %v1003 = vsel %vm977, %v914, 0
          %v1006 = vsel %vm977, %v915, 0
          %v1009 = vsel %vm977, %v916, 0
          %v1012 = vsel %vm977, %v917, 0
          %v1015 = vsel %vm977, %v918, 0
          %v1018 = vsel %vm977, %v919, 0
          %v1021 = vsel %vm977, %v920, 0
          %v1024 = vsel %vm977, %v921, 0
          %v1027 = vsel %vm977, %v922, 0
          %v1030 = vsel %vm977, %v923, 0
          %v1033 = vsel %vm977, %v924, 0
          %v1036 = vsel %vm977, %v925, 0
          %v1039 = vsel %vm977, %v926, 0
          %v1042 = vsel %vm977, %v927, 0
          %v1045 = vsel %vm977, %v928, 0
          %v1048 = vsel %vm977, %v929, 0
          %v1051 = vsel %vm977, %v930, 0
          %v1054 = vsel %vm977, %v931, 0
          %v1057 = vsel %vm977, %v932, 0
          %v1060 = vsel %vm977, %v933, 0
          %v1063 = vsel %vm977, %v934, 0
          %v1066 = vsel %vm977, %v935, 0
          %v1069 = vsel %vm977, %v936, 0
          %v1072 = vsel %vm977, %v937, 0
          %1074 = vmatprep.subr.bf16.mxu0 0
          %1075 = vmatpush1.bf16.msra.mxu0 0
          %1076 = vmatprep.subr.bf16.mxu0 0
          %1077 = vmatpush1.bf16.msra.mxu0 0
          %1078 = vmatprep.subr.bf16.mxu0 0
          %1079 = vmatpush1.bf16.msra.mxu0 0
          %1080 = vmatprep.subr.bf16.mxu0 0
          %1081 = vmatpush1.bf16.msra.mxu0 0
          %1082 = vmatprep.subr.bf16.mxu0 0
          %1083 = vmatpush1.bf16.msra.mxu0 %v972
          %1084 = vmatprep.subr.bf16.mxu0 0
          %1085 = vmatpush1.bf16.msra.mxu0 %v971
          %1086 = vmatprep.subr.bf16.mxu0 0
          %1087 = vmatpush1.bf16.msra.mxu0 %v970
          %1088 = vmatprep.subr.bf16.mxu0 0
          %1089 = vmatpush1.bf16.msra.mxu0 %v969
          %1090 = vmatprep.subr.bf16.mxu0 0
          %1091 = vmatpush2.bf16.msra.mxu0 0
          %1092 = vmatprep.subr.bf16.mxu0 0
          %1093 = vmatpush2.bf16.msra.mxu0 0
          %1094 = vmatprep.subr.bf16.mxu0 0
          %1095 = vmatpush2.bf16.msra.mxu0 0
          %1096 = vmatprep.subr.bf16.mxu0 0
          %1097 = vmatpush2.bf16.msra.mxu0 0
          %1098 = vmatprep.subr.bf16.mxu0 0
          %1099 = vmatpush2.bf16.msra.mxu0 0
          %1100 = vmatprep.subr.bf16.mxu0 0
          %1101 = vmatpush2.bf16.msra.mxu0 0
          %1102 = vmatprep.subr.bf16.mxu0 0
          %1103 = vmatpush2.bf16.msra.mxu0 0
          %1104 = vmatprep.subr.bf16.mxu0 0
          %1105 = vmatpush2.bf16.msra.mxu0 0
          %1106 = vmatprep.mubr.bf16.mxu0 0
          %1107 = vmatmul.mubr.bf16.gmra.mxu0 %v979
          %v1108 = vpop.f32.mrf.mxu0
          %v1109 = vadd.f32 %v951, %v1108
          %v1110 = vpop.f32.mrf.mxu0
          %v1111 = vpop.f32.mrf.mxu0
          %v1112 = vadd.f32 %v951, %v1111
          %v1113 = vpop.f32.mrf.mxu0
          %1114 = vmatprep.mubr.bf16.mxu0 0
          %1115 = vmatmul.mubr.bf16.gmra.mxu0 %v982
          %v1116 = vpop.f32.mrf.mxu0
          %v1117 = vadd.f32 %v951, %v1116
          %v1118 = vpop.f32.mrf.mxu0
          %v1119 = vpop.f32.mrf.mxu0
          %v1120 = vadd.f32 %v951, %v1119
          %v1121 = vpop.f32.mrf.mxu0
          %1122 = vmatprep.mubr.bf16.mxu0 0
          %1123 = vmatmul.mubr.bf16.gmra.mxu0 %v985
          %v1124 = vpop.f32.mrf.mxu0
          %v1125 = vadd.f32 %v951, %v1124
          %v1126 = vpop.f32.mrf.mxu0
          %v1127 = vpop.f32.mrf.mxu0
          %v1128 = vadd.f32 %v951, %v1127
          %v1129 = vpop.f32.mrf.mxu0
          %1130 = vmatprep.mubr.bf16.mxu0 0
          %1131 = vmatmul.mubr.bf16.gmra.mxu0 %v988
          %v1132 = vpop.f32.mrf.mxu0
          %v1133 = vadd.f32 %v951, %v1132
          %v1134 = vpop.f32.mrf.mxu0
          %v1135 = vpop.f32.mrf.mxu0
          %v1136 = vadd.f32 %v951, %v1135
          %v1137 = vpop.f32.mrf.mxu0
          %1138 = vmatprep.mubr.bf16.mxu0 0
          %1139 = vmatmul.mubr.bf16.gmra.mxu0 %v991
          %v1140 = vpop.f32.mrf.mxu0
          %v1141 = vadd.f32 %v951, %v1140
          %v1142 = vpop.f32.mrf.mxu0
          %v1143 = vpop.f32.mrf.mxu0
          %v1144 = vadd.f32 %v951, %v1143
          %v1145 = vpop.f32.mrf.mxu0
          %1146 = vmatprep.mubr.bf16.mxu0 0
          %1147 = vmatmul.mubr.bf16.gmra.mxu0 %v994
          %v1148 = vpop.f32.mrf.mxu0
          %v1149 = vadd.f32 %v951, %v1148
          %v1150 = vpop.f32.mrf.mxu0
          %v1151 = vpop.f32.mrf.mxu0
          %v1152 = vadd.f32 %v951, %v1151
          %v1153 = vpop.f32.mrf.mxu0
          %1154 = vmatprep.mubr.bf16.mxu0 0
          %1155 = vmatmul.mubr.bf16.gmra.mxu0 %v997
          %v1156 = vpop.f32.mrf.mxu0
          %v1157 = vadd.f32 %v951, %v1156
          %v1158 = vpop.f32.mrf.mxu0
          %v1159 = vpop.f32.mrf.mxu0
          %v1160 = vadd.f32 %v951, %v1159
          %v1161 = vpop.f32.mrf.mxu0
          %1162 = vmatprep.mubr.bf16.mxu0 0
          %1163 = vmatmul.mubr.bf16.gmra.mxu0 %v1000
          %v1164 = vpop.f32.mrf.mxu0
          %v1165 = vadd.f32 %v951, %v1164
          %v1166 = vpop.f32.mrf.mxu0
          %v1167 = vpop.f32.mrf.mxu0
          %v1168 = vadd.f32 %v951, %v1167
          %v1169 = vpop.f32.mrf.mxu0
          %1170 = vmatprep.mubr.bf16.mxu0 0
          %1171 = vmatmul.mubr.bf16.gmra.mxu0 %v1003
          %v1172 = vpop.f32.mrf.mxu0
          %v1173 = vadd.f32 %v951, %v1172
          %v1174 = vpop.f32.mrf.mxu0
          %v1175 = vpop.f32.mrf.mxu0
          %v1176 = vadd.f32 %v951, %v1175
          %v1177 = vpop.f32.mrf.mxu0
          %1178 = vmatprep.mubr.bf16.mxu0 0
          %1179 = vmatmul.mubr.bf16.gmra.mxu0 %v1006
          %v1180 = vpop.f32.mrf.mxu0
          %v1181 = vadd.f32 %v951, %v1180
          %v1182 = vpop.f32.mrf.mxu0
          %v1183 = vpop.f32.mrf.mxu0
          %v1184 = vadd.f32 %v951, %v1183
          %v1185 = vpop.f32.mrf.mxu0
          %1186 = vmatprep.mubr.bf16.mxu0 0
          %1187 = vmatmul.mubr.bf16.gmra.mxu0 %v1009
          %v1188 = vpop.f32.mrf.mxu0
          %v1189 = vadd.f32 %v951, %v1188
          %v1190 = vpop.f32.mrf.mxu0
          %v1191 = vpop.f32.mrf.mxu0
          %v1192 = vadd.f32 %v951, %v1191
          %v1193 = vpop.f32.mrf.mxu0
          %1194 = vmatprep.mubr.bf16.mxu0 0
          %1195 = vmatmul.mubr.bf16.gmra.mxu0 %v1012
          %v1196 = vpop.f32.mrf.mxu0
          %v1197 = vadd.f32 %v951, %v1196
          %v1198 = vpop.f32.mrf.mxu0
          %v1199 = vpop.f32.mrf.mxu0
          %v1200 = vadd.f32 %v951, %v1199
          %v1201 = vpop.f32.mrf.mxu0
          %1202 = vmatprep.mubr.bf16.mxu0 0
          %1203 = vmatmul.mubr.bf16.gmra.mxu0 %v1015
          %v1204 = vpop.f32.mrf.mxu0
          %v1205 = vadd.f32 %v951, %v1204
          %v1206 = vpop.f32.mrf.mxu0
          %v1207 = vpop.f32.mrf.mxu0
          %v1208 = vadd.f32 %v951, %v1207
          %v1209 = vpop.f32.mrf.mxu0
          %1210 = vmatprep.mubr.bf16.mxu0 0
          %1211 = vmatmul.mubr.bf16.gmra.mxu0 %v1018
          %v1212 = vpop.f32.mrf.mxu0
          %v1213 = vadd.f32 %v951, %v1212
          %v1214 = vpop.f32.mrf.mxu0
          %v1215 = vpop.f32.mrf.mxu0
          %v1216 = vadd.f32 %v951, %v1215
          %v1217 = vpop.f32.mrf.mxu0
          %1218 = vmatprep.mubr.bf16.mxu0 0
          %1219 = vmatmul.mubr.bf16.gmra.mxu0 %v1021
          %v1220 = vpop.f32.mrf.mxu0
          %v1221 = vadd.f32 %v951, %v1220
          %v1222 = vpop.f32.mrf.mxu0
          %v1223 = vpop.f32.mrf.mxu0
          %v1224 = vadd.f32 %v951, %v1223
          %v1225 = vpop.f32.mrf.mxu0
          %1226 = vmatprep.mubr.bf16.mxu0 0
          %1227 = vmatmul.mubr.bf16.gmra.mxu0 %v1024
          %v1228 = vpop.f32.mrf.mxu0
          %v1229 = vadd.f32 %v951, %v1228
          %v1230 = vpop.f32.mrf.mxu0
          %v1231 = vpop.f32.mrf.mxu0
          %v1232 = vadd.f32 %v951, %v1231
          %v1233 = vpop.f32.mrf.mxu0
          %1234 = vmatprep.mubr.bf16.mxu0 0
          %1235 = vmatmul.mubr.bf16.gmra.mxu0 %v1027
          %v1236 = vpop.f32.mrf.mxu0
          %v1237 = vadd.f32 %v951, %v1236
          %v1238 = vpop.f32.mrf.mxu0
          %v1239 = vpop.f32.mrf.mxu0
          %v1240 = vadd.f32 %v951, %v1239
          %v1241 = vpop.f32.mrf.mxu0
          %1242 = vmatprep.mubr.bf16.mxu0 0
          %1243 = vmatmul.mubr.bf16.gmra.mxu0 %v1030
          %v1244 = vpop.f32.mrf.mxu0
          %v1245 = vadd.f32 %v951, %v1244
          %v1246 = vpop.f32.mrf.mxu0
          %v1247 = vpop.f32.mrf.mxu0
          %v1248 = vadd.f32 %v951, %v1247
          %v1249 = vpop.f32.mrf.mxu0
          %1250 = vmatprep.mubr.bf16.mxu0 0
          %1251 = vmatmul.mubr.bf16.gmra.mxu0 %v1033
          %v1252 = vpop.f32.mrf.mxu0
          %v1253 = vadd.f32 %v951, %v1252
          %v1254 = vpop.f32.mrf.mxu0
          %v1255 = vpop.f32.mrf.mxu0
          %v1256 = vadd.f32 %v951, %v1255
          %v1257 = vpop.f32.mrf.mxu0
          %1258 = vmatprep.mubr.bf16.mxu0 0
          %1259 = vmatmul.mubr.bf16.gmra.mxu0 %v1036
          %v1260 = vpop.f32.mrf.mxu0
          %v1261 = vadd.f32 %v951, %v1260
          %v1262 = vpop.f32.mrf.mxu0
          %v1263 = vpop.f32.mrf.mxu0
          %v1264 = vadd.f32 %v951, %v1263
          %v1265 = vpop.f32.mrf.mxu0
          %1266 = vmatprep.mubr.bf16.mxu0 0
          %1267 = vmatmul.mubr.bf16.gmra.mxu0 %v1039
          %v1268 = vpop.f32.mrf.mxu0
          %v1269 = vadd.f32 %v951, %v1268
          %v1270 = vpop.f32.mrf.mxu0
          %v1271 = vpop.f32.mrf.mxu0
          %v1272 = vadd.f32 %v951, %v1271
          %v1273 = vpop.f32.mrf.mxu0
          %1274 = vmatprep.mubr.bf16.mxu0 0
          %1275 = vmatmul.mubr.bf16.gmra.mxu0 %v1042
          %v1276 = vpop.f32.mrf.mxu0
          %v1277 = vadd.f32 %v951, %v1276
          %v1278 = vpop.f32.mrf.mxu0
          %v1279 = vpop.f32.mrf.mxu0
          %v1280 = vadd.f32 %v951, %v1279
          %v1281 = vpop.f32.mrf.mxu0
          %1282 = vmatprep.mubr.bf16.mxu0 0
          %1283 = vmatmul.mubr.bf16.gmra.mxu0 %v1045
          %v1284 = vpop.f32.mrf.mxu0
          %v1285 = vadd.f32 %v951, %v1284
          %v1286 = vpop.f32.mrf.mxu0
          %v1287 = vpop.f32.mrf.mxu0
          %v1288 = vadd.f32 %v951, %v1287
          %v1289 = vpop.f32.mrf.mxu0
          %1290 = vmatprep.mubr.bf16.mxu0 0
          %1291 = vmatmul.mubr.bf16.gmra.mxu0 %v1048
          %v1292 = vpop.f32.mrf.mxu0
          %v1293 = vadd.f32 %v951, %v1292
          %v1294 = vpop.f32.mrf.mxu0
          %v1295 = vpop.f32.mrf.mxu0
          %v1296 = vadd.f32 %v951, %v1295
          %v1297 = vpop.f32.mrf.mxu0
          %1298 = vmatprep.mubr.bf16.mxu0 0
          %1299 = vmatmul.mubr.bf16.gmra.mxu0 %v1051
          %v1300 = vpop.f32.mrf.mxu0
          %v1301 = vadd.f32 %v951, %v1300
          %v1302 = vpop.f32.mrf.mxu0
          %v1303 = vpop.f32.mrf.mxu0
          %v1304 = vadd.f32 %v951, %v1303
          %v1305 = vpop.f32.mrf.mxu0
          %1306 = vmatprep.mubr.bf16.mxu0 0
          %1307 = vmatmul.mubr.bf16.gmra.mxu0 %v1054
          %v1308 = vpop.f32.mrf.mxu0
          %v1309 = vadd.f32 %v951, %v1308
          %v1310 = vpop.f32.mrf.mxu0
          %v1311 = vpop.f32.mrf.mxu0
          %v1312 = vadd.f32 %v951, %v1311
          %v1313 = vpop.f32.mrf.mxu0
          %1314 = vmatprep.mubr.bf16.mxu0 0
          %1315 = vmatmul.mubr.bf16.gmra.mxu0 %v1057
          %v1316 = vpop.f32.mrf.mxu0
          %v1317 = vadd.f32 %v951, %v1316
          %v1318 = vpop.f32.mrf.mxu0
          %v1319 = vpop.f32.mrf.mxu0
          %v1320 = vadd.f32 %v951, %v1319
          %v1321 = vpop.f32.mrf.mxu0
          %1322 = vmatprep.mubr.bf16.mxu0 0
          %1323 = vmatmul.mubr.bf16.gmra.mxu0 %v1060
          %v1324 = vpop.f32.mrf.mxu0
          %v1325 = vadd.f32 %v951, %v1324
          %v1326 = vpop.f32.mrf.mxu0
          %v1327 = vpop.f32.mrf.mxu0
          %v1328 = vadd.f32 %v951, %v1327
          %v1329 = vpop.f32.mrf.mxu0
          %1330 = vmatprep.mubr.bf16.mxu0 0
          %1331 = vmatmul.mubr.bf16.gmra.mxu0 %v1063
          %v1332 = vpop.f32.mrf.mxu0
          %v1333 = vadd.f32 %v951, %v1332
          %v1334 = vpop.f32.mrf.mxu0
          %v1335 = vpop.f32.mrf.mxu0
          %v1336 = vadd.f32 %v951, %v1335
          %v1337 = vpop.f32.mrf.mxu0
          %1338 = vmatprep.mubr.bf16.mxu0 0
          %1339 = vmatmul.mubr.bf16.gmra.mxu0 %v1066
          %v1340 = vpop.f32.mrf.mxu0
          %v1341 = vadd.f32 %v951, %v1340
          %v1342 = vpop.f32.mrf.mxu0
          %v1343 = vpop.f32.mrf.mxu0
          %v1344 = vadd.f32 %v951, %v1343
          %v1345 = vpop.f32.mrf.mxu0
          %1346 = vmatprep.mubr.bf16.mxu0 0
          %1347 = vmatmul.mubr.bf16.gmra.mxu0 %v1069
          %v1348 = vpop.f32.mrf.mxu0
          %v1349 = vadd.f32 %v951, %v1348
          %v1350 = vpop.f32.mrf.mxu0
          %v1351 = vpop.f32.mrf.mxu0
          %v1352 = vadd.f32 %v951, %v1351
          %v1353 = vpop.f32.mrf.mxu0
          %1354 = vmatprep.mubr.bf16.mxu0 0
          %1355 = vmatmul.mubr.bf16.gmra.mxu0 %v1072
          %v1356 = vpop.f32.mrf.mxu0
          %v1357 = vadd.f32 %v951, %v1356
          %v1358 = vpop.f32.mrf.mxu0
          %v1359 = vpop.f32.mrf.mxu0
          %v1360 = vadd.f32 %v951, %v1359
          %v1361 = vpop.f32.mrf.mxu0
          %1362 = vdwg.mxu0
          %v1363 = vpack.c.bf16 %v1112, %v1109
          %v1364 = vpack.c.bf16 %v1120, %v1117
          %v1365 = vpack.c.bf16 %v1128, %v1125
          %v1366 = vpack.c.bf16 %v1136, %v1133
          %v1367 = vpack.c.bf16 %v1144, %v1141
          %v1368 = vpack.c.bf16 %v1152, %v1149
          %v1369 = vpack.c.bf16 %v1160, %v1157
          %v1370 = vpack.c.bf16 %v1168, %v1165
          %v1371 = vpack.c.bf16 %v1176, %v1173
          %v1372 = vpack.c.bf16 %v1184, %v1181
          %v1373 = vpack.c.bf16 %v1192, %v1189
          %v1374 = vpack.c.bf16 %v1200, %v1197
          %v1375 = vpack.c.bf16 %v1208, %v1205
          %v1376 = vpack.c.bf16 %v1216, %v1213
          %v1377 = vpack.c.bf16 %v1224, %v1221
          %v1378 = vpack.c.bf16 %v1232, %v1229
          %v1379 = vpack.c.bf16 %v1240, %v1237
          %v1380 = vpack.c.bf16 %v1248, %v1245
          %v1381 = vpack.c.bf16 %v1256, %v1253
          %v1382 = vpack.c.bf16 %v1264, %v1261
          %v1383 = vpack.c.bf16 %v1272, %v1269
          %v1384 = vpack.c.bf16 %v1280, %v1277
          %v1385 = vpack.c.bf16 %v1288, %v1285
          %v1386 = vpack.c.bf16 %v1296, %v1293
          %v1387 = vpack.c.bf16 %v1304, %v1301
          %v1388 = vpack.c.bf16 %v1312, %v1309
          %v1389 = vpack.c.bf16 %v1320, %v1317
          %v1390 = vpack.c.bf16 %v1328, %v1325
          %v1391 = vpack.c.bf16 %v1336, %v1333
          %v1392 = vpack.c.bf16 %v1344, %v1341
          %v1393 = vpack.c.bf16 %v1352, %v1349
          %v1394 = vpack.c.bf16 %v1360, %v1357
          %v1427 = vunpack.c.l.b16 %v1363
          %v1428 = vunpack.c.h.b16 %v1363
          %v1429 = vunpack.c.l.b16 %v1364
          %v1430 = vunpack.c.h.b16 %v1364
          %v1431 = vunpack.c.l.b16 %v1365
          %v1432 = vunpack.c.h.b16 %v1365
          %v1433 = vunpack.c.l.b16 %v1366
          %v1434 = vunpack.c.h.b16 %v1366
          %v1435 = vunpack.c.l.b16 %v1367
          %v1436 = vunpack.c.h.b16 %v1367
          %v1437 = vunpack.c.l.b16 %v1368
          %v1438 = vunpack.c.h.b16 %v1368
          %v1439 = vunpack.c.l.b16 %v1369
          %v1440 = vunpack.c.h.b16 %v1369
          %v1441 = vunpack.c.l.b16 %v1370
          %v1442 = vunpack.c.h.b16 %v1370
          %v1443 = vunpack.c.l.b16 %v1371
          %v1444 = vunpack.c.h.b16 %v1371
          %v1445 = vunpack.c.l.b16 %v1372
          %v1446 = vunpack.c.h.b16 %v1372
          %v1447 = vunpack.c.l.b16 %v1373
          %v1448 = vunpack.c.h.b16 %v1373
          %v1449 = vunpack.c.l.b16 %v1374
          %v1450 = vunpack.c.h.b16 %v1374
          %v1451 = vunpack.c.l.b16 %v1375
          %v1452 = vunpack.c.h.b16 %v1375
          %v1453 = vunpack.c.l.b16 %v1376
          %v1454 = vunpack.c.h.b16 %v1376
          %v1455 = vunpack.c.l.b16 %v1377
          %v1456 = vunpack.c.h.b16 %v1377
          %v1457 = vunpack.c.l.b16 %v1378
          %v1458 = vunpack.c.h.b16 %v1378
          %v1459 = vunpack.c.l.b16 %v1379
          %v1460 = vunpack.c.h.b16 %v1379
          %v1461 = vunpack.c.l.b16 %v1380
          %v1462 = vunpack.c.h.b16 %v1380
          %v1463 = vunpack.c.l.b16 %v1381
          %v1464 = vunpack.c.h.b16 %v1381
          %v1465 = vunpack.c.l.b16 %v1382
          %v1466 = vunpack.c.h.b16 %v1382
          %v1467 = vunpack.c.l.b16 %v1383
          %v1468 = vunpack.c.h.b16 %v1383
          %v1469 = vunpack.c.l.b16 %v1384
          %v1470 = vunpack.c.h.b16 %v1384
          %v1471 = vunpack.c.l.b16 %v1385
          %v1472 = vunpack.c.h.b16 %v1385
          %v1473 = vunpack.c.l.b16 %v1386
          %v1474 = vunpack.c.h.b16 %v1386
          %v1475 = vunpack.c.l.b16 %v1387
          %v1476 = vunpack.c.h.b16 %v1387
          %v1477 = vunpack.c.l.b16 %v1388
          %v1478 = vunpack.c.h.b16 %v1388
          %v1479 = vunpack.c.l.b16 %v1389
          %v1480 = vunpack.c.h.b16 %v1389
          %v1481 = vunpack.c.l.b16 %v1390
          %v1482 = vunpack.c.h.b16 %v1390
          %v1483 = vunpack.c.l.b16 %v1391
          %v1484 = vunpack.c.h.b16 %v1391
          %v1485 = vunpack.c.l.b16 %v1392
          %v1486 = vunpack.c.h.b16 %v1392
          %v1487 = vunpack.c.l.b16 %v1393
          %v1488 = vunpack.c.h.b16 %v1393
          %v1489 = vunpack.c.l.b16 %v1394
          %v1490 = vunpack.c.h.b16 %v1394
          %v1491 = vpack.c.b16 %v1427, %v1427
          %v1492 = vpack.c.b16 %v1428, %v1428
          %v1493 = vpack.c.b16 %v1429, %v1429
          %v1494 = vpack.c.b16 %v1430, %v1430
          %v1495 = vpack.c.b16 %v1431, %v1431
          %v1496 = vpack.c.b16 %v1432, %v1432
          %v1497 = vpack.c.b16 %v1433, %v1433
          %v1498 = vpack.c.b16 %v1434, %v1434
          %v1499 = vpack.c.b16 %v1435, %v1435
          %v1500 = vpack.c.b16 %v1436, %v1436
          %v1501 = vpack.c.b16 %v1437, %v1437
          %v1502 = vpack.c.b16 %v1438, %v1438
          %v1503 = vpack.c.b16 %v1439, %v1439
          %v1504 = vpack.c.b16 %v1440, %v1440
          %v1505 = vpack.c.b16 %v1441, %v1441
          %v1506 = vpack.c.b16 %v1442, %v1442
          %v1507 = vpack.c.b16 %v1443, %v1443
          %v1508 = vpack.c.b16 %v1444, %v1444
          %v1509 = vpack.c.b16 %v1445, %v1445
          %v1510 = vpack.c.b16 %v1446, %v1446
          %v1511 = vpack.c.b16 %v1447, %v1447
          %v1512 = vpack.c.b16 %v1448, %v1448
          %v1513 = vpack.c.b16 %v1449, %v1449
          %v1514 = vpack.c.b16 %v1450, %v1450
          %v1515 = vpack.c.b16 %v1451, %v1451
          %v1516 = vpack.c.b16 %v1452, %v1452
          %v1517 = vpack.c.b16 %v1453, %v1453
          %v1518 = vpack.c.b16 %v1454, %v1454
          %v1519 = vpack.c.b16 %v1455, %v1455
          %v1520 = vpack.c.b16 %v1456, %v1456
          %v1521 = vpack.c.b16 %v1457, %v1457
          %v1522 = vpack.c.b16 %v1458, %v1458
          %v1523 = vpack.c.b16 %v1459, %v1459
          %v1524 = vpack.c.b16 %v1460, %v1460
          %v1525 = vpack.c.b16 %v1461, %v1461
          %v1526 = vpack.c.b16 %v1462, %v1462
          %v1527 = vpack.c.b16 %v1463, %v1463
          %v1528 = vpack.c.b16 %v1464, %v1464
          %v1529 = vpack.c.b16 %v1465, %v1465
          %v1530 = vpack.c.b16 %v1466, %v1466
          %v1531 = vpack.c.b16 %v1467, %v1467
          %v1532 = vpack.c.b16 %v1468, %v1468
          %v1533 = vpack.c.b16 %v1469, %v1469
          %v1534 = vpack.c.b16 %v1470, %v1470
          %v1535 = vpack.c.b16 %v1471, %v1471
          %v1536 = vpack.c.b16 %v1472, %v1472
          %v1537 = vpack.c.b16 %v1473, %v1473
          %v1538 = vpack.c.b16 %v1474, %v1474
          %v1539 = vpack.c.b16 %v1475, %v1475
          %v1540 = vpack.c.b16 %v1476, %v1476
          %v1541 = vpack.c.b16 %v1477, %v1477
          %v1542 = vpack.c.b16 %v1478, %v1478
          %v1543 = vpack.c.b16 %v1479, %v1479
          %v1544 = vpack.c.b16 %v1480, %v1480
          %v1545 = vpack.c.b16 %v1481, %v1481
          %v1546 = vpack.c.b16 %v1482, %v1482
          %v1547 = vpack.c.b16 %v1483, %v1483
          %v1548 = vpack.c.b16 %v1484, %v1484
          %v1549 = vpack.c.b16 %v1485, %v1485
          %v1550 = vpack.c.b16 %v1486, %v1486
          %v1551 = vpack.c.b16 %v1487, %v1487
          %v1552 = vpack.c.b16 %v1488, %v1488
          %v1553 = vpack.c.b16 %v1489, %v1489
          %v1554 = vpack.c.b16 %v1490, %v1490
          %s1619 = smul.addr %s205, 4
          %s1620 = scalar_lea.vmem [#allocation3], %s1619
          %1621 = vst [vmem:[%s1620] sm:$0xf] %v1491
          %1622 = vst [vmem:[%s1620 + $0x4] sm:$0xf] %v1492
          %1623 = vst [vmem:[%s1620 + $0x8] sm:$0xf] %v1493
          %1624 = vst [vmem:[%s1620 + $0xc] sm:$0xf] %v1494
          %1625 = vst [vmem:[%s1620 + $0x10] sm:$0xf] %v1495
          %1626 = vst [vmem:[%s1620 + $0x14] sm:$0xf] %v1496
          %1627 = vst [vmem:[%s1620 + $0x18] sm:$0xf] %v1497
          %1628 = vst [vmem:[%s1620 + $0x1c] sm:$0xf] %v1498
          %1629 = vst [vmem:[%s1620 + $0x20] sm:$0xf] %v1499
          %1630 = vst [vmem:[%s1620 + $0x24] sm:$0xf] %v1500
          %1631 = vst [vmem:[%s1620 + $0x28] sm:$0xf] %v1501
          %1632 = vst [vmem:[%s1620 + $0x2c] sm:$0xf] %v1502
          %1633 = vst [vmem:[%s1620 + $0x30] sm:$0xf] %v1503
          %1634 = vst [vmem:[%s1620 + $0x34] sm:$0xf] %v1504
          %1635 = vst [vmem:[%s1620 + $0x38] sm:$0xf] %v1505
          %1636 = vst [vmem:[%s1620 + $0x3c] sm:$0xf] %v1506
          %1637 = vst [vmem:[%s1620 + $0x40] sm:$0xf] %v1507
          %1638 = vst [vmem:[%s1620 + $0x44] sm:$0xf] %v1508
          %1639 = vst [vmem:[%s1620 + $0x48] sm:$0xf] %v1509
          %1640 = vst [vmem:[%s1620 + $0x4c] sm:$0xf] %v1510
          %1641 = vst [vmem:[%s1620 + $0x50] sm:$0xf] %v1511
          %1642 = vst [vmem:[%s1620 + $0x54] sm:$0xf] %v1512
          %1643 = vst [vmem:[%s1620 + $0x58] sm:$0xf] %v1513
          %1644 = vst [vmem:[%s1620 + $0x5c] sm:$0xf] %v1514
          %1645 = vst [vmem:[%s1620 + $0x60] sm:$0xf] %v1515
          %1646 = vst [vmem:[%s1620 + $0x64] sm:$0xf] %v1516
          %1647 = vst [vmem:[%s1620 + $0x68] sm:$0xf] %v1517
          %1648 = vst [vmem:[%s1620 + $0x6c] sm:$0xf] %v1518
          %1649 = vst [vmem:[%s1620 + $0x70] sm:$0xf] %v1519
          %1650 = vst [vmem:[%s1620 + $0x74] sm:$0xf] %v1520
          %1651 = vst [vmem:[%s1620 + $0x78] sm:$0xf] %v1521
          %1652 = vst [vmem:[%s1620 + $0x7c] sm:$0xf] %v1522
          %1653 = vst [vmem:[%s1620 + $0x80] sm:$0xf] %v1523
          %1654 = vst [vmem:[%s1620 + $0x84] sm:$0xf] %v1524
          %1655 = vst [vmem:[%s1620 + $0x88] sm:$0xf] %v1525
          %1656 = vst [vmem:[%s1620 + $0x8c] sm:$0xf] %v1526
          %1657 = vst [vmem:[%s1620 + $0x90] sm:$0xf] %v1527
          %1658 = vst [vmem:[%s1620 + $0x94] sm:$0xf] %v1528
          %1659 = vst [vmem:[%s1620 + $0x98] sm:$0xf] %v1529
          %1660 = vst [vmem:[%s1620 + $0x9c] sm:$0xf] %v1530
          %1661 = vst [vmem:[%s1620 + $0xa0] sm:$0xf] %v1531
          %1662 = vst [vmem:[%s1620 + $0xa4] sm:$0xf] %v1532
          %1663 = vst [vmem:[%s1620 + $0xa8] sm:$0xf] %v1533
          %1664 = vst [vmem:[%s1620 + $0xac] sm:$0xf] %v1534
          %1665 = vst [vmem:[%s1620 + $0xb0] sm:$0xf] %v1535
          %1666 = vst [vmem:[%s1620 + $0xb4] sm:$0xf] %v1536
          %1667 = vst [vmem:[%s1620 + $0xb8] sm:$0xf] %v1537
          %1668 = vst [vmem:[%s1620 + $0xbc] sm:$0xf] %v1538
          %1669 = vst [vmem:[%s1620 + $0xc0] sm:$0xf] %v1539
          %1670 = vst [vmem:[%s1620 + $0xc4] sm:$0xf] %v1540
          %1671 = vst [vmem:[%s1620 + $0xc8] sm:$0xf] %v1541
          %1672 = vst [vmem:[%s1620 + $0xcc] sm:$0xf] %v1542
          %1673 = vst [vmem:[%s1620 + $0xd0] sm:$0xf] %v1543
          %1674 = vst [vmem:[%s1620 + $0xd4] sm:$0xf] %v1544
          %1675 = vst [vmem:[%s1620 + $0xd8] sm:$0xf] %v1545
          %1676 = vst [vmem:[%s1620 + $0xdc] sm:$0xf] %v1546
          %1677 = vst [vmem:[%s1620 + $0xe0] sm:$0xf] %v1547
          %1678 = vst [vmem:[%s1620 + $0xe4] sm:$0xf] %v1548
          %1679 = vst [vmem:[%s1620 + $0xe8] sm:$0xf] %v1549
          %1680 = vst [vmem:[%s1620 + $0xec] sm:$0xf] %v1550
          %1681 = vst [vmem:[%s1620 + $0xf0] sm:$0xf] %v1551
          %1682 = vst [vmem:[%s1620 + $0xf4] sm:$0xf] %v1552
          %1683 = vst [vmem:[%s1620 + $0xf8] sm:$0xf] %v1553
          %1684 = vst [vmem:[%s1620 + $0xfc] sm:$0xf] %v1554
          %s1685 = sld [smem:[#allocation7]]
          %v1686 = vstv %s1685
          %v1687 = vmul.f32 %v1686, %v1109
          %v1688 = vmul.f32 %v1686, %v1112
          %v1689 = vmul.f32 %v1686, %v1117
          %v1690 = vmul.f32 %v1686, %v1120
          %v1691 = vmul.f32 %v1686, %v1125
          %v1692 = vmul.f32 %v1686, %v1128
          %v1693 = vmul.f32 %v1686, %v1133
          %v1694 = vmul.f32 %v1686, %v1136
          %v1695 = vmul.f32 %v1686, %v1141
          %v1696 = vmul.f32 %v1686, %v1144
          %v1697 = vmul.f32 %v1686, %v1149
          %v1698 = vmul.f32 %v1686, %v1152
          %v1699 = vmul.f32 %v1686, %v1157
          %v1700 = vmul.f32 %v1686, %v1160
          %v1701 = vmul.f32 %v1686, %v1165
          %v1702 = vmul.f32 %v1686, %v1168
          %v1703 = vmul.f32 %v1686, %v1173
          %v1704 = vmul.f32 %v1686, %v1176
          %v1705 = vmul.f32 %v1686, %v1181
          %v1706 = vmul.f32 %v1686, %v1184
          %v1707 = vmul.f32 %v1686, %v1189
          %v1708 = vmul.f32 %v1686, %v1192
          %v1709 = vmul.f32 %v1686, %v1197
          %v1710 = vmul.f32 %v1686, %v1200
          %v1711 = vmul.f32 %v1686, %v1205
          %v1712 = vmul.f32 %v1686, %v1208
          %v1713 = vmul.f32 %v1686, %v1213
          %v1714 = vmul.f32 %v1686, %v1216
          %v1715 = vmul.f32 %v1686, %v1221
          %v1716 = vmul.f32 %v1686, %v1224
          %v1717 = vmul.f32 %v1686, %v1229
          %v1718 = vmul.f32 %v1686, %v1232
          %v1719 = vmul.f32 %v1686, %v1237
          %v1720 = vmul.f32 %v1686, %v1240
          %v1721 = vmul.f32 %v1686, %v1245
          %v1722 = vmul.f32 %v1686, %v1248
          %v1723 = vmul.f32 %v1686, %v1253
          %v1724 = vmul.f32 %v1686, %v1256
          %v1725 = vmul.f32 %v1686, %v1261
          %v1726 = vmul.f32 %v1686, %v1264
          %v1727 = vmul.f32 %v1686, %v1269
          %v1728 = vmul.f32 %v1686, %v1272
          %v1729 = vmul.f32 %v1686, %v1277
          %v1730 = vmul.f32 %v1686, %v1280
          %v1731 = vmul.f32 %v1686, %v1285
          %v1732 = vmul.f32 %v1686, %v1288
          %v1733 = vmul.f32 %v1686, %v1293
          %v1734 = vmul.f32 %v1686, %v1296
          %v1735 = vmul.f32 %v1686, %v1301
          %v1736 = vmul.f32 %v1686, %v1304
          %v1737 = vmul.f32 %v1686, %v1309
          %v1738 = vmul.f32 %v1686, %v1312
          %v1739 = vmul.f32 %v1686, %v1317
          %v1740 = vmul.f32 %v1686, %v1320
          %v1741 = vmul.f32 %v1686, %v1325
          %v1742 = vmul.f32 %v1686, %v1328
          %v1743 = vmul.f32 %v1686, %v1333
          %v1744 = vmul.f32 %v1686, %v1336
          %v1745 = vmul.f32 %v1686, %v1341
          %v1746 = vmul.f32 %v1686, %v1344
          %v1747 = vmul.f32 %v1686, %v1349
          %v1748 = vmul.f32 %v1686, %v1352
          %v1749 = vmul.f32 %v1686, %v1357
          %v1750 = vmul.f32 %v1686, %v1360
          %s1751 = scalar_lea.vmem [#allocation4], %s173
          %1752 = vst [vmem:[%s1751] sm:$0xff] %v1687
          %1753 = vst [vmem:[%s1751 + $0x8] sm:$0xff] %v1688
          %1754 = vst [vmem:[%s1751 + $0x10] sm:$0xff] %v1689
          %1755 = vst [vmem:[%s1751 + $0x18] sm:$0xff] %v1690
          %1756 = vst [vmem:[%s1751 + $0x20] sm:$0xff] %v1691
          %1757 = vst [vmem:[%s1751 + $0x28] sm:$0xff] %v1692
          %1758 = vst [vmem:[%s1751 + $0x30] sm:$0xff] %v1693
          %1759 = vst [vmem:[%s1751 + $0x38] sm:$0xff] %v1694
          %1760 = vst [vmem:[%s1751 + $0x40] sm:$0xff] %v1695
          %1761 = vst [vmem:[%s1751 + $0x48] sm:$0xff] %v1696
          %1762 = vst [vmem:[%s1751 + $0x50] sm:$0xff] %v1697
          %1763 = vst [vmem:[%s1751 + $0x58] sm:$0xff] %v1698
          %1764 = vst [vmem:[%s1751 + $0x60] sm:$0xff] %v1699
          %1765 = vst [vmem:[%s1751 + $0x68] sm:$0xff] %v1700
          %1766 = vst [vmem:[%s1751 + $0x70] sm:$0xff] %v1701
          %1767 = vst [vmem:[%s1751 + $0x78] sm:$0xff] %v1702
          %1768 = vst [vmem:[%s1751 + $0x80] sm:$0xff] %v1703
          %1769 = vst [vmem:[%s1751 + $0x88] sm:$0xff] %v1704
          %1770 = vst [vmem:[%s1751 + $0x90] sm:$0xff] %v1705
          %1771 = vst [vmem:[%s1751 + $0x98] sm:$0xff] %v1706
          %1772 = vst [vmem:[%s1751 + $0xa0] sm:$0xff] %v1707
          %1773 = vst [vmem:[%s1751 + $0xa8] sm:$0xff] %v1708
          %1774 = vst [vmem:[%s1751 + $0xb0] sm:$0xff] %v1709
          %1775 = vst [vmem:[%s1751 + $0xb8] sm:$0xff] %v1710
          %1776 = vst [vmem:[%s1751 + $0xc0] sm:$0xff] %v1711
          %1777 = vst [vmem:[%s1751 + $0xc8] sm:$0xff] %v1712
          %1778 = vst [vmem:[%s1751 + $0xd0] sm:$0xff] %v1713
          %1779 = vst [vmem:[%s1751 + $0xd8] sm:$0xff] %v1714
          %1780 = vst [vmem:[%s1751 + $0xe0] sm:$0xff] %v1715
          %1781 = vst [vmem:[%s1751 + $0xe8] sm:$0xff] %v1716
          %1782 = vst [vmem:[%s1751 + $0xf0] sm:$0xff] %v1717
          %1783 = vst [vmem:[%s1751 + $0xf8] sm:$0xff] %v1718
          %1784 = vst [vmem:[%s1751 + $0x100] sm:$0xff] %v1719
          %1785 = vst [vmem:[%s1751 + $0x108] sm:$0xff] %v1720
          %1786 = vst [vmem:[%s1751 + $0x110] sm:$0xff] %v1721
          %1787 = vst [vmem:[%s1751 + $0x118] sm:$0xff] %v1722
          %1788 = vst [vmem:[%s1751 + $0x120] sm:$0xff] %v1723
          %1789 = vst [vmem:[%s1751 + $0x128] sm:$0xff] %v1724
          %1790 = vst [vmem:[%s1751 + $0x130] sm:$0xff] %v1725
          %1791 = vst [vmem:[%s1751 + $0x138] sm:$0xff] %v1726
          %1792 = vst [vmem:[%s1751 + $0x140] sm:$0xff] %v1727
          %1793 = vst [vmem:[%s1751 + $0x148] sm:$0xff] %v1728
          %1794 = vst [vmem:[%s1751 + $0x150] sm:$0xff] %v1729
          %1795 = vst [vmem:[%s1751 + $0x158] sm:$0xff] %v1730
          %1796 = vst [vmem:[%s1751 + $0x160] sm:$0xff] %v1731
          %1797 = vst [vmem:[%s1751 + $0x168] sm:$0xff] %v1732
          %1798 = vst [vmem:[%s1751 + $0x170] sm:$0xff] %v1733
          %1799 = vst [vmem:[%s1751 + $0x178] sm:$0xff] %v1734
          %1800 = vst [vmem:[%s1751 + $0x180] sm:$0xff] %v1735
          %1801 = vst [vmem:[%s1751 + $0x188] sm:$0xff] %v1736
          %1802 = vst [vmem:[%s1751 + $0x190] sm:$0xff] %v1737
          %1803 = vst [vmem:[%s1751 + $0x198] sm:$0xff] %v1738
          %1804 = vst [vmem:[%s1751 + $0x1a0] sm:$0xff] %v1739
          %1805 = vst [vmem:[%s1751 + $0x1a8] sm:$0xff] %v1740
          %1806 = vst [vmem:[%s1751 + $0x1b0] sm:$0xff] %v1741
          %1807 = vst [vmem:[%s1751 + $0x1b8] sm:$0xff] %v1742
          %1808 = vst [vmem:[%s1751 + $0x1c0] sm:$0xff] %v1743
          %1809 = vst [vmem:[%s1751 + $0x1c8] sm:$0xff] %v1744
          %1810 = vst [vmem:[%s1751 + $0x1d0] sm:$0xff] %v1745
          %1811 = vst [vmem:[%s1751 + $0x1d8] sm:$0xff] %v1746
          %1812 = vst [vmem:[%s1751 + $0x1e0] sm:$0xff] %v1747
          %1813 = vst [vmem:[%s1751 + $0x1e8] sm:$0xff] %v1748
          %1814 = vst [vmem:[%s1751 + $0x1f0] sm:$0xff] %v1749
          %1815 = vst [vmem:[%s1751 + $0x1f8] sm:$0xff] %v1750
        $region52: #{tpu_custom_call.1} parent=43 // pred_fallthru
          _
        %p1816 = scmp.gt.s32.totalorder %s22, 0
        // Predicated region
        $region61: #{tpu_custom_call.1} parent=43 // pred_check
          %p1817 = pneg %p1816
        $region62: #{tpu_custom_call.1} parent=43 // pred_check_branch
          %1819 = sbr.rel (%p1817) target = $region64
        $region63: #{tpu_custom_call.1} parent=43 // pred_region
          %p1820 = scmp.eq.s32.totalorder %s22, 1
          %p1821 = scmp.eq.s32.totalorder %s23, 0
          %p1822 = pnand %p1820, %p1821
          %p1823 = pneg %p1822
          // Predicated region
          $region65: #{tpu_custom_call.1} parent=63 // pred_check
            _
          $region66: #{tpu_custom_call.1} parent=63 // pred_check_branch
            %1825 = sbr.rel (%p1822) target = $region68
          $region67: #{tpu_custom_call.1} parent=63 // pred_region
            %s1826 = smul.u32 4, 64
            %s1827 = smul.u32 %s1826, 4
            %s1828 = sshll.u32 %s1827, 4
            %1829 = dma.done [#allocation6], %s1828
          $region68: #{tpu_custom_call.1} parent=63 // pred_fallthru
            _
          %s1830 = ssub.s32 1, %s185
          %s1831 = sshra.s32 %s173, 3
          %s1832 = sand.u32 %s173, 7
          %s1833 = smul.u32 %s1831, 4
          %s1834 = smul.addr %s1833, 4
          %s1835 = scalar_lea.vmem [#allocation2], %s1834
          %v1836 = vld [vmem:[%s1835] sm:$0xff]
          %v1837 = vld [vmem:[%s1835 + $0x8] sm:$0xff]
          %v1838 = vld [vmem:[%s1835 + $0x10] sm:$0xff]
          %v1839 = vld [vmem:[%s1835 + $0x18] sm:$0xff]
          %v1840 = vld [vmem:[%s1835 + $0x20] sm:$0xff]
          %v1841 = vld [vmem:[%s1835 + $0x28] sm:$0xff]
          %v1842 = vld [vmem:[%s1835 + $0x30] sm:$0xff]
          %v1843 = vld [vmem:[%s1835 + $0x38] sm:$0xff]
          %v1844 = vld [vmem:[%s1835 + $0x40] sm:$0xff]
          %v1845 = vld [vmem:[%s1835 + $0x48] sm:$0xff]
          %v1846 = vld [vmem:[%s1835 + $0x50] sm:$0xff]
          %v1847 = vld [vmem:[%s1835 + $0x58] sm:$0xff]
          %v1848 = vld [vmem:[%s1835 + $0x60] sm:$0xff]
          %v1849 = vld [vmem:[%s1835 + $0x68] sm:$0xff]
          %v1850 = vld [vmem:[%s1835 + $0x70] sm:$0xff]
          %v1851 = vld [vmem:[%s1835 + $0x78] sm:$0xff]
          %v1852 = vld [vmem:[%s1835 + $0x80] sm:$0xff]
          %v1853 = vld [vmem:[%s1835 + $0x88] sm:$0xff]
          %v1854 = vld [vmem:[%s1835 + $0x90] sm:$0xff]
          %v1855 = vld [vmem:[%s1835 + $0x98] sm:$0xff]
          %v1856 = vld [vmem:[%s1835 + $0xa0] sm:$0xff]
          %v1857 = vld [vmem:[%s1835 + $0xa8] sm:$0xff]
          %v1858 = vld [vmem:[%s1835 + $0xb0] sm:$0xff]
          %v1859 = vld [vmem:[%s1835 + $0xb8] sm:$0xff]
          %v1860 = vld [vmem:[%s1835 + $0xc0] sm:$0xff]
          %v1861 = vld [vmem:[%s1835 + $0xc8] sm:$0xff]
          %v1862 = vld [vmem:[%s1835 + $0xd0] sm:$0xff]
          %v1863 = vld [vmem:[%s1835 + $0xd8] sm:$0xff]
          %v1864 = vld [vmem:[%s1835 + $0xe0] sm:$0xff]
          %v1865 = vld [vmem:[%s1835 + $0xe8] sm:$0xff]
          %v1866 = vld [vmem:[%s1835 + $0xf0] sm:$0xff]
          %v1867 = vld [vmem:[%s1835 + $0xf8] sm:$0xff]
          %v1868 = vld [vmem:[%s1835 + $0x100] sm:$0xff]
          %v1869 = vld [vmem:[%s1835 + $0x108] sm:$0xff]
          %v1870 = vld [vmem:[%s1835 + $0x110] sm:$0xff]
          %v1871 = vld [vmem:[%s1835 + $0x118] sm:$0xff]
          %v1872 = vld [vmem:[%s1835 + $0x120] sm:$0xff]
          %v1873 = vld [vmem:[%s1835 + $0x128] sm:$0xff]
          %v1874 = vld [vmem:[%s1835 + $0x130] sm:$0xff]
          %v1875 = vld [vmem:[%s1835 + $0x138] sm:$0xff]
          %v1876 = vld [vmem:[%s1835 + $0x140] sm:$0xff]
          %v1877 = vld [vmem:[%s1835 + $0x148] sm:$0xff]
          %v1878 = vld [vmem:[%s1835 + $0x150] sm:$0xff]
          %v1879 = vld [vmem:[%s1835 + $0x158] sm:$0xff]
          %v1880 = vld [vmem:[%s1835 + $0x160] sm:$0xff]
          %v1881 = vld [vmem:[%s1835 + $0x168] sm:$0xff]
          %v1882 = vld [vmem:[%s1835 + $0x170] sm:$0xff]
          %v1883 = vld [vmem:[%s1835 + $0x178] sm:$0xff]
          %v1884 = vld [vmem:[%s1835 + $0x180] sm:$0xff]
          %v1885 = vld [vmem:[%s1835 + $0x188] sm:$0xff]
          %v1886 = vld [vmem:[%s1835 + $0x190] sm:$0xff]
          %v1887 = vld [vmem:[%s1835 + $0x198] sm:$0xff]
          %v1888 = vld [vmem:[%s1835 + $0x1a0] sm:$0xff]
          %v1889 = vld [vmem:[%s1835 + $0x1a8] sm:$0xff]
          %v1890 = vld [vmem:[%s1835 + $0x1b0] sm:$0xff]
          %v1891 = vld [vmem:[%s1835 + $0x1b8] sm:$0xff]
          %v1892 = vld [vmem:[%s1835 + $0x1c0] sm:$0xff]
          %v1893 = vld [vmem:[%s1835 + $0x1c8] sm:$0xff]
          %v1894 = vld [vmem:[%s1835 + $0x1d0] sm:$0xff]
          %v1895 = vld [vmem:[%s1835 + $0x1d8] sm:$0xff]
          %v1896 = vld [vmem:[%s1835 + $0x1e0] sm:$0xff]
          %v1897 = vld [vmem:[%s1835 + $0x1e8] sm:$0xff]
          %v1898 = vld [vmem:[%s1835 + $0x1f0] sm:$0xff]
          %v1899 = vld [vmem:[%s1835 + $0x1f8] sm:$0xff]
          %v1900 = vld [vmem:[%s1835 + $0x200] sm:$0xff]
          %v1901 = vld [vmem:[%s1835 + $0x208] sm:$0xff]
          %v1902 = vld [vmem:[%s1835 + $0x210] sm:$0xff]
          %v1903 = vld [vmem:[%s1835 + $0x218] sm:$0xff]
          %v1904 = vld [vmem:[%s1835 + $0x220] sm:$0xff]
          %v1905 = vld [vmem:[%s1835 + $0x228] sm:$0xff]
          %v1906 = vld [vmem:[%s1835 + $0x230] sm:$0xff]
          %v1907 = vld [vmem:[%s1835 + $0x238] sm:$0xff]
          %v1908 = vld [vmem:[%s1835 + $0x240] sm:$0xff]
          %v1909 = vld [vmem:[%s1835 + $0x248] sm:$0xff]
          %v1910 = vld [vmem:[%s1835 + $0x250] sm:$0xff]
          %v1911 = vld [vmem:[%s1835 + $0x258] sm:$0xff]
          %v1912 = vld [vmem:[%s1835 + $0x260] sm:$0xff]
          %v1913 = vld [vmem:[%s1835 + $0x268] sm:$0xff]
          %v1914 = vld [vmem:[%s1835 + $0x270] sm:$0xff]
          %v1915 = vld [vmem:[%s1835 + $0x278] sm:$0xff]
          %v1916 = vld [vmem:[%s1835 + $0x280] sm:$0xff]
          %v1917 = vld [vmem:[%s1835 + $0x288] sm:$0xff]
          %v1918 = vld [vmem:[%s1835 + $0x290] sm:$0xff]
          %v1919 = vld [vmem:[%s1835 + $0x298] sm:$0xff]
          %v1920 = vld [vmem:[%s1835 + $0x2a0] sm:$0xff]
          %v1921 = vld [vmem:[%s1835 + $0x2a8] sm:$0xff]
          %v1922 = vld [vmem:[%s1835 + $0x2b0] sm:$0xff]
          %v1923 = vld [vmem:[%s1835 + $0x2b8] sm:$0xff]
          %v1924 = vld [vmem:[%s1835 + $0x2c0] sm:$0xff]
          %v1925 = vld [vmem:[%s1835 + $0x2c8] sm:$0xff]
          %v1926 = vld [vmem:[%s1835 + $0x2d0] sm:$0xff]
          %v1927 = vld [vmem:[%s1835 + $0x2d8] sm:$0xff]
          %v1928 = vld [vmem:[%s1835 + $0x2e0] sm:$0xff]
          %v1929 = vld [vmem:[%s1835 + $0x2e8] sm:$0xff]
          %v1930 = vld [vmem:[%s1835 + $0x2f0] sm:$0xff]
          %v1931 = vld [vmem:[%s1835 + $0x2f8] sm:$0xff]
          %v1932 = vld [vmem:[%s1835 + $0x300] sm:$0xff]
          %v1933 = vld [vmem:[%s1835 + $0x308] sm:$0xff]
          %v1934 = vld [vmem:[%s1835 + $0x310] sm:$0xff]
          %v1935 = vld [vmem:[%s1835 + $0x318] sm:$0xff]
          %v1936 = vld [vmem:[%s1835 + $0x320] sm:$0xff]
          %v1937 = vld [vmem:[%s1835 + $0x328] sm:$0xff]
          %v1938 = vld [vmem:[%s1835 + $0x330] sm:$0xff]
          %v1939 = vld [vmem:[%s1835 + $0x338] sm:$0xff]
          %v1940 = vld [vmem:[%s1835 + $0x340] sm:$0xff]
          %v1941 = vld [vmem:[%s1835 + $0x348] sm:$0xff]
          %v1942 = vld [vmem:[%s1835 + $0x350] sm:$0xff]
          %v1943 = vld [vmem:[%s1835 + $0x358] sm:$0xff]
          %v1944 = vld [vmem:[%s1835 + $0x360] sm:$0xff]
          %v1945 = vld [vmem:[%s1835 + $0x368] sm:$0xff]
          %v1946 = vld [vmem:[%s1835 + $0x370] sm:$0xff]
          %v1947 = vld [vmem:[%s1835 + $0x378] sm:$0xff]
          %v1948 = vld [vmem:[%s1835 + $0x380] sm:$0xff]
          %v1949 = vld [vmem:[%s1835 + $0x388] sm:$0xff]
          %v1950 = vld [vmem:[%s1835 + $0x390] sm:$0xff]
          %v1951 = vld [vmem:[%s1835 + $0x398] sm:$0xff]
          %v1952 = vld [vmem:[%s1835 + $0x3a0] sm:$0xff]
          %v1953 = vld [vmem:[%s1835 + $0x3a8] sm:$0xff]
          %v1954 = vld [vmem:[%s1835 + $0x3b0] sm:$0xff]
          %v1955 = vld [vmem:[%s1835 + $0x3b8] sm:$0xff]
          %v1956 = vld [vmem:[%s1835 + $0x3c0] sm:$0xff]
          %v1957 = vld [vmem:[%s1835 + $0x3c8] sm:$0xff]
          %v1958 = vld [vmem:[%s1835 + $0x3d0] sm:$0xff]
          %v1959 = vld [vmem:[%s1835 + $0x3d8] sm:$0xff]
          %v1960 = vld [vmem:[%s1835 + $0x3e0] sm:$0xff]
          %v1961 = vld [vmem:[%s1835 + $0x3e8] sm:$0xff]
          %v1962 = vld [vmem:[%s1835 + $0x3f0] sm:$0xff]
          %v1963 = vld [vmem:[%s1835 + $0x3f8] sm:$0xff]
          %s1964 = smul.u32 %s1830, 64
          %s1965 = smul.addr %s1964, 4
          %s1966 = scalar_lea.vmem [#allocation3], %s1965
          %v1967 = vld [vmem:[%s1966] sm:$0xf]
          %v1968 = vld [vmem:[%s1966 + $0x4] sm:$0xf]
          %v1969 = vld [vmem:[%s1966 + $0x8] sm:$0xf]
          %v1970 = vld [vmem:[%s1966 + $0xc] sm:$0xf]
          %v1971 = vld [vmem:[%s1966 + $0x10] sm:$0xf]
          %v1972 = vld [vmem:[%s1966 + $0x14] sm:$0xf]
          %v1973 = vld [vmem:[%s1966 + $0x18] sm:$0xf]
          %v1974 = vld [vmem:[%s1966 + $0x1c] sm:$0xf]
          %v1975 = vld [vmem:[%s1966 + $0x20] sm:$0xf]
          %v1976 = vld [vmem:[%s1966 + $0x24] sm:$0xf]
          %v1977 = vld [vmem:[%s1966 + $0x28] sm:$0xf]
          %v1978 = vld [vmem:[%s1966 + $0x2c] sm:$0xf]
          %v1979 = vld [vmem:[%s1966 + $0x30] sm:$0xf]
          %v1980 = vld [vmem:[%s1966 + $0x34] sm:$0xf]
          %v1981 = vld [vmem:[%s1966 + $0x38] sm:$0xf]
          %v1982 = vld [vmem:[%s1966 + $0x3c] sm:$0xf]
          %v1983 = vld [vmem:[%s1966 + $0x40] sm:$0xf]
          %v1984 = vld [vmem:[%s1966 + $0x44] sm:$0xf]
          %v1985 = vld [vmem:[%s1966 + $0x48] sm:$0xf]
          %v1986 = vld [vmem:[%s1966 + $0x4c] sm:$0xf]
          %v1987 = vld [vmem:[%s1966 + $0x50] sm:$0xf]
          %v1988 = vld [vmem:[%s1966 + $0x54] sm:$0xf]
          %v1989 = vld [vmem:[%s1966 + $0x58] sm:$0xf]
          %v1990 = vld [vmem:[%s1966 + $0x5c] sm:$0xf]
          %v1991 = vld [vmem:[%s1966 + $0x60] sm:$0xf]
          %v1992 = vld [vmem:[%s1966 + $0x64] sm:$0xf]
          %v1993 = vld [vmem:[%s1966 + $0x68] sm:$0xf]
          %v1994 = vld [vmem:[%s1966 + $0x6c] sm:$0xf]
          %v1995 = vld [vmem:[%s1966 + $0x70] sm:$0xf]
          %v1996 = vld [vmem:[%s1966 + $0x74] sm:$0xf]
          %v1997 = vld [vmem:[%s1966 + $0x78] sm:$0xf]
          %v1998 = vld [vmem:[%s1966 + $0x7c] sm:$0xf]
          %v1999 = vld [vmem:[%s1966 + $0x80] sm:$0xf]
          %v2000 = vld [vmem:[%s1966 + $0x84] sm:$0xf]
          %v2001 = vld [vmem:[%s1966 + $0x88] sm:$0xf]
          %v2002 = vld [vmem:[%s1966 + $0x8c] sm:$0xf]
          %v2003 = vld [vmem:[%s1966 + $0x90] sm:$0xf]
          %v2004 = vld [vmem:[%s1966 + $0x94] sm:$0xf]
          %v2005 = vld [vmem:[%s1966 + $0x98] sm:$0xf]
          %v2006 = vld [vmem:[%s1966 + $0x9c] sm:$0xf]
          %v2007 = vld [vmem:[%s1966 + $0xa0] sm:$0xf]
          %v2008 = vld [vmem:[%s1966 + $0xa4] sm:$0xf]
          %v2009 = vld [vmem:[%s1966 + $0xa8] sm:$0xf]
          %v2010 = vld [vmem:[%s1966 + $0xac] sm:$0xf]
          %v2011 = vld [vmem:[%s1966 + $0xb0] sm:$0xf]
          %v2012 = vld [vmem:[%s1966 + $0xb4] sm:$0xf]
          %v2013 = vld [vmem:[%s1966 + $0xb8] sm:$0xf]
          %v2014 = vld [vmem:[%s1966 + $0xbc] sm:$0xf]
          %v2015 = vld [vmem:[%s1966 + $0xc0] sm:$0xf]
          %v2016 = vld [vmem:[%s1966 + $0xc4] sm:$0xf]
          %v2017 = vld [vmem:[%s1966 + $0xc8] sm:$0xf]
          %v2018 = vld [vmem:[%s1966 + $0xcc] sm:$0xf]
          %v2019 = vld [vmem:[%s1966 + $0xd0] sm:$0xf]
          %v2020 = vld [vmem:[%s1966 + $0xd4] sm:$0xf]
          %v2021 = vld [vmem:[%s1966 + $0xd8] sm:$0xf]
          %v2022 = vld [vmem:[%s1966 + $0xdc] sm:$0xf]
          %v2023 = vld [vmem:[%s1966 + $0xe0] sm:$0xf]
          %v2024 = vld [vmem:[%s1966 + $0xe4] sm:$0xf]
          %v2025 = vld [vmem:[%s1966 + $0xe8] sm:$0xf]
          %v2026 = vld [vmem:[%s1966 + $0xec] sm:$0xf]
          %v2027 = vld [vmem:[%s1966 + $0xf0] sm:$0xf]
          %v2028 = vld [vmem:[%s1966 + $0xf4] sm:$0xf]
          %v2029 = vld [vmem:[%s1966 + $0xf8] sm:$0xf]
          %v2030 = vld [vmem:[%s1966 + $0xfc] sm:$0xf]
          %v2159 = vunpack.c.l.b16 %v1836
          %v2160 = vunpack.c.h.b16 %v1836
          %v2161 = vunpack.c.l.b16 %v1837
          %v2162 = vunpack.c.h.b16 %v1837
          %v2163 = vunpack.c.l.b16 %v1838
          %v2164 = vunpack.c.h.b16 %v1838
          %v2165 = vunpack.c.l.b16 %v1839
          %v2166 = vunpack.c.h.b16 %v1839
          %v2167 = vunpack.c.l.b16 %v1840
          %v2168 = vunpack.c.h.b16 %v1840
          %v2169 = vunpack.c.l.b16 %v1841
          %v2170 = vunpack.c.h.b16 %v1841
          %v2171 = vunpack.c.l.b16 %v1842
          %v2172 = vunpack.c.h.b16 %v1842
          %v2173 = vunpack.c.l.b16 %v1843
          %v2174 = vunpack.c.h.b16 %v1843
          %v2175 = vunpack.c.l.b16 %v1844
          %v2176 = vunpack.c.h.b16 %v1844
          %v2177 = vunpack.c.l.b16 %v1845
          %v2178 = vunpack.c.h.b16 %v1845
          %v2179 = vunpack.c.l.b16 %v1846
          %v2180 = vunpack.c.h.b16 %v1846
          %v2181 = vunpack.c.l.b16 %v1847
          %v2182 = vunpack.c.h.b16 %v1847
          %v2183 = vunpack.c.l.b16 %v1848
          %v2184 = vunpack.c.h.b16 %v1848
          %v2185 = vunpack.c.l.b16 %v1849
          %v2186 = vunpack.c.h.b16 %v1849
          %v2187 = vunpack.c.l.b16 %v1850
          %v2188 = vunpack.c.h.b16 %v1850
          %v2189 = vunpack.c.l.b16 %v1851
          %v2190 = vunpack.c.h.b16 %v1851
          %v2191 = vunpack.c.l.b16 %v1852
          %v2192 = vunpack.c.h.b16 %v1852
          %v2193 = vunpack.c.l.b16 %v1853
          %v2194 = vunpack.c.h.b16 %v1853
          %v2195 = vunpack.c.l.b16 %v1854
          %v2196 = vunpack.c.h.b16 %v1854
          %v2197 = vunpack.c.l.b16 %v1855
          %v2198 = vunpack.c.h.b16 %v1855
          %v2199 = vunpack.c.l.b16 %v1856
          %v2200 = vunpack.c.h.b16 %v1856
          %v2201 = vunpack.c.l.b16 %v1857
          %v2202 = vunpack.c.h.b16 %v1857
          %v2203 = vunpack.c.l.b16 %v1858
          %v2204 = vunpack.c.h.b16 %v1858
          %v2205 = vunpack.c.l.b16 %v1859
          %v2206 = vunpack.c.h.b16 %v1859
          %v2207 = vunpack.c.l.b16 %v1860
          %v2208 = vunpack.c.h.b16 %v1860
          %v2209 = vunpack.c.l.b16 %v1861
          %v2210 = vunpack.c.h.b16 %v1861
          %v2211 = vunpack.c.l.b16 %v1862
          %v2212 = vunpack.c.h.b16 %v1862
          %v2213 = vunpack.c.l.b16 %v1863
          %v2214 = vunpack.c.h.b16 %v1863
          %v2215 = vunpack.c.l.b16 %v1864
          %v2216 = vunpack.c.h.b16 %v1864
          %v2217 = vunpack.c.l.b16 %v1865
          %v2218 = vunpack.c.h.b16 %v1865
          %v2219 = vunpack.c.l.b16 %v1866
          %v2220 = vunpack.c.h.b16 %v1866
          %v2221 = vunpack.c.l.b16 %v1867
          %v2222 = vunpack.c.h.b16 %v1867
          %v2223 = vunpack.c.l.b16 %v1868
          %v2224 = vunpack.c.h.b16 %v1868
          %v2225 = vunpack.c.l.b16 %v1869
          %v2226 = vunpack.c.h.b16 %v1869
          %v2227 = vunpack.c.l.b16 %v1870
          %v2228 = vunpack.c.h.b16 %v1870
          %v2229 = vunpack.c.l.b16 %v1871
          %v2230 = vunpack.c.h.b16 %v1871
          %v2231 = vunpack.c.l.b16 %v1872
          %v2232 = vunpack.c.h.b16 %v1872
          %v2233 = vunpack.c.l.b16 %v1873
          %v2234 = vunpack.c.h.b16 %v1873
          %v2235 = vunpack.c.l.b16 %v1874
          %v2236 = vunpack.c.h.b16 %v1874
          %v2237 = vunpack.c.l.b16 %v1875
          %v2238 = vunpack.c.h.b16 %v1875
          %v2239 = vunpack.c.l.b16 %v1876
          %v2240 = vunpack.c.h.b16 %v1876
          %v2241 = vunpack.c.l.b16 %v1877
          %v2242 = vunpack.c.h.b16 %v1877
          %v2243 = vunpack.c.l.b16 %v1878
          %v2244 = vunpack.c.h.b16 %v1878
          %v2245 = vunpack.c.l.b16 %v1879
          %v2246 = vunpack.c.h.b16 %v1879
          %v2247 = vunpack.c.l.b16 %v1880
          %v2248 = vunpack.c.h.b16 %v1880
          %v2249 = vunpack.c.l.b16 %v1881
          %v2250 = vunpack.c.h.b16 %v1881
          %v2251 = vunpack.c.l.b16 %v1882
          %v2252 = vunpack.c.h.b16 %v1882
          %v2253 = vunpack.c.l.b16 %v1883
          %v2254 = vunpack.c.h.b16 %v1883
          %v2255 = vunpack.c.l.b16 %v1884
          %v2256 = vunpack.c.h.b16 %v1884
          %v2257 = vunpack.c.l.b16 %v1885
          %v2258 = vunpack.c.h.b16 %v1885
          %v2259 = vunpack.c.l.b16 %v1886
          %v2260 = vunpack.c.h.b16 %v1886
          %v2261 = vunpack.c.l.b16 %v1887
          %v2262 = vunpack.c.h.b16 %v1887
          %v2263 = vunpack.c.l.b16 %v1888
          %v2264 = vunpack.c.h.b16 %v1888
          %v2265 = vunpack.c.l.b16 %v1889
          %v2266 = vunpack.c.h.b16 %v1889
          %v2267 = vunpack.c.l.b16 %v1890
          %v2268 = vunpack.c.h.b16 %v1890
          %v2269 = vunpack.c.l.b16 %v1891
          %v2270 = vunpack.c.h.b16 %v1891
          %v2271 = vunpack.c.l.b16 %v1892
          %v2272 = vunpack.c.h.b16 %v1892
          %v2273 = vunpack.c.l.b16 %v1893
          %v2274 = vunpack.c.h.b16 %v1893
          %v2275 = vunpack.c.l.b16 %v1894
          %v2276 = vunpack.c.h.b16 %v1894
          %v2277 = vunpack.c.l.b16 %v1895
          %v2278 = vunpack.c.h.b16 %v1895
          %v2279 = vunpack.c.l.b16 %v1896
          %v2280 = vunpack.c.h.b16 %v1896
          %v2281 = vunpack.c.l.b16 %v1897
          %v2282 = vunpack.c.h.b16 %v1897
          %v2283 = vunpack.c.l.b16 %v1898
          %v2284 = vunpack.c.h.b16 %v1898
          %v2285 = vunpack.c.l.b16 %v1899
          %v2286 = vunpack.c.h.b16 %v1899
          %v2287 = vunpack.c.l.b16 %v1900
          %v2288 = vunpack.c.h.b16 %v1900
          %v2289 = vunpack.c.l.b16 %v1901
          %v2290 = vunpack.c.h.b16 %v1901
          %v2291 = vunpack.c.l.b16 %v1902
          %v2292 = vunpack.c.h.b16 %v1902
          %v2293 = vunpack.c.l.b16 %v1903
          %v2294 = vunpack.c.h.b16 %v1903
          %v2295 = vunpack.c.l.b16 %v1904
          %v2296 = vunpack.c.h.b16 %v1904
          %v2297 = vunpack.c.l.b16 %v1905
          %v2298 = vunpack.c.h.b16 %v1905
          %v2299 = vunpack.c.l.b16 %v1906
          %v2300 = vunpack.c.h.b16 %v1906
          %v2301 = vunpack.c.l.b16 %v1907
          %v2302 = vunpack.c.h.b16 %v1907
          %v2303 = vunpack.c.l.b16 %v1908
          %v2304 = vunpack.c.h.b16 %v1908
          %v2305 = vunpack.c.l.b16 %v1909
          %v2306 = vunpack.c.h.b16 %v1909
          %v2307 = vunpack.c.l.b16 %v1910
          %v2308 = vunpack.c.h.b16 %v1910
          %v2309 = vunpack.c.l.b16 %v1911
          %v2310 = vunpack.c.h.b16 %v1911
          %v2311 = vunpack.c.l.b16 %v1912
          %v2312 = vunpack.c.h.b16 %v1912
          %v2313 = vunpack.c.l.b16 %v1913
          %v2314 = vunpack.c.h.b16 %v1913
          %v2315 = vunpack.c.l.b16 %v1914
          %v2316 = vunpack.c.h.b16 %v1914
          %v2317 = vunpack.c.l.b16 %v1915
          %v2318 = vunpack.c.h.b16 %v1915
          %v2319 = vunpack.c.l.b16 %v1916
          %v2320 = vunpack.c.h.b16 %v1916
          %v2321 = vunpack.c.l.b16 %v1917
          %v2322 = vunpack.c.h.b16 %v1917
          %v2323 = vunpack.c.l.b16 %v1918
          %v2324 = vunpack.c.h.b16 %v1918
          %v2325 = vunpack.c.l.b16 %v1919
          %v2326 = vunpack.c.h.b16 %v1919
          %v2327 = vunpack.c.l.b16 %v1920
          %v2328 = vunpack.c.h.b16 %v1920
          %v2329 = vunpack.c.l.b16 %v1921
          %v2330 = vunpack.c.h.b16 %v1921
          %v2331 = vunpack.c.l.b16 %v1922
          %v2332 = vunpack.c.h.b16 %v1922
          %v2333 = vunpack.c.l.b16 %v1923
          %v2334 = vunpack.c.h.b16 %v1923
          %v2335 = vunpack.c.l.b16 %v1924
          %v2336 = vunpack.c.h.b16 %v1924
          %v2337 = vunpack.c.l.b16 %v1925
          %v2338 = vunpack.c.h.b16 %v1925
          %v2339 = vunpack.c.l.b16 %v1926
          %v2340 = vunpack.c.h.b16 %v1926
          %v2341 = vunpack.c.l.b16 %v1927
          %v2342 = vunpack.c.h.b16 %v1927
          %v2343 = vunpack.c.l.b16 %v1928
          %v2344 = vunpack.c.h.b16 %v1928
          %v2345 = vunpack.c.l.b16 %v1929
          %v2346 = vunpack.c.h.b16 %v1929
          %v2347 = vunpack.c.l.b16 %v1930
          %v2348 = vunpack.c.h.b16 %v1930
          %v2349 = vunpack.c.l.b16 %v1931
          %v2350 = vunpack.c.h.b16 %v1931
          %v2351 = vunpack.c.l.b16 %v1932
          %v2352 = vunpack.c.h.b16 %v1932
          %v2353 = vunpack.c.l.b16 %v1933
          %v2354 = vunpack.c.h.b16 %v1933
          %v2355 = vunpack.c.l.b16 %v1934
          %v2356 = vunpack.c.h.b16 %v1934
          %v2357 = vunpack.c.l.b16 %v1935
          %v2358 = vunpack.c.h.b16 %v1935
          %v2359 = vunpack.c.l.b16 %v1936
          %v2360 = vunpack.c.h.b16 %v1936
          %v2361 = vunpack.c.l.b16 %v1937
          %v2362 = vunpack.c.h.b16 %v1937
          %v2363 = vunpack.c.l.b16 %v1938
          %v2364 = vunpack.c.h.b16 %v1938
          %v2365 = vunpack.c.l.b16 %v1939
          %v2366 = vunpack.c.h.b16 %v1939
          %v2367 = vunpack.c.l.b16 %v1940
          %v2368 = vunpack.c.h.b16 %v1940
          %v2369 = vunpack.c.l.b16 %v1941
          %v2370 = vunpack.c.h.b16 %v1941
          %v2371 = vunpack.c.l.b16 %v1942
          %v2372 = vunpack.c.h.b16 %v1942
          %v2373 = vunpack.c.l.b16 %v1943
          %v2374 = vunpack.c.h.b16 %v1943
          %v2375 = vunpack.c.l.b16 %v1944
          %v2376 = vunpack.c.h.b16 %v1944
          %v2377 = vunpack.c.l.b16 %v1945
          %v2378 = vunpack.c.h.b16 %v1945
          %v2379 = vunpack.c.l.b16 %v1946
          %v2380 = vunpack.c.h.b16 %v1946
          %v2381 = vunpack.c.l.b16 %v1947
          %v2382 = vunpack.c.h.b16 %v1947
          %v2383 = vunpack.c.l.b16 %v1948
          %v2384 = vunpack.c.h.b16 %v1948
          %v2385 = vunpack.c.l.b16 %v1949
          %v2386 = vunpack.c.h.b16 %v1949
          %v2387 = vunpack.c.l.b16 %v1950
          %v2388 = vunpack.c.h.b16 %v1950
          %v2389 = vunpack.c.l.b16 %v1951
          %v2390 = vunpack.c.h.b16 %v1951
          %v2391 = vunpack.c.l.b16 %v1952
          %v2392 = vunpack.c.h.b16 %v1952
          %v2393 = vunpack.c.l.b16 %v1953
          %v2394 = vunpack.c.h.b16 %v1953
          %v2395 = vunpack.c.l.b16 %v1954
          %v2396 = vunpack.c.h.b16 %v1954
          %v2397 = vunpack.c.l.b16 %v1955
          %v2398 = vunpack.c.h.b16 %v1955
          %v2399 = vunpack.c.l.b16 %v1956
          %v2400 = vunpack.c.h.b16 %v1956
          %v2401 = vunpack.c.l.b16 %v1957
          %v2402 = vunpack.c.h.b16 %v1957
          %v2403 = vunpack.c.l.b16 %v1958
          %v2404 = vunpack.c.h.b16 %v1958
          %v2405 = vunpack.c.l.b16 %v1959
          %v2406 = vunpack.c.h.b16 %v1959
          %v2407 = vunpack.c.l.b16 %v1960
          %v2408 = vunpack.c.h.b16 %v1960
          %v2409 = vunpack.c.l.b16 %v1961
          %v2410 = vunpack.c.h.b16 %v1961
          %v2411 = vunpack.c.l.b16 %v1962
          %v2412 = vunpack.c.h.b16 %v1962
          %v2413 = vunpack.c.l.b16 %v1963
          %v2414 = vunpack.c.h.b16 %v1963
          %v2415 = vpack.c.b16 %v2163, %v2159
          %v2416 = vpack.c.b16 %v2164, %v2160
          %v2417 = vpack.c.b16 %v2165, %v2161
          %v2418 = vpack.c.b16 %v2166, %v2162
          %v2419 = vpack.c.b16 %v2171, %v2167
          %v2420 = vpack.c.b16 %v2172, %v2168
          %v2421 = vpack.c.b16 %v2173, %v2169
          %v2422 = vpack.c.b16 %v2174, %v2170
          %v2423 = vpack.c.b16 %v2179, %v2175
          %v2424 = vpack.c.b16 %v2180, %v2176
          %v2425 = vpack.c.b16 %v2181, %v2177
          %v2426 = vpack.c.b16 %v2182, %v2178
          %v2427 = vpack.c.b16 %v2187, %v2183
          %v2428 = vpack.c.b16 %v2188, %v2184
          %v2429 = vpack.c.b16 %v2189, %v2185
          %v2430 = vpack.c.b16 %v2190, %v2186
          %v2431 = vpack.c.b16 %v2195, %v2191
          %v2432 = vpack.c.b16 %v2196, %v2192
          %v2433 = vpack.c.b16 %v2197, %v2193
          %v2434 = vpack.c.b16 %v2198, %v2194
          %v2435 = vpack.c.b16 %v2203, %v2199
          %v2436 = vpack.c.b16 %v2204, %v2200
          %v2437 = vpack.c.b16 %v2205, %v2201
          %v2438 = vpack.c.b16 %v2206, %v2202
          %v2439 = vpack.c.b16 %v2211, %v2207
          %v2440 = vpack.c.b16 %v2212, %v2208
          %v2441 = vpack.c.b16 %v2213, %v2209
          %v2442 = vpack.c.b16 %v2214, %v2210
          %v2443 = vpack.c.b16 %v2219, %v2215
          %v2444 = vpack.c.b16 %v2220, %v2216
          %v2445 = vpack.c.b16 %v2221, %v2217
          %v2446 = vpack.c.b16 %v2222, %v2218
          %v2447 = vpack.c.b16 %v2227, %v2223
          %v2448 = vpack.c.b16 %v2228, %v2224
          %v2449 = vpack.c.b16 %v2229, %v2225
          %v2450 = vpack.c.b16 %v2230, %v2226
          %v2451 = vpack.c.b16 %v2235, %v2231
          %v2452 = vpack.c.b16 %v2236, %v2232
          %v2453 = vpack.c.b16 %v2237, %v2233
          %v2454 = vpack.c.b16 %v2238, %v2234
          %v2455 = vpack.c.b16 %v2243, %v2239
          %v2456 = vpack.c.b16 %v2244, %v2240
          %v2457 = vpack.c.b16 %v2245, %v2241
          %v2458 = vpack.c.b16 %v2246, %v2242
          %v2459 = vpack.c.b16 %v2251, %v2247
          %v2460 = vpack.c.b16 %v2252, %v2248
          %v2461 = vpack.c.b16 %v2253, %v2249
          %v2462 = vpack.c.b16 %v2254, %v2250
          %v2463 = vpack.c.b16 %v2259, %v2255
          %v2464 = vpack.c.b16 %v2260, %v2256
          %v2465 = vpack.c.b16 %v2261, %v2257
          %v2466 = vpack.c.b16 %v2262, %v2258
          %v2467 = vpack.c.b16 %v2267, %v2263
          %v2468 = vpack.c.b16 %v2268, %v2264
          %v2469 = vpack.c.b16 %v2269, %v2265
          %v2470 = vpack.c.b16 %v2270, %v2266
          %v2471 = vpack.c.b16 %v2275, %v2271
          %v2472 = vpack.c.b16 %v2276, %v2272
          %v2473 = vpack.c.b16 %v2277, %v2273
          %v2474 = vpack.c.b16 %v2278, %v2274
          %v2475 = vpack.c.b16 %v2283, %v2279
          %v2476 = vpack.c.b16 %v2284, %v2280
          %v2477 = vpack.c.b16 %v2285, %v2281
          %v2478 = vpack.c.b16 %v2286, %v2282
          %v2479 = vpack.c.b16 %v2291, %v2287
          %v2480 = vpack.c.b16 %v2292, %v2288
          %v2481 = vpack.c.b16 %v2293, %v2289
          %v2482 = vpack.c.b16 %v2294, %v2290
          %v2483 = vpack.c.b16 %v2299, %v2295
          %v2484 = vpack.c.b16 %v2300, %v2296
          %v2485 = vpack.c.b16 %v2301, %v2297
          %v2486 = vpack.c.b16 %v2302, %v2298
          %v2487 = vpack.c.b16 %v2307, %v2303
          %v2488 = vpack.c.b16 %v2308, %v2304
          %v2489 = vpack.c.b16 %v2309, %v2305
          %v2490 = vpack.c.b16 %v2310, %v2306
          %v2491 = vpack.c.b16 %v2315, %v2311
          %v2492 = vpack.c.b16 %v2316, %v2312
          %v2493 = vpack.c.b16 %v2317, %v2313
          %v2494 = vpack.c.b16 %v2318, %v2314
          %v2495 = vpack.c.b16 %v2323, %v2319
          %v2496 = vpack.c.b16 %v2324, %v2320
          %v2497 = vpack.c.b16 %v2325, %v2321
          %v2498 = vpack.c.b16 %v2326, %v2322
          %v2499 = vpack.c.b16 %v2331, %v2327
          %v2500 = vpack.c.b16 %v2332, %v2328
          %v2501 = vpack.c.b16 %v2333, %v2329
          %v2502 = vpack.c.b16 %v2334, %v2330
          %v2503 = vpack.c.b16 %v2339, %v2335
          %v2504 = vpack.c.b16 %v2340, %v2336
          %v2505 = vpack.c.b16 %v2341, %v2337
          %v2506 = vpack.c.b16 %v2342, %v2338
          %v2507 = vpack.c.b16 %v2347, %v2343
          %v2508 = vpack.c.b16 %v2348, %v2344
          %v2509 = vpack.c.b16 %v2349, %v2345
          %v2510 = vpack.c.b16 %v2350, %v2346
          %v2511 = vpack.c.b16 %v2355, %v2351
          %v2512 = vpack.c.b16 %v2356, %v2352
          %v2513 = vpack.c.b16 %v2357, %v2353
          %v2514 = vpack.c.b16 %v2358, %v2354
          %v2515 = vpack.c.b16 %v2363, %v2359
          %v2516 = vpack.c.b16 %v2364, %v2360
          %v2517 = vpack.c.b16 %v2365, %v2361
          %v2518 = vpack.c.b16 %v2366, %v2362
          %v2519 = vpack.c.b16 %v2371, %v2367
          %v2520 = vpack.c.b16 %v2372, %v2368
          %v2521 = vpack.c.b16 %v2373, %v2369
          %v2522 = vpack.c.b16 %v2374, %v2370
          %v2523 = vpack.c.b16 %v2379, %v2375
          %v2524 = vpack.c.b16 %v2380, %v2376
          %v2525 = vpack.c.b16 %v2381, %v2377
          %v2526 = vpack.c.b16 %v2382, %v2378
          %v2527 = vpack.c.b16 %v2387, %v2383
          %v2528 = vpack.c.b16 %v2388, %v2384
          %v2529 = vpack.c.b16 %v2389, %v2385
          %v2530 = vpack.c.b16 %v2390, %v2386
          %v2531 = vpack.c.b16 %v2395, %v2391
          %v2532 = vpack.c.b16 %v2396, %v2392
          %v2533 = vpack.c.b16 %v2397, %v2393
          %v2534 = vpack.c.b16 %v2398, %v2394
          %v2535 = vpack.c.b16 %v2403, %v2399
          %v2536 = vpack.c.b16 %v2404, %v2400
          %v2537 = vpack.c.b16 %v2405, %v2401
          %v2538 = vpack.c.b16 %v2406, %v2402
          %v2539 = vpack.c.b16 %v2411, %v2407
          %v2540 = vpack.c.b16 %v2412, %v2408
          %v2541 = vpack.c.b16 %v2413, %v2409
          %v2542 = vpack.c.b16 %v2414, %v2410
          %v2735 = vunpack.c.l.b16 %v1967
          %v2736 = vunpack.c.l.b16 %v1968
          %v2737 = vunpack.c.l.b16 %v1969
          %v2738 = vunpack.c.l.b16 %v1970
          %v2739 = vunpack.c.l.b16 %v1971
          %v2740 = vunpack.c.l.b16 %v1972
          %v2741 = vunpack.c.l.b16 %v1973
          %v2742 = vunpack.c.l.b16 %v1974
          %v2743 = vunpack.c.l.b16 %v1975
          %v2744 = vunpack.c.l.b16 %v1976
          %v2745 = vunpack.c.l.b16 %v1977
          %v2746 = vunpack.c.l.b16 %v1978
          %v2747 = vunpack.c.l.b16 %v1979
          %v2748 = vunpack.c.l.b16 %v1980
          %v2749 = vunpack.c.l.b16 %v1981
          %v2750 = vunpack.c.l.b16 %v1982
          %v2751 = vunpack.c.l.b16 %v1983
          %v2752 = vunpack.c.l.b16 %v1984
          %v2753 = vunpack.c.l.b16 %v1985
          %v2754 = vunpack.c.l.b16 %v1986
          %v2755 = vunpack.c.l.b16 %v1987
          %v2756 = vunpack.c.l.b16 %v1988
          %v2757 = vunpack.c.l.b16 %v1989
          %v2758 = vunpack.c.l.b16 %v1990
          %v2759 = vunpack.c.l.b16 %v1991
          %v2760 = vunpack.c.l.b16 %v1992
          %v2761 = vunpack.c.l.b16 %v1993
          %v2762 = vunpack.c.l.b16 %v1994
          %v2763 = vunpack.c.l.b16 %v1995
          %v2764 = vunpack.c.l.b16 %v1996
          %v2765 = vunpack.c.l.b16 %v1997
          %v2766 = vunpack.c.l.b16 %v1998
          %v2767 = vunpack.c.l.b16 %v1999
          %v2768 = vunpack.c.l.b16 %v2000
          %v2769 = vunpack.c.l.b16 %v2001
          %v2770 = vunpack.c.l.b16 %v2002
          %v2771 = vunpack.c.l.b16 %v2003
          %v2772 = vunpack.c.l.b16 %v2004
          %v2773 = vunpack.c.l.b16 %v2005
          %v2774 = vunpack.c.l.b16 %v2006
          %v2775 = vunpack.c.l.b16 %v2007
          %v2776 = vunpack.c.l.b16 %v2008
          %v2777 = vunpack.c.l.b16 %v2009
          %v2778 = vunpack.c.l.b16 %v2010
          %v2779 = vunpack.c.l.b16 %v2011
          %v2780 = vunpack.c.l.b16 %v2012
          %v2781 = vunpack.c.l.b16 %v2013
          %v2782 = vunpack.c.l.b16 %v2014
          %v2783 = vunpack.c.l.b16 %v2015
          %v2784 = vunpack.c.l.b16 %v2016
          %v2785 = vunpack.c.l.b16 %v2017
          %v2786 = vunpack.c.l.b16 %v2018
          %v2787 = vunpack.c.l.b16 %v2019
          %v2788 = vunpack.c.l.b16 %v2020
          %v2789 = vunpack.c.l.b16 %v2021
          %v2790 = vunpack.c.l.b16 %v2022
          %v2791 = vunpack.c.l.b16 %v2023
          %v2792 = vunpack.c.l.b16 %v2024
          %v2793 = vunpack.c.l.b16 %v2025
          %v2794 = vunpack.c.l.b16 %v2026
          %v2795 = vunpack.c.l.b16 %v2027
          %v2796 = vunpack.c.l.b16 %v2028
          %v2797 = vunpack.c.l.b16 %v2029
          %v2798 = vunpack.c.l.b16 %v2030
          %v2799 = vpack.c.b16 %v2736, %v2735
          %v2800 = vpack.c.b16 %v2738, %v2737
          %v2801 = vpack.c.b16 %v2740, %v2739
          %v2802 = vpack.c.b16 %v2742, %v2741
          %v2803 = vpack.c.b16 %v2744, %v2743
          %v2804 = vpack.c.b16 %v2746, %v2745
          %v2805 = vpack.c.b16 %v2748, %v2747
          %v2806 = vpack.c.b16 %v2750, %v2749
          %v2807 = vpack.c.b16 %v2752, %v2751
          %v2808 = vpack.c.b16 %v2754, %v2753
          %v2809 = vpack.c.b16 %v2756, %v2755
          %v2810 = vpack.c.b16 %v2758, %v2757
          %v2811 = vpack.c.b16 %v2760, %v2759
          %v2812 = vpack.c.b16 %v2762, %v2761
          %v2813 = vpack.c.b16 %v2764, %v2763
          %v2814 = vpack.c.b16 %v2766, %v2765
          %v2815 = vpack.c.b16 %v2768, %v2767
          %v2816 = vpack.c.b16 %v2770, %v2769
          %v2817 = vpack.c.b16 %v2772, %v2771
          %v2818 = vpack.c.b16 %v2774, %v2773
          %v2819 = vpack.c.b16 %v2776, %v2775
          %v2820 = vpack.c.b16 %v2778, %v2777
          %v2821 = vpack.c.b16 %v2780, %v2779
          %v2822 = vpack.c.b16 %v2782, %v2781
          %v2823 = vpack.c.b16 %v2784, %v2783
          %v2824 = vpack.c.b16 %v2786, %v2785
          %v2825 = vpack.c.b16 %v2788, %v2787
          %v2826 = vpack.c.b16 %v2790, %v2789
          %v2827 = vpack.c.b16 %v2792, %v2791
          %v2828 = vpack.c.b16 %v2794, %v2793
          %v2829 = vpack.c.b16 %v2796, %v2795
          %v2830 = vpack.c.b16 %v2798, %v2797
          %2863 = vmatprep.subr.bf16.mxu0 0
          %2864 = vmatpush1.bf16.msra.mxu0 %v2806
          %2865 = vmatprep.subr.bf16.mxu0 0
          %2866 = vmatpush1.bf16.msra.mxu0 %v2805
          %2867 = vmatprep.subr.bf16.mxu0 0
          %2868 = vmatpush1.bf16.msra.mxu0 %v2804
          %2869 = vmatprep.subr.bf16.mxu0 0
          %2870 = vmatpush1.bf16.msra.mxu0 %v2803
          %2871 = vmatprep.subr.bf16.mxu0 0
          %2872 = vmatpush1.bf16.msra.mxu0 %v2802
          %2873 = vmatprep.subr.bf16.mxu0 0
          %2874 = vmatpush1.bf16.msra.mxu0 %v2801
          %2875 = vmatprep.subr.bf16.mxu0 0
          %2876 = vmatpush1.bf16.msra.mxu0 %v2800
          %2877 = vmatprep.subr.bf16.mxu0 0
          %2878 = vmatpush1.bf16.msra.mxu0 %v2799
          %2879 = vmatprep.subr.bf16.mxu0 0
          %2880 = vmatpush2.bf16.msra.mxu0 %v2814
          %2881 = vmatprep.subr.bf16.mxu0 0
          %2882 = vmatpush2.bf16.msra.mxu0 %v2813
          %2883 = vmatprep.subr.bf16.mxu0 0
          %2884 = vmatpush2.bf16.msra.mxu0 %v2812
          %2885 = vmatprep.subr.bf16.mxu0 0
          %2886 = vmatpush2.bf16.msra.mxu0 %v2811
          %2887 = vmatprep.subr.bf16.mxu0 0
          %2888 = vmatpush2.bf16.msra.mxu0 %v2810
          %2889 = vmatprep.subr.bf16.mxu0 0
          %2890 = vmatpush2.bf16.msra.mxu0 %v2809
          %2891 = vmatprep.subr.bf16.mxu0 0
          %2892 = vmatpush2.bf16.msra.mxu0 %v2808
          %2893 = vmatprep.subr.bf16.mxu0 0
          %2894 = vmatpush2.bf16.msra.mxu0 %v2807
          %2895 = vmatprep.mubr.bf16.mxu0 %v2416
          %2896 = vmatmul.mubr.bf16.gmra.mxu0 %v2415
          %v2897 = vpop.f32.mrf.mxu0
          %v2898 = vadd.f32 0.0, %v2897
          %v2899 = vpop.f32.mrf.mxu0
          %v2900 = vpop.f32.mrf.mxu0
          %v2901 = vadd.f32 0.0, %v2900
          %v2902 = vpop.f32.mrf.mxu0
          %2903 = vmatprep.mubr.bf16.mxu0 %v2420
          %2904 = vmatmul.mubr.bf16.gmra.mxu0 %v2419
          %v2905 = vpop.f32.mrf.mxu0
          %v2906 = vadd.f32 0.0, %v2905
          %v2907 = vpop.f32.mrf.mxu0
          %v2908 = vpop.f32.mrf.mxu0
          %v2909 = vadd.f32 0.0, %v2908
          %v2910 = vpop.f32.mrf.mxu0
          %2911 = vmatprep.mubr.bf16.mxu0 %v2424
          %2912 = vmatmul.mubr.bf16.gmra.mxu0 %v2423
          %v2913 = vpop.f32.mrf.mxu0
          %v2914 = vadd.f32 0.0, %v2913
          %v2915 = vpop.f32.mrf.mxu0
          %v2916 = vpop.f32.mrf.mxu0
          %v2917 = vadd.f32 0.0, %v2916
          %v2918 = vpop.f32.mrf.mxu0
          %2919 = vmatprep.mubr.bf16.mxu0 %v2428
          %2920 = vmatmul.mubr.bf16.gmra.mxu0 %v2427
          %v2921 = vpop.f32.mrf.mxu0
          %v2922 = vadd.f32 0.0, %v2921
          %v2923 = vpop.f32.mrf.mxu0
          %v2924 = vpop.f32.mrf.mxu0
          %v2925 = vadd.f32 0.0, %v2924
          %v2926 = vpop.f32.mrf.mxu0
          %2927 = vmatprep.mubr.bf16.mxu0 %v2432
          %2928 = vmatmul.mubr.bf16.gmra.mxu0 %v2431
          %v2929 = vpop.f32.mrf.mxu0
          %v2930 = vadd.f32 0.0, %v2929
          %v2931 = vpop.f32.mrf.mxu0
          %v2932 = vpop.f32.mrf.mxu0
          %v2933 = vadd.f32 0.0, %v2932
          %v2934 = vpop.f32.mrf.mxu0
          %2935 = vmatprep.mubr.bf16.mxu0 %v2436
          %2936 = vmatmul.mubr.bf16.gmra.mxu0 %v2435
          %v2937 = vpop.f32.mrf.mxu0
          %v2938 = vadd.f32 0.0, %v2937
          %v2939 = vpop.f32.mrf.mxu0
          %v2940 = vpop.f32.mrf.mxu0
          %v2941 = vadd.f32 0.0, %v2940
          %v2942 = vpop.f32.mrf.mxu0
          %2943 = vmatprep.mubr.bf16.mxu0 %v2440
          %2944 = vmatmul.mubr.bf16.gmra.mxu0 %v2439
          %v2945 = vpop.f32.mrf.mxu0
          %v2946 = vadd.f32 0.0, %v2945
          %v2947 = vpop.f32.mrf.mxu0
          %v2948 = vpop.f32.mrf.mxu0
          %v2949 = vadd.f32 0.0, %v2948
          %v2950 = vpop.f32.mrf.mxu0
          %2951 = vmatprep.mubr.bf16.mxu0 %v2444
          %2952 = vmatmul.mubr.bf16.gmra.mxu0 %v2443
          %v2953 = vpop.f32.mrf.mxu0
          %v2954 = vadd.f32 0.0, %v2953
          %v2955 = vpop.f32.mrf.mxu0
          %v2956 = vpop.f32.mrf.mxu0
          %v2957 = vadd.f32 0.0, %v2956
          %v2958 = vpop.f32.mrf.mxu0
          %2959 = vmatprep.mubr.bf16.mxu0 %v2448
          %2960 = vmatmul.mubr.bf16.gmra.mxu0 %v2447
          %v2961 = vpop.f32.mrf.mxu0
          %v2962 = vadd.f32 0.0, %v2961
          %v2963 = vpop.f32.mrf.mxu0
          %v2964 = vpop.f32.mrf.mxu0
          %v2965 = vadd.f32 0.0, %v2964
          %v2966 = vpop.f32.mrf.mxu0
          %2967 = vmatprep.mubr.bf16.mxu0 %v2452
          %2968 = vmatmul.mubr.bf16.gmra.mxu0 %v2451
          %v2969 = vpop.f32.mrf.mxu0
          %v2970 = vadd.f32 0.0, %v2969
          %v2971 = vpop.f32.mrf.mxu0
          %v2972 = vpop.f32.mrf.mxu0
          %v2973 = vadd.f32 0.0, %v2972
          %v2974 = vpop.f32.mrf.mxu0
          %2975 = vmatprep.mubr.bf16.mxu0 %v2456
          %2976 = vmatmul.mubr.bf16.gmra.mxu0 %v2455
          %v2977 = vpop.f32.mrf.mxu0
          %v2978 = vadd.f32 0.0, %v2977
          %v2979 = vpop.f32.mrf.mxu0
          %v2980 = vpop.f32.mrf.mxu0
          %v2981 = vadd.f32 0.0, %v2980
          %v2982 = vpop.f32.mrf.mxu0
          %2983 = vmatprep.mubr.bf16.mxu0 %v2460
          %2984 = vmatmul.mubr.bf16.gmra.mxu0 %v2459
          %v2985 = vpop.f32.mrf.mxu0
          %v2986 = vadd.f32 0.0, %v2985
          %v2987 = vpop.f32.mrf.mxu0
          %v2988 = vpop.f32.mrf.mxu0
          %v2989 = vadd.f32 0.0, %v2988
          %v2990 = vpop.f32.mrf.mxu0
          %2991 = vmatprep.mubr.bf16.mxu0 %v2464
          %2992 = vmatmul.mubr.bf16.gmra.mxu0 %v2463
          %v2993 = vpop.f32.mrf.mxu0
          %v2994 = vadd.f32 0.0, %v2993
          %v2995 = vpop.f32.mrf.mxu0
          %v2996 = vpop.f32.mrf.mxu0
          %v2997 = vadd.f32 0.0, %v2996
          %v2998 = vpop.f32.mrf.mxu0
          %2999 = vmatprep.mubr.bf16.mxu0 %v2468
          %3000 = vmatmul.mubr.bf16.gmra.mxu0 %v2467
          %v3001 = vpop.f32.mrf.mxu0
          %v3002 = vadd.f32 0.0, %v3001
          %v3003 = vpop.f32.mrf.mxu0
          %v3004 = vpop.f32.mrf.mxu0
          %v3005 = vadd.f32 0.0, %v3004
          %v3006 = vpop.f32.mrf.mxu0
          %3007 = vmatprep.mubr.bf16.mxu0 %v2472
          %3008 = vmatmul.mubr.bf16.gmra.mxu0 %v2471
          %v3009 = vpop.f32.mrf.mxu0
          %v3010 = vadd.f32 0.0, %v3009
          %v3011 = vpop.f32.mrf.mxu0
          %v3012 = vpop.f32.mrf.mxu0
          %v3013 = vadd.f32 0.0, %v3012
          %v3014 = vpop.f32.mrf.mxu0
          %3015 = vmatprep.mubr.bf16.mxu0 %v2476
          %3016 = vmatmul.mubr.bf16.gmra.mxu0 %v2475
          %v3017 = vpop.f32.mrf.mxu0
          %v3018 = vadd.f32 0.0, %v3017
          %v3019 = vpop.f32.mrf.mxu0
          %v3020 = vpop.f32.mrf.mxu0
          %v3021 = vadd.f32 0.0, %v3020
          %v3022 = vpop.f32.mrf.mxu0
          %3023 = vmatprep.mubr.bf16.mxu0 %v2480
          %3024 = vmatmul.mubr.bf16.gmra.mxu0 %v2479
          %v3025 = vpop.f32.mrf.mxu0
          %v3026 = vadd.f32 0.0, %v3025
          %v3027 = vpop.f32.mrf.mxu0
          %v3028 = vpop.f32.mrf.mxu0
          %v3029 = vadd.f32 0.0, %v3028
          %v3030 = vpop.f32.mrf.mxu0
          %3031 = vmatprep.mubr.bf16.mxu0 %v2484
          %3032 = vmatmul.mubr.bf16.gmra.mxu0 %v2483
          %v3033 = vpop.f32.mrf.mxu0
          %v3034 = vadd.f32 0.0, %v3033
          %v3035 = vpop.f32.mrf.mxu0
          %v3036 = vpop.f32.mrf.mxu0
          %v3037 = vadd.f32 0.0, %v3036
          %v3038 = vpop.f32.mrf.mxu0
          %3039 = vmatprep.mubr.bf16.mxu0 %v2488
          %3040 = vmatmul.mubr.bf16.gmra.mxu0 %v2487
          %v3041 = vpop.f32.mrf.mxu0
          %v3042 = vadd.f32 0.0, %v3041
          %v3043 = vpop.f32.mrf.mxu0
          %v3044 = vpop.f32.mrf.mxu0
          %v3045 = vadd.f32 0.0, %v3044
          %v3046 = vpop.f32.mrf.mxu0
          %3047 = vmatprep.mubr.bf16.mxu0 %v2492
          %3048 = vmatmul.mubr.bf16.gmra.mxu0 %v2491
          %v3049 = vpop.f32.mrf.mxu0
          %v3050 = vadd.f32 0.0, %v3049
          %v3051 = vpop.f32.mrf.mxu0
          %v3052 = vpop.f32.mrf.mxu0
          %v3053 = vadd.f32 0.0, %v3052
          %v3054 = vpop.f32.mrf.mxu0
          %3055 = vmatprep.mubr.bf16.mxu0 %v2496
          %3056 = vmatmul.mubr.bf16.gmra.mxu0 %v2495
          %v3057 = vpop.f32.mrf.mxu0
          %v3058 = vadd.f32 0.0, %v3057
          %v3059 = vpop.f32.mrf.mxu0
          %v3060 = vpop.f32.mrf.mxu0
          %v3061 = vadd.f32 0.0, %v3060
          %v3062 = vpop.f32.mrf.mxu0
          %3063 = vmatprep.mubr.bf16.mxu0 %v2500
          %3064 = vmatmul.mubr.bf16.gmra.mxu0 %v2499
          %v3065 = vpop.f32.mrf.mxu0
          %v3066 = vadd.f32 0.0, %v3065
          %v3067 = vpop.f32.mrf.mxu0
          %v3068 = vpop.f32.mrf.mxu0
          %v3069 = vadd.f32 0.0, %v3068
          %v3070 = vpop.f32.mrf.mxu0
          %3071 = vmatprep.mubr.bf16.mxu0 %v2504
          %3072 = vmatmul.mubr.bf16.gmra.mxu0 %v2503
          %v3073 = vpop.f32.mrf.mxu0
          %v3074 = vadd.f32 0.0, %v3073
          %v3075 = vpop.f32.mrf.mxu0
          %v3076 = vpop.f32.mrf.mxu0
          %v3077 = vadd.f32 0.0, %v3076
          %v3078 = vpop.f32.mrf.mxu0
          %3079 = vmatprep.mubr.bf16.mxu0 %v2508
          %3080 = vmatmul.mubr.bf16.gmra.mxu0 %v2507
          %v3081 = vpop.f32.mrf.mxu0
          %v3082 = vadd.f32 0.0, %v3081
          %v3083 = vpop.f32.mrf.mxu0
          %v3084 = vpop.f32.mrf.mxu0
          %v3085 = vadd.f32 0.0, %v3084
          %v3086 = vpop.f32.mrf.mxu0
          %3087 = vmatprep.mubr.bf16.mxu0 %v2512
          %3088 = vmatmul.mubr.bf16.gmra.mxu0 %v2511
          %v3089 = vpop.f32.mrf.mxu0
          %v3090 = vadd.f32 0.0, %v3089
          %v3091 = vpop.f32.mrf.mxu0
          %v3092 = vpop.f32.mrf.mxu0
          %v3093 = vadd.f32 0.0, %v3092
          %v3094 = vpop.f32.mrf.mxu0
          %3095 = vmatprep.mubr.bf16.mxu0 %v2516
          %3096 = vmatmul.mubr.bf16.gmra.mxu0 %v2515
          %v3097 = vpop.f32.mrf.mxu0
          %v3098 = vadd.f32 0.0, %v3097
          %v3099 = vpop.f32.mrf.mxu0
          %v3100 = vpop.f32.mrf.mxu0
          %v3101 = vadd.f32 0.0, %v3100
          %v3102 = vpop.f32.mrf.mxu0
          %3103 = vmatprep.mubr.bf16.mxu0 %v2520
          %3104 = vmatmul.mubr.bf16.gmra.mxu0 %v2519
          %v3105 = vpop.f32.mrf.mxu0
          %v3106 = vadd.f32 0.0, %v3105
          %v3107 = vpop.f32.mrf.mxu0
          %v3108 = vpop.f32.mrf.mxu0
          %v3109 = vadd.f32 0.0, %v3108
          %v3110 = vpop.f32.mrf.mxu0
          %3111 = vmatprep.mubr.bf16.mxu0 %v2524
          %3112 = vmatmul.mubr.bf16.gmra.mxu0 %v2523
          %v3113 = vpop.f32.mrf.mxu0
          %v3114 = vadd.f32 0.0, %v3113
          %v3115 = vpop.f32.mrf.mxu0
          %v3116 = vpop.f32.mrf.mxu0
          %v3117 = vadd.f32 0.0, %v3116
          %v3118 = vpop.f32.mrf.mxu0
          %3119 = vmatprep.mubr.bf16.mxu0 %v2528
          %3120 = vmatmul.mubr.bf16.gmra.mxu0 %v2527
          %v3121 = vpop.f32.mrf.mxu0
          %v3122 = vadd.f32 0.0, %v3121
          %v3123 = vpop.f32.mrf.mxu0
          %v3124 = vpop.f32.mrf.mxu0
          %v3125 = vadd.f32 0.0, %v3124
          %v3126 = vpop.f32.mrf.mxu0
          %3127 = vmatprep.mubr.bf16.mxu0 %v2532
          %3128 = vmatmul.mubr.bf16.gmra.mxu0 %v2531
          %v3129 = vpop.f32.mrf.mxu0
          %v3130 = vadd.f32 0.0, %v3129
          %v3131 = vpop.f32.mrf.mxu0
          %v3132 = vpop.f32.mrf.mxu0
          %v3133 = vadd.f32 0.0, %v3132
          %v3134 = vpop.f32.mrf.mxu0
          %3135 = vmatprep.mubr.bf16.mxu0 %v2536
          %3136 = vmatmul.mubr.bf16.gmra.mxu0 %v2535
          %v3137 = vpop.f32.mrf.mxu0
          %v3138 = vadd.f32 0.0, %v3137
          %v3139 = vpop.f32.mrf.mxu0
          %v3140 = vpop.f32.mrf.mxu0
          %v3141 = vadd.f32 0.0, %v3140
          %v3142 = vpop.f32.mrf.mxu0
          %3143 = vmatprep.mubr.bf16.mxu0 %v2540
          %3144 = vmatmul.mubr.bf16.gmra.mxu0 %v2539
          %v3145 = vpop.f32.mrf.mxu0
          %v3146 = vadd.f32 0.0, %v3145
          %v3147 = vpop.f32.mrf.mxu0
          %v3148 = vpop.f32.mrf.mxu0
          %v3149 = vadd.f32 0.0, %v3148
          %v3150 = vpop.f32.mrf.mxu0
          %3151 = vdwg.mxu0
          %3152 = vmatprep.subr.bf16.mxu0 0
          %3153 = vmatpush1.bf16.msra.mxu0 %v2822
          %3154 = vmatprep.subr.bf16.mxu0 0
          %3155 = vmatpush1.bf16.msra.mxu0 %v2821
          %3156 = vmatprep.subr.bf16.mxu0 0
          %3157 = vmatpush1.bf16.msra.mxu0 %v2820
          %3158 = vmatprep.subr.bf16.mxu0 0
          %3159 = vmatpush1.bf16.msra.mxu0 %v2819
          %3160 = vmatprep.subr.bf16.mxu0 0
          %3161 = vmatpush1.bf16.msra.mxu0 %v2818
          %3162 = vmatprep.subr.bf16.mxu0 0
          %3163 = vmatpush1.bf16.msra.mxu0 %v2817
          %3164 = vmatprep.subr.bf16.mxu0 0
          %3165 = vmatpush1.bf16.msra.mxu0 %v2816
          %3166 = vmatprep.subr.bf16.mxu0 0
          %3167 = vmatpush1.bf16.msra.mxu0 %v2815
          %3168 = vmatprep.subr.bf16.mxu0 0
          %3169 = vmatpush2.bf16.msra.mxu0 %v2830
          %3170 = vmatprep.subr.bf16.mxu0 0
          %3171 = vmatpush2.bf16.msra.mxu0 %v2829
          %3172 = vmatprep.subr.bf16.mxu0 0
          %3173 = vmatpush2.bf16.msra.mxu0 %v2828
          %3174 = vmatprep.subr.bf16.mxu0 0
          %3175 = vmatpush2.bf16.msra.mxu0 %v2827
          %3176 = vmatprep.subr.bf16.mxu0 0
          %3177 = vmatpush2.bf16.msra.mxu0 %v2826
          %3178 = vmatprep.subr.bf16.mxu0 0
          %3179 = vmatpush2.bf16.msra.mxu0 %v2825
          %3180 = vmatprep.subr.bf16.mxu0 0
          %3181 = vmatpush2.bf16.msra.mxu0 %v2824
          %3182 = vmatprep.subr.bf16.mxu0 0
          %3183 = vmatpush2.bf16.msra.mxu0 %v2823
          %3184 = vmatprep.mubr.bf16.mxu0 %v2418
          %3185 = vmatmul.mubr.bf16.gmra.mxu0 %v2417
          %v3186 = vpop.f32.mrf.mxu0
          %v3187 = vadd.f32 %v2898, %v3186
          %v3188 = vpop.f32.mrf.mxu0
          %v3189 = vpop.f32.mrf.mxu0
          %v3190 = vadd.f32 %v2901, %v3189
          %v3191 = vpop.f32.mrf.mxu0
          %3192 = vmatprep.mubr.bf16.mxu0 %v2422
          %3193 = vmatmul.mubr.bf16.gmra.mxu0 %v2421
          %v3194 = vpop.f32.mrf.mxu0
          %v3195 = vadd.f32 %v2906, %v3194
          %v3196 = vpop.f32.mrf.mxu0
          %v3197 = vpop.f32.mrf.mxu0
          %v3198 = vadd.f32 %v2909, %v3197
          %v3199 = vpop.f32.mrf.mxu0
          %3200 = vmatprep.mubr.bf16.mxu0 %v2426
          %3201 = vmatmul.mubr.bf16.gmra.mxu0 %v2425
          %v3202 = vpop.f32.mrf.mxu0
          %v3203 = vadd.f32 %v2914, %v3202
          %v3204 = vpop.f32.mrf.mxu0
          %v3205 = vpop.f32.mrf.mxu0
          %v3206 = vadd.f32 %v2917, %v3205
          %v3207 = vpop.f32.mrf.mxu0
          %3208 = vmatprep.mubr.bf16.mxu0 %v2430
          %3209 = vmatmul.mubr.bf16.gmra.mxu0 %v2429
          %v3210 = vpop.f32.mrf.mxu0
          %v3211 = vadd.f32 %v2922, %v3210
          %v3212 = vpop.f32.mrf.mxu0
          %v3213 = vpop.f32.mrf.mxu0
          %v3214 = vadd.f32 %v2925, %v3213
          %v3215 = vpop.f32.mrf.mxu0
          %3216 = vmatprep.mubr.bf16.mxu0 %v2434
          %3217 = vmatmul.mubr.bf16.gmra.mxu0 %v2433
          %v3218 = vpop.f32.mrf.mxu0
          %v3219 = vadd.f32 %v2930, %v3218
          %v3220 = vpop.f32.mrf.mxu0
          %v3221 = vpop.f32.mrf.mxu0
          %v3222 = vadd.f32 %v2933, %v3221
          %v3223 = vpop.f32.mrf.mxu0
          %3224 = vmatprep.mubr.bf16.mxu0 %v2438
          %3225 = vmatmul.mubr.bf16.gmra.mxu0 %v2437
          %v3226 = vpop.f32.mrf.mxu0
          %v3227 = vadd.f32 %v2938, %v3226
          %v3228 = vpop.f32.mrf.mxu0
          %v3229 = vpop.f32.mrf.mxu0
          %v3230 = vadd.f32 %v2941, %v3229
          %v3231 = vpop.f32.mrf.mxu0
          %3232 = vmatprep.mubr.bf16.mxu0 %v2442
          %3233 = vmatmul.mubr.bf16.gmra.mxu0 %v2441
          %v3234 = vpop.f32.mrf.mxu0
          %v3235 = vadd.f32 %v2946, %v3234
          %v3236 = vpop.f32.mrf.mxu0
          %v3237 = vpop.f32.mrf.mxu0
          %v3238 = vadd.f32 %v2949, %v3237
          %v3239 = vpop.f32.mrf.mxu0
          %3240 = vmatprep.mubr.bf16.mxu0 %v2446
          %3241 = vmatmul.mubr.bf16.gmra.mxu0 %v2445
          %v3242 = vpop.f32.mrf.mxu0
          %v3243 = vadd.f32 %v2954, %v3242
          %v3244 = vpop.f32.mrf.mxu0
          %v3245 = vpop.f32.mrf.mxu0
          %v3246 = vadd.f32 %v2957, %v3245
          %v3247 = vpop.f32.mrf.mxu0
          %3248 = vmatprep.mubr.bf16.mxu0 %v2450
          %3249 = vmatmul.mubr.bf16.gmra.mxu0 %v2449
          %v3250 = vpop.f32.mrf.mxu0
          %v3251 = vadd.f32 %v2962, %v3250
          %v3252 = vpop.f32.mrf.mxu0
          %v3253 = vpop.f32.mrf.mxu0
          %v3254 = vadd.f32 %v2965, %v3253
          %v3255 = vpop.f32.mrf.mxu0
          %3256 = vmatprep.mubr.bf16.mxu0 %v2454
          %3257 = vmatmul.mubr.bf16.gmra.mxu0 %v2453
          %v3258 = vpop.f32.mrf.mxu0
          %v3259 = vadd.f32 %v2970, %v3258
          %v3260 = vpop.f32.mrf.mxu0
          %v3261 = vpop.f32.mrf.mxu0
          %v3262 = vadd.f32 %v2973, %v3261
          %v3263 = vpop.f32.mrf.mxu0
          %3264 = vmatprep.mubr.bf16.mxu0 %v2458
          %3265 = vmatmul.mubr.bf16.gmra.mxu0 %v2457
          %v3266 = vpop.f32.mrf.mxu0
          %v3267 = vadd.f32 %v2978, %v3266
          %v3268 = vpop.f32.mrf.mxu0
          %v3269 = vpop.f32.mrf.mxu0
          %v3270 = vadd.f32 %v2981, %v3269
          %v3271 = vpop.f32.mrf.mxu0
          %3272 = vmatprep.mubr.bf16.mxu0 %v2462
          %3273 = vmatmul.mubr.bf16.gmra.mxu0 %v2461
          %v3274 = vpop.f32.mrf.mxu0
          %v3275 = vadd.f32 %v2986, %v3274
          %v3276 = vpop.f32.mrf.mxu0
          %v3277 = vpop.f32.mrf.mxu0
          %v3278 = vadd.f32 %v2989, %v3277
          %v3279 = vpop.f32.mrf.mxu0
          %3280 = vmatprep.mubr.bf16.mxu0 %v2466
          %3281 = vmatmul.mubr.bf16.gmra.mxu0 %v2465
          %v3282 = vpop.f32.mrf.mxu0
          %v3283 = vadd.f32 %v2994, %v3282
          %v3284 = vpop.f32.mrf.mxu0
          %v3285 = vpop.f32.mrf.mxu0
          %v3286 = vadd.f32 %v2997, %v3285
          %v3287 = vpop.f32.mrf.mxu0
          %3288 = vmatprep.mubr.bf16.mxu0 %v2470
          %3289 = vmatmul.mubr.bf16.gmra.mxu0 %v2469
          %v3290 = vpop.f32.mrf.mxu0
          %v3291 = vadd.f32 %v3002, %v3290
          %v3292 = vpop.f32.mrf.mxu0
          %v3293 = vpop.f32.mrf.mxu0
          %v3294 = vadd.f32 %v3005, %v3293
          %v3295 = vpop.f32.mrf.mxu0
          %3296 = vmatprep.mubr.bf16.mxu0 %v2474
          %3297 = vmatmul.mubr.bf16.gmra.mxu0 %v2473
          %v3298 = vpop.f32.mrf.mxu0
          %v3299 = vadd.f32 %v3010, %v3298
          %v3300 = vpop.f32.mrf.mxu0
          %v3301 = vpop.f32.mrf.mxu0
          %v3302 = vadd.f32 %v3013, %v3301
          %v3303 = vpop.f32.mrf.mxu0
          %3304 = vmatprep.mubr.bf16.mxu0 %v2478
          %3305 = vmatmul.mubr.bf16.gmra.mxu0 %v2477
          %v3306 = vpop.f32.mrf.mxu0
          %v3307 = vadd.f32 %v3018, %v3306
          %v3308 = vpop.f32.mrf.mxu0
          %v3309 = vpop.f32.mrf.mxu0
          %v3310 = vadd.f32 %v3021, %v3309
          %v3311 = vpop.f32.mrf.mxu0
          %3312 = vmatprep.mubr.bf16.mxu0 %v2482
          %3313 = vmatmul.mubr.bf16.gmra.mxu0 %v2481
          %v3314 = vpop.f32.mrf.mxu0
          %v3315 = vadd.f32 %v3026, %v3314
          %v3316 = vpop.f32.mrf.mxu0
          %v3317 = vpop.f32.mrf.mxu0
          %v3318 = vadd.f32 %v3029, %v3317
          %v3319 = vpop.f32.mrf.mxu0
          %3320 = vmatprep.mubr.bf16.mxu0 %v2486
          %3321 = vmatmul.mubr.bf16.gmra.mxu0 %v2485
          %v3322 = vpop.f32.mrf.mxu0
          %v3323 = vadd.f32 %v3034, %v3322
          %v3324 = vpop.f32.mrf.mxu0
          %v3325 = vpop.f32.mrf.mxu0
          %v3326 = vadd.f32 %v3037, %v3325
          %v3327 = vpop.f32.mrf.mxu0
          %3328 = vmatprep.mubr.bf16.mxu0 %v2490
          %3329 = vmatmul.mubr.bf16.gmra.mxu0 %v2489
          %v3330 = vpop.f32.mrf.mxu0
          %v3331 = vadd.f32 %v3042, %v3330
          %v3332 = vpop.f32.mrf.mxu0
          %v3333 = vpop.f32.mrf.mxu0
          %v3334 = vadd.f32 %v3045, %v3333
          %v3335 = vpop.f32.mrf.mxu0
          %3336 = vmatprep.mubr.bf16.mxu0 %v2494
          %3337 = vmatmul.mubr.bf16.gmra.mxu0 %v2493
          %v3338 = vpop.f32.mrf.mxu0
          %v3339 = vadd.f32 %v3050, %v3338
          %v3340 = vpop.f32.mrf.mxu0
          %v3341 = vpop.f32.mrf.mxu0
          %v3342 = vadd.f32 %v3053, %v3341
          %v3343 = vpop.f32.mrf.mxu0
          %3344 = vmatprep.mubr.bf16.mxu0 %v2498
          %3345 = vmatmul.mubr.bf16.gmra.mxu0 %v2497
          %v3346 = vpop.f32.mrf.mxu0
          %v3347 = vadd.f32 %v3058, %v3346
          %v3348 = vpop.f32.mrf.mxu0
          %v3349 = vpop.f32.mrf.mxu0
          %v3350 = vadd.f32 %v3061, %v3349
          %v3351 = vpop.f32.mrf.mxu0
          %3352 = vmatprep.mubr.bf16.mxu0 %v2502
          %3353 = vmatmul.mubr.bf16.gmra.mxu0 %v2501
          %v3354 = vpop.f32.mrf.mxu0
          %v3355 = vadd.f32 %v3066, %v3354
          %v3356 = vpop.f32.mrf.mxu0
          %v3357 = vpop.f32.mrf.mxu0
          %v3358 = vadd.f32 %v3069, %v3357
          %v3359 = vpop.f32.mrf.mxu0
          %3360 = vmatprep.mubr.bf16.mxu0 %v2506
          %3361 = vmatmul.mubr.bf16.gmra.mxu0 %v2505
          %v3362 = vpop.f32.mrf.mxu0
          %v3363 = vadd.f32 %v3074, %v3362
          %v3364 = vpop.f32.mrf.mxu0
          %v3365 = vpop.f32.mrf.mxu0
          %v3366 = vadd.f32 %v3077, %v3365
          %v3367 = vpop.f32.mrf.mxu0
          %3368 = vmatprep.mubr.bf16.mxu0 %v2510
          %3369 = vmatmul.mubr.bf16.gmra.mxu0 %v2509
          %v3370 = vpop.f32.mrf.mxu0
          %v3371 = vadd.f32 %v3082, %v3370
          %v3372 = vpop.f32.mrf.mxu0
          %v3373 = vpop.f32.mrf.mxu0
          %v3374 = vadd.f32 %v3085, %v3373
          %v3375 = vpop.f32.mrf.mxu0
          %3376 = vmatprep.mubr.bf16.mxu0 %v2514
          %3377 = vmatmul.mubr.bf16.gmra.mxu0 %v2513
          %v3378 = vpop.f32.mrf.mxu0
          %v3379 = vadd.f32 %v3090, %v3378
          %v3380 = vpop.f32.mrf.mxu0
          %v3381 = vpop.f32.mrf.mxu0
          %v3382 = vadd.f32 %v3093, %v3381
          %v3383 = vpop.f32.mrf.mxu0
          %3384 = vmatprep.mubr.bf16.mxu0 %v2518
          %3385 = vmatmul.mubr.bf16.gmra.mxu0 %v2517
          %v3386 = vpop.f32.mrf.mxu0
          %v3387 = vadd.f32 %v3098, %v3386
          %v3388 = vpop.f32.mrf.mxu0
          %v3389 = vpop.f32.mrf.mxu0
          %v3390 = vadd.f32 %v3101, %v3389
          %v3391 = vpop.f32.mrf.mxu0
          %3392 = vmatprep.mubr.bf16.mxu0 %v2522
          %3393 = vmatmul.mubr.bf16.gmra.mxu0 %v2521
          %v3394 = vpop.f32.mrf.mxu0
          %v3395 = vadd.f32 %v3106, %v3394
          %v3396 = vpop.f32.mrf.mxu0
          %v3397 = vpop.f32.mrf.mxu0
          %v3398 = vadd.f32 %v3109, %v3397
          %v3399 = vpop.f32.mrf.mxu0
          %3400 = vmatprep.mubr.bf16.mxu0 %v2526
          %3401 = vmatmul.mubr.bf16.gmra.mxu0 %v2525
          %v3402 = vpop.f32.mrf.mxu0
          %v3403 = vadd.f32 %v3114, %v3402
          %v3404 = vpop.f32.mrf.mxu0
          %v3405 = vpop.f32.mrf.mxu0
          %v3406 = vadd.f32 %v3117, %v3405
          %v3407 = vpop.f32.mrf.mxu0
          %3408 = vmatprep.mubr.bf16.mxu0 %v2530
          %3409 = vmatmul.mubr.bf16.gmra.mxu0 %v2529
          %v3410 = vpop.f32.mrf.mxu0
          %v3411 = vadd.f32 %v3122, %v3410
          %v3412 = vpop.f32.mrf.mxu0
          %v3413 = vpop.f32.mrf.mxu0
          %v3414 = vadd.f32 %v3125, %v3413
          %v3415 = vpop.f32.mrf.mxu0
          %3416 = vmatprep.mubr.bf16.mxu0 %v2534
          %3417 = vmatmul.mubr.bf16.gmra.mxu0 %v2533
          %v3418 = vpop.f32.mrf.mxu0
          %v3419 = vadd.f32 %v3130, %v3418
          %v3420 = vpop.f32.mrf.mxu0
          %v3421 = vpop.f32.mrf.mxu0
          %v3422 = vadd.f32 %v3133, %v3421
          %v3423 = vpop.f32.mrf.mxu0
          %3424 = vmatprep.mubr.bf16.mxu0 %v2538
          %3425 = vmatmul.mubr.bf16.gmra.mxu0 %v2537
          %v3426 = vpop.f32.mrf.mxu0
          %v3427 = vadd.f32 %v3138, %v3426
          %v3428 = vpop.f32.mrf.mxu0
          %v3429 = vpop.f32.mrf.mxu0
          %v3430 = vadd.f32 %v3141, %v3429
          %v3431 = vpop.f32.mrf.mxu0
          %3432 = vmatprep.mubr.bf16.mxu0 %v2542
          %3433 = vmatmul.mubr.bf16.gmra.mxu0 %v2541
          %v3434 = vpop.f32.mrf.mxu0
          %v3435 = vadd.f32 %v3146, %v3434
          %v3436 = vpop.f32.mrf.mxu0
          %v3437 = vpop.f32.mrf.mxu0
          %v3438 = vadd.f32 %v3149, %v3437
          %v3439 = vpop.f32.mrf.mxu0
          %3440 = vdwg.mxu0
          %s3441 = scalar_lea.vmem [#allocation4], %s173
          %v3442 = vld [vmem:[%s3441] sm:$0xff]
          %v3443 = vld [vmem:[%s3441 + $0x8] sm:$0xff]
          %v3444 = vld [vmem:[%s3441 + $0x10] sm:$0xff]
          %v3445 = vld [vmem:[%s3441 + $0x18] sm:$0xff]
          %v3446 = vld [vmem:[%s3441 + $0x20] sm:$0xff]
          %v3447 = vld [vmem:[%s3441 + $0x28] sm:$0xff]
          %v3448 = vld [vmem:[%s3441 + $0x30] sm:$0xff]
          %v3449 = vld [vmem:[%s3441 + $0x38] sm:$0xff]
          %v3450 = vld [vmem:[%s3441 + $0x40] sm:$0xff]
          %v3451 = vld [vmem:[%s3441 + $0x48] sm:$0xff]
          %v3452 = vld [vmem:[%s3441 + $0x50] sm:$0xff]
          %v3453 = vld [vmem:[%s3441 + $0x58] sm:$0xff]
          %v3454 = vld [vmem:[%s3441 + $0x60] sm:$0xff]
          %v3455 = vld [vmem:[%s3441 + $0x68] sm:$0xff]
          %v3456 = vld [vmem:[%s3441 + $0x70] sm:$0xff]
          %v3457 = vld [vmem:[%s3441 + $0x78] sm:$0xff]
          %v3458 = vld [vmem:[%s3441 + $0x80] sm:$0xff]
          %v3459 = vld [vmem:[%s3441 + $0x88] sm:$0xff]
          %v3460 = vld [vmem:[%s3441 + $0x90] sm:$0xff]
          %v3461 = vld [vmem:[%s3441 + $0x98] sm:$0xff]
          %v3462 = vld [vmem:[%s3441 + $0xa0] sm:$0xff]
          %v3463 = vld [vmem:[%s3441 + $0xa8] sm:$0xff]
          %v3464 = vld [vmem:[%s3441 + $0xb0] sm:$0xff]
          %v3465 = vld [vmem:[%s3441 + $0xb8] sm:$0xff]
          %v3466 = vld [vmem:[%s3441 + $0xc0] sm:$0xff]
          %v3467 = vld [vmem:[%s3441 + $0xc8] sm:$0xff]
          %v3468 = vld [vmem:[%s3441 + $0xd0] sm:$0xff]
          %v3469 = vld [vmem:[%s3441 + $0xd8] sm:$0xff]
          %v3470 = vld [vmem:[%s3441 + $0xe0] sm:$0xff]
          %v3471 = vld [vmem:[%s3441 + $0xe8] sm:$0xff]
          %v3472 = vld [vmem:[%s3441 + $0xf0] sm:$0xff]
          %v3473 = vld [vmem:[%s3441 + $0xf8] sm:$0xff]
          %v3474 = vld [vmem:[%s3441 + $0x100] sm:$0xff]
          %v3475 = vld [vmem:[%s3441 + $0x108] sm:$0xff]
          %v3476 = vld [vmem:[%s3441 + $0x110] sm:$0xff]
          %v3477 = vld [vmem:[%s3441 + $0x118] sm:$0xff]
          %v3478 = vld [vmem:[%s3441 + $0x120] sm:$0xff]
          %v3479 = vld [vmem:[%s3441 + $0x128] sm:$0xff]
          %v3480 = vld [vmem:[%s3441 + $0x130] sm:$0xff]
          %v3481 = vld [vmem:[%s3441 + $0x138] sm:$0xff]
          %v3482 = vld [vmem:[%s3441 + $0x140] sm:$0xff]
          %v3483 = vld [vmem:[%s3441 + $0x148] sm:$0xff]
          %v3484 = vld [vmem:[%s3441 + $0x150] sm:$0xff]
          %v3485 = vld [vmem:[%s3441 + $0x158] sm:$0xff]
          %v3486 = vld [vmem:[%s3441 + $0x160] sm:$0xff]
          %v3487 = vld [vmem:[%s3441 + $0x168] sm:$0xff]
          %v3488 = vld [vmem:[%s3441 + $0x170] sm:$0xff]
          %v3489 = vld [vmem:[%s3441 + $0x178] sm:$0xff]
          %v3490 = vld [vmem:[%s3441 + $0x180] sm:$0xff]
          %v3491 = vld [vmem:[%s3441 + $0x188] sm:$0xff]
          %v3492 = vld [vmem:[%s3441 + $0x190] sm:$0xff]
          %v3493 = vld [vmem:[%s3441 + $0x198] sm:$0xff]
          %v3494 = vld [vmem:[%s3441 + $0x1a0] sm:$0xff]
          %v3495 = vld [vmem:[%s3441 + $0x1a8] sm:$0xff]
          %v3496 = vld [vmem:[%s3441 + $0x1b0] sm:$0xff]
          %v3497 = vld [vmem:[%s3441 + $0x1b8] sm:$0xff]
          %v3498 = vld [vmem:[%s3441 + $0x1c0] sm:$0xff]
          %v3499 = vld [vmem:[%s3441 + $0x1c8] sm:$0xff]
          %v3500 = vld [vmem:[%s3441 + $0x1d0] sm:$0xff]
          %v3501 = vld [vmem:[%s3441 + $0x1d8] sm:$0xff]
          %v3502 = vld [vmem:[%s3441 + $0x1e0] sm:$0xff]
          %v3503 = vld [vmem:[%s3441 + $0x1e8] sm:$0xff]
          %v3504 = vld [vmem:[%s3441 + $0x1f0] sm:$0xff]
          %v3505 = vld [vmem:[%s3441 + $0x1f8] sm:$0xff]
          %s3506 = sld [smem:[#allocation7 + %s22]]
          %v3507 = vstv %s3506
          %v3508 = vmul.f32 %v3507, %v3187
          %v3509 = vmul.f32 %v3507, %v3190
          %v3510 = vmul.f32 %v3507, %v3195
          %v3511 = vmul.f32 %v3507, %v3198
          %v3512 = vmul.f32 %v3507, %v3203
          %v3513 = vmul.f32 %v3507, %v3206
          %v3514 = vmul.f32 %v3507, %v3211
          %v3515 = vmul.f32 %v3507, %v3214
          %v3516 = vmul.f32 %v3507, %v3219
          %v3517 = vmul.f32 %v3507, %v3222
          %v3518 = vmul.f32 %v3507, %v3227
          %v3519 = vmul.f32 %v3507, %v3230
          %v3520 = vmul.f32 %v3507, %v3235
          %v3521 = vmul.f32 %v3507, %v3238
          %v3522 = vmul.f32 %v3507, %v3243
          %v3523 = vmul.f32 %v3507, %v3246
          %v3524 = vmul.f32 %v3507, %v3251
          %v3525 = vmul.f32 %v3507, %v3254
          %v3526 = vmul.f32 %v3507, %v3259
          %v3527 = vmul.f32 %v3507, %v3262
          %v3528 = vmul.f32 %v3507, %v3267
          %v3529 = vmul.f32 %v3507, %v3270
          %v3530 = vmul.f32 %v3507, %v3275
          %v3531 = vmul.f32 %v3507, %v3278
          %v3532 = vmul.f32 %v3507, %v3283
          %v3533 = vmul.f32 %v3507, %v3286
          %v3534 = vmul.f32 %v3507, %v3291
          %v3535 = vmul.f32 %v3507, %v3294
          %v3536 = vmul.f32 %v3507, %v3299
          %v3537 = vmul.f32 %v3507, %v3302
          %v3538 = vmul.f32 %v3507, %v3307
          %v3539 = vmul.f32 %v3507, %v3310
          %v3540 = vmul.f32 %v3507, %v3315
          %v3541 = vmul.f32 %v3507, %v3318
          %v3542 = vmul.f32 %v3507, %v3323
          %v3543 = vmul.f32 %v3507, %v3326
          %v3544 = vmul.f32 %v3507, %v3331
          %v3545 = vmul.f32 %v3507, %v3334
          %v3546 = vmul.f32 %v3507, %v3339
          %v3547 = vmul.f32 %v3507, %v3342
          %v3548 = vmul.f32 %v3507, %v3347
          %v3549 = vmul.f32 %v3507, %v3350
          %v3550 = vmul.f32 %v3507, %v3355
          %v3551 = vmul.f32 %v3507, %v3358
          %v3552 = vmul.f32 %v3507, %v3363
          %v3553 = vmul.f32 %v3507, %v3366
          %v3554 = vmul.f32 %v3507, %v3371
          %v3555 = vmul.f32 %v3507, %v3374
          %v3556 = vmul.f32 %v3507, %v3379
          %v3557 = vmul.f32 %v3507, %v3382
          %v3558 = vmul.f32 %v3507, %v3387
          %v3559 = vmul.f32 %v3507, %v3390
          %v3560 = vmul.f32 %v3507, %v3395
          %v3561 = vmul.f32 %v3507, %v3398
          %v3562 = vmul.f32 %v3507, %v3403
          %v3563 = vmul.f32 %v3507, %v3406
          %v3564 = vmul.f32 %v3507, %v3411
          %v3565 = vmul.f32 %v3507, %v3414
          %v3566 = vmul.f32 %v3507, %v3419
          %v3567 = vmul.f32 %v3507, %v3422
          %v3568 = vmul.f32 %v3507, %v3427
          %v3569 = vmul.f32 %v3507, %v3430
          %v3570 = vmul.f32 %v3507, %v3435
          %v3571 = vmul.f32 %v3507, %v3438
          %v3572 = vadd.f32 %v3442, %v3508
          %v3573 = vadd.f32 %v3443, %v3509
          %v3574 = vadd.f32 %v3444, %v3510
          %v3575 = vadd.f32 %v3445, %v3511
          %v3576 = vadd.f32 %v3446, %v3512
          %v3577 = vadd.f32 %v3447, %v3513
          %v3578 = vadd.f32 %v3448, %v3514
          %v3579 = vadd.f32 %v3449, %v3515
          %v3580 = vadd.f32 %v3450, %v3516
          %v3581 = vadd.f32 %v3451, %v3517
          %v3582 = vadd.f32 %v3452, %v3518
          %v3583 = vadd.f32 %v3453, %v3519
          %v3584 = vadd.f32 %v3454, %v3520
          %v3585 = vadd.f32 %v3455, %v3521
          %v3586 = vadd.f32 %v3456, %v3522
          %v3587 = vadd.f32 %v3457, %v3523
          %v3588 = vadd.f32 %v3458, %v3524
          %v3589 = vadd.f32 %v3459, %v3525
          %v3590 = vadd.f32 %v3460, %v3526
          %v3591 = vadd.f32 %v3461, %v3527
          %v3592 = vadd.f32 %v3462, %v3528
          %v3593 = vadd.f32 %v3463, %v3529
          %v3594 = vadd.f32 %v3464, %v3530
          %v3595 = vadd.f32 %v3465, %v3531
          %v3596 = vadd.f32 %v3466, %v3532
          %v3597 = vadd.f32 %v3467, %v3533
          %v3598 = vadd.f32 %v3468, %v3534
          %v3599 = vadd.f32 %v3469, %v3535
          %v3600 = vadd.f32 %v3470, %v3536
          %v3601 = vadd.f32 %v3471, %v3537
          %v3602 = vadd.f32 %v3472, %v3538
          %v3603 = vadd.f32 %v3473, %v3539
          %v3604 = vadd.f32 %v3474, %v3540
          %v3605 = vadd.f32 %v3475, %v3541
          %v3606 = vadd.f32 %v3476, %v3542
          %v3607 = vadd.f32 %v3477, %v3543
          %v3608 = vadd.f32 %v3478, %v3544
          %v3609 = vadd.f32 %v3479, %v3545
          %v3610 = vadd.f32 %v3480, %v3546
          %v3611 = vadd.f32 %v3481, %v3547
          %v3612 = vadd.f32 %v3482, %v3548
          %v3613 = vadd.f32 %v3483, %v3549
          %v3614 = vadd.f32 %v3484, %v3550
          %v3615 = vadd.f32 %v3485, %v3551
          %v3616 = vadd.f32 %v3486, %v3552
          %v3617 = vadd.f32 %v3487, %v3553
          %v3618 = vadd.f32 %v3488, %v3554
          %v3619 = vadd.f32 %v3489, %v3555
          %v3620 = vadd.f32 %v3490, %v3556
          %v3621 = vadd.f32 %v3491, %v3557
          %v3622 = vadd.f32 %v3492, %v3558
          %v3623 = vadd.f32 %v3493, %v3559
          %v3624 = vadd.f32 %v3494, %v3560
          %v3625 = vadd.f32 %v3495, %v3561
          %v3626 = vadd.f32 %v3496, %v3562
          %v3627 = vadd.f32 %v3497, %v3563
          %v3628 = vadd.f32 %v3498, %v3564
          %v3629 = vadd.f32 %v3499, %v3565
          %v3630 = vadd.f32 %v3500, %v3566
          %v3631 = vadd.f32 %v3501, %v3567
          %v3632 = vadd.f32 %v3502, %v3568
          %v3633 = vadd.f32 %v3503, %v3569
          %v3634 = vadd.f32 %v3504, %v3570
          %v3635 = vadd.f32 %v3505, %v3571
          %p3636 = scmp.lt.s32.totalorder %s22, 4
          // Predicated region
          $region69: #{tpu_custom_call.1} parent=63 // pred_check
            %p3637 = pneg %p3636
          $region70: #{tpu_custom_call.1} parent=63 // pred_check_branch
            %3639 = sbr.rel (%p3637) target = $region72
          $region71: #{tpu_custom_call.1} parent=63 // pred_region
            %v3640 = vpack.c.bf16 %v3190, %v3187
            %v3641 = vpack.c.bf16 %v3198, %v3195
            %v3642 = vpack.c.bf16 %v3206, %v3203
            %v3643 = vpack.c.bf16 %v3214, %v3211
            %v3644 = vpack.c.bf16 %v3222, %v3219
            %v3645 = vpack.c.bf16 %v3230, %v3227
            %v3646 = vpack.c.bf16 %v3238, %v3235
            %v3647 = vpack.c.bf16 %v3246, %v3243
            %v3648 = vpack.c.bf16 %v3254, %v3251
            %v3649 = vpack.c.bf16 %v3262, %v3259
            %v3650 = vpack.c.bf16 %v3270, %v3267
            %v3651 = vpack.c.bf16 %v3278, %v3275
            %v3652 = vpack.c.bf16 %v3286, %v3283
            %v3653 = vpack.c.bf16 %v3294, %v3291
            %v3654 = vpack.c.bf16 %v3302, %v3299
            %v3655 = vpack.c.bf16 %v3310, %v3307
            %v3656 = vpack.c.bf16 %v3318, %v3315
            %v3657 = vpack.c.bf16 %v3326, %v3323
            %v3658 = vpack.c.bf16 %v3334, %v3331
            %v3659 = vpack.c.bf16 %v3342, %v3339
            %v3660 = vpack.c.bf16 %v3350, %v3347
            %v3661 = vpack.c.bf16 %v3358, %v3355
            %v3662 = vpack.c.bf16 %v3366, %v3363
            %v3663 = vpack.c.bf16 %v3374, %v3371
            %v3664 = vpack.c.bf16 %v3382, %v3379
            %v3665 = vpack.c.bf16 %v3390, %v3387
            %v3666 = vpack.c.bf16 %v3398, %v3395
            %v3667 = vpack.c.bf16 %v3406, %v3403
            %v3668 = vpack.c.bf16 %v3414, %v3411
            %v3669 = vpack.c.bf16 %v3422, %v3419
            %v3670 = vpack.c.bf16 %v3430, %v3427
            %v3671 = vpack.c.bf16 %v3438, %v3435
            %v3704 = vunpack.c.l.b16 %v3640
            %v3705 = vunpack.c.h.b16 %v3640
            %v3706 = vunpack.c.l.b16 %v3641
            %v3707 = vunpack.c.h.b16 %v3641
            %v3708 = vunpack.c.l.b16 %v3642
            %v3709 = vunpack.c.h.b16 %v3642
            %v3710 = vunpack.c.l.b16 %v3643
            %v3711 = vunpack.c.h.b16 %v3643
            %v3712 = vunpack.c.l.b16 %v3644
            %v3713 = vunpack.c.h.b16 %v3644
            %v3714 = vunpack.c.l.b16 %v3645
            %v3715 = vunpack.c.h.b16 %v3645
            %v3716 = vunpack.c.l.b16 %v3646
            %v3717 = vunpack.c.h.b16 %v3646
            %v3718 = vunpack.c.l.b16 %v3647
            %v3719 = vunpack.c.h.b16 %v3647
            %v3720 = vunpack.c.l.b16 %v3648
            %v3721 = vunpack.c.h.b16 %v3648
            %v3722 = vunpack.c.l.b16 %v3649
            %v3723 = vunpack.c.h.b16 %v3649
            %v3724 = vunpack.c.l.b16 %v3650
            %v3725 = vunpack.c.h.b16 %v3650
            %v3726 = vunpack.c.l.b16 %v3651
            %v3727 = vunpack.c.h.b16 %v3651
            %v3728 = vunpack.c.l.b16 %v3652
            %v3729 = vunpack.c.h.b16 %v3652
            %v3730 = vunpack.c.l.b16 %v3653
            %v3731 = vunpack.c.h.b16 %v3653
            %v3732 = vunpack.c.l.b16 %v3654
            %v3733 = vunpack.c.h.b16 %v3654
            %v3734 = vunpack.c.l.b16 %v3655
            %v3735 = vunpack.c.h.b16 %v3655
            %v3736 = vunpack.c.l.b16 %v3656
            %v3737 = vunpack.c.h.b16 %v3656
            %v3738 = vunpack.c.l.b16 %v3657
            %v3739 = vunpack.c.h.b16 %v3657
            %v3740 = vunpack.c.l.b16 %v3658
            %v3741 = vunpack.c.h.b16 %v3658
            %v3742 = vunpack.c.l.b16 %v3659
            %v3743 = vunpack.c.h.b16 %v3659
            %v3744 = vunpack.c.l.b16 %v3660
            %v3745 = vunpack.c.h.b16 %v3660
            %v3746 = vunpack.c.l.b16 %v3661
            %v3747 = vunpack.c.h.b16 %v3661
            %v3748 = vunpack.c.l.b16 %v3662
            %v3749 = vunpack.c.h.b16 %v3662
            %v3750 = vunpack.c.l.b16 %v3663
            %v3751 = vunpack.c.h.b16 %v3663
            %v3752 = vunpack.c.l.b16 %v3664
            %v3753 = vunpack.c.h.b16 %v3664
            %v3754 = vunpack.c.l.b16 %v3665
            %v3755 = vunpack.c.h.b16 %v3665
            %v3756 = vunpack.c.l.b16 %v3666
            %v3757 = vunpack.c.h.b16 %v3666
            %v3758 = vunpack.c.l.b16 %v3667
            %v3759 = vunpack.c.h.b16 %v3667
            %v3760 = vunpack.c.l.b16 %v3668
            %v3761 = vunpack.c.h.b16 %v3668
            %v3762 = vunpack.c.l.b16 %v3669
            %v3763 = vunpack.c.h.b16 %v3669
            %v3764 = vunpack.c.l.b16 %v3670
            %v3765 = vunpack.c.h.b16 %v3670
            %v3766 = vunpack.c.l.b16 %v3671
            %v3767 = vunpack.c.h.b16 %v3671
            %v3768 = vpack.c.b16 %v3704, %v3704
            %v3769 = vpack.c.b16 %v3705, %v3705
            %v3770 = vpack.c.b16 %v3706, %v3706
            %v3771 = vpack.c.b16 %v3707, %v3707
            %v3772 = vpack.c.b16 %v3708, %v3708
            %v3773 = vpack.c.b16 %v3709, %v3709
            %v3774 = vpack.c.b16 %v3710, %v3710
            %v3775 = vpack.c.b16 %v3711, %v3711
            %v3776 = vpack.c.b16 %v3712, %v3712
            %v3777 = vpack.c.b16 %v3713, %v3713
            %v3778 = vpack.c.b16 %v3714, %v3714
            %v3779 = vpack.c.b16 %v3715, %v3715
            %v3780 = vpack.c.b16 %v3716, %v3716
            %v3781 = vpack.c.b16 %v3717, %v3717
            %v3782 = vpack.c.b16 %v3718, %v3718
            %v3783 = vpack.c.b16 %v3719, %v3719
            %v3784 = vpack.c.b16 %v3720, %v3720
            %v3785 = vpack.c.b16 %v3721, %v3721
            %v3786 = vpack.c.b16 %v3722, %v3722
            %v3787 = vpack.c.b16 %v3723, %v3723
            %v3788 = vpack.c.b16 %v3724, %v3724
            %v3789 = vpack.c.b16 %v3725, %v3725
            %v3790 = vpack.c.b16 %v3726, %v3726
            %v3791 = vpack.c.b16 %v3727, %v3727
            %v3792 = vpack.c.b16 %v3728, %v3728
            %v3793 = vpack.c.b16 %v3729, %v3729
            %v3794 = vpack.c.b16 %v3730, %v3730
            %v3795 = vpack.c.b16 %v3731, %v3731
            %v3796 = vpack.c.b16 %v3732, %v3732
            %v3797 = vpack.c.b16 %v3733, %v3733
            %v3798 = vpack.c.b16 %v3734, %v3734
            %v3799 = vpack.c.b16 %v3735, %v3735
            %v3800 = vpack.c.b16 %v3736, %v3736
            %v3801 = vpack.c.b16 %v3737, %v3737
            %v3802 = vpack.c.b16 %v3738, %v3738
            %v3803 = vpack.c.b16 %v3739, %v3739
            %v3804 = vpack.c.b16 %v3740, %v3740
            %v3805 = vpack.c.b16 %v3741, %v3741
            %v3806 = vpack.c.b16 %v3742, %v3742
            %v3807 = vpack.c.b16 %v3743, %v3743
            %v3808 = vpack.c.b16 %v3744, %v3744
            %v3809 = vpack.c.b16 %v3745, %v3745
            %v3810 = vpack.c.b16 %v3746, %v3746
            %v3811 = vpack.c.b16 %v3747, %v3747
            %v3812 = vpack.c.b16 %v3748, %v3748
            %v3813 = vpack.c.b16 %v3749, %v3749
            %v3814 = vpack.c.b16 %v3750, %v3750
            %v3815 = vpack.c.b16 %v3751, %v3751
            %v3816 = vpack.c.b16 %v3752, %v3752
            %v3817 = vpack.c.b16 %v3753, %v3753
            %v3818 = vpack.c.b16 %v3754, %v3754
            %v3819 = vpack.c.b16 %v3755, %v3755
            %v3820 = vpack.c.b16 %v3756, %v3756
            %v3821 = vpack.c.b16 %v3757, %v3757
            %v3822 = vpack.c.b16 %v3758, %v3758
            %v3823 = vpack.c.b16 %v3759, %v3759
            %v3824 = vpack.c.b16 %v3760, %v3760
            %v3825 = vpack.c.b16 %v3761, %v3761
            %v3826 = vpack.c.b16 %v3762, %v3762
            %v3827 = vpack.c.b16 %v3763, %v3763
            %v3828 = vpack.c.b16 %v3764, %v3764
            %v3829 = vpack.c.b16 %v3765, %v3765
            %v3830 = vpack.c.b16 %v3766, %v3766
            %v3831 = vpack.c.b16 %v3767, %v3767
            %s3896 = smul.u32 %s185, 64
            %s3897 = sadd.s32 %s1831, %s3896
            %s3898 = smul.addr %s3897, 4
            %s3899 = scalar_lea.vmem [#allocation3], %s3898
            %3900 = vst [vmem:[%s3899] sm:$0xf] %v3768
            %3901 = vst [vmem:[%s3899 + $0x4] sm:$0xf] %v3769
            %3902 = vst [vmem:[%s3899 + $0x8] sm:$0xf] %v3770
            %3903 = vst [vmem:[%s3899 + $0xc] sm:$0xf] %v3771
            %3904 = vst [vmem:[%s3899 + $0x10] sm:$0xf] %v3772
            %3905 = vst [vmem:[%s3899 + $0x14] sm:$0xf] %v3773
            %3906 = vst [vmem:[%s3899 + $0x18] sm:$0xf] %v3774
            %3907 = vst [vmem:[%s3899 + $0x1c] sm:$0xf] %v3775
            %3908 = vst [vmem:[%s3899 + $0x20] sm:$0xf] %v3776
            %3909 = vst [vmem:[%s3899 + $0x24] sm:$0xf] %v3777
            %3910 = vst [vmem:[%s3899 + $0x28] sm:$0xf] %v3778
            %3911 = vst [vmem:[%s3899 + $0x2c] sm:$0xf] %v3779
            %3912 = vst [vmem:[%s3899 + $0x30] sm:$0xf] %v3780
            %3913 = vst [vmem:[%s3899 + $0x34] sm:$0xf] %v3781
            %3914 = vst [vmem:[%s3899 + $0x38] sm:$0xf] %v3782
            %3915 = vst [vmem:[%s3899 + $0x3c] sm:$0xf] %v3783
            %3916 = vst [vmem:[%s3899 + $0x40] sm:$0xf] %v3784
            %3917 = vst [vmem:[%s3899 + $0x44] sm:$0xf] %v3785
            %3918 = vst [vmem:[%s3899 + $0x48] sm:$0xf] %v3786
            %3919 = vst [vmem:[%s3899 + $0x4c] sm:$0xf] %v3787
            %3920 = vst [vmem:[%s3899 + $0x50] sm:$0xf] %v3788
            %3921 = vst [vmem:[%s3899 + $0x54] sm:$0xf] %v3789
            %3922 = vst [vmem:[%s3899 + $0x58] sm:$0xf] %v3790
            %3923 = vst [vmem:[%s3899 + $0x5c] sm:$0xf] %v3791
            %3924 = vst [vmem:[%s3899 + $0x60] sm:$0xf] %v3792
            %3925 = vst [vmem:[%s3899 + $0x64] sm:$0xf] %v3793
            %3926 = vst [vmem:[%s3899 + $0x68] sm:$0xf] %v3794
            %3927 = vst [vmem:[%s3899 + $0x6c] sm:$0xf] %v3795
            %3928 = vst [vmem:[%s3899 + $0x70] sm:$0xf] %v3796
            %3929 = vst [vmem:[%s3899 + $0x74] sm:$0xf] %v3797
            %3930 = vst [vmem:[%s3899 + $0x78] sm:$0xf] %v3798
            %3931 = vst [vmem:[%s3899 + $0x7c] sm:$0xf] %v3799
            %3932 = vst [vmem:[%s3899 + $0x80] sm:$0xf] %v3800
            %3933 = vst [vmem:[%s3899 + $0x84] sm:$0xf] %v3801
            %3934 = vst [vmem:[%s3899 + $0x88] sm:$0xf] %v3802
            %3935 = vst [vmem:[%s3899 + $0x8c] sm:$0xf] %v3803
            %3936 = vst [vmem:[%s3899 + $0x90] sm:$0xf] %v3804
            %3937 = vst [vmem:[%s3899 + $0x94] sm:$0xf] %v3805
            %3938 = vst [vmem:[%s3899 + $0x98] sm:$0xf] %v3806
            %3939 = vst [vmem:[%s3899 + $0x9c] sm:$0xf] %v3807
            %3940 = vst [vmem:[%s3899 + $0xa0] sm:$0xf] %v3808
            %3941 = vst [vmem:[%s3899 + $0xa4] sm:$0xf] %v3809
            %3942 = vst [vmem:[%s3899 + $0xa8] sm:$0xf] %v3810
            %3943 = vst [vmem:[%s3899 + $0xac] sm:$0xf] %v3811
            %3944 = vst [vmem:[%s3899 + $0xb0] sm:$0xf] %v3812
            %3945 = vst [vmem:[%s3899 + $0xb4] sm:$0xf] %v3813
            %3946 = vst [vmem:[%s3899 + $0xb8] sm:$0xf] %v3814
            %3947 = vst [vmem:[%s3899 + $0xbc] sm:$0xf] %v3815
            %3948 = vst [vmem:[%s3899 + $0xc0] sm:$0xf] %v3816
            %3949 = vst [vmem:[%s3899 + $0xc4] sm:$0xf] %v3817
            %3950 = vst [vmem:[%s3899 + $0xc8] sm:$0xf] %v3818
            %3951 = vst [vmem:[%s3899 + $0xcc] sm:$0xf] %v3819
            %3952 = vst [vmem:[%s3899 + $0xd0] sm:$0xf] %v3820
            %3953 = vst [vmem:[%s3899 + $0xd4] sm:$0xf] %v3821
            %3954 = vst [vmem:[%s3899 + $0xd8] sm:$0xf] %v3822
            %3955 = vst [vmem:[%s3899 + $0xdc] sm:$0xf] %v3823
            %3956 = vst [vmem:[%s3899 + $0xe0] sm:$0xf] %v3824
            %3957 = vst [vmem:[%s3899 + $0xe4] sm:$0xf] %v3825
            %3958 = vst [vmem:[%s3899 + $0xe8] sm:$0xf] %v3826
            %3959 = vst [vmem:[%s3899 + $0xec] sm:$0xf] %v3827
            %3960 = vst [vmem:[%s3899 + $0xf0] sm:$0xf] %v3828
            %3961 = vst [vmem:[%s3899 + $0xf4] sm:$0xf] %v3829
            %3962 = vst [vmem:[%s3899 + $0xf8] sm:$0xf] %v3830
            %3963 = vst [vmem:[%s3899 + $0xfc] sm:$0xf] %v3831
            %3964 = vst [vmem:[%s3441] sm:$0xff] %v3572
            %3965 = vst [vmem:[%s3441 + $0x8] sm:$0xff] %v3573
            %3966 = vst [vmem:[%s3441 + $0x10] sm:$0xff] %v3574
            %3967 = vst [vmem:[%s3441 + $0x18] sm:$0xff] %v3575
            %3968 = vst [vmem:[%s3441 + $0x20] sm:$0xff] %v3576
            %3969 = vst [vmem:[%s3441 + $0x28] sm:$0xff] %v3577
            %3970 = vst [vmem:[%s3441 + $0x30] sm:$0xff] %v3578
            %3971 = vst [vmem:[%s3441 + $0x38] sm:$0xff] %v3579
            %3972 = vst [vmem:[%s3441 + $0x40] sm:$0xff] %v3580
            %3973 = vst [vmem:[%s3441 + $0x48] sm:$0xff] %v3581
            %3974 = vst [vmem:[%s3441 + $0x50] sm:$0xff] %v3582
            %3975 = vst [vmem:[%s3441 + $0x58] sm:$0xff] %v3583
            %3976 = vst [vmem:[%s3441 + $0x60] sm:$0xff] %v3584
            %3977 = vst [vmem:[%s3441 + $0x68] sm:$0xff] %v3585
            %3978 = vst [vmem:[%s3441 + $0x70] sm:$0xff] %v3586
            %3979 = vst [vmem:[%s3441 + $0x78] sm:$0xff] %v3587
            %3980 = vst [vmem:[%s3441 + $0x80] sm:$0xff] %v3588
            %3981 = vst [vmem:[%s3441 + $0x88] sm:$0xff] %v3589
            %3982 = vst [vmem:[%s3441 + $0x90] sm:$0xff] %v3590
            %3983 = vst [vmem:[%s3441 + $0x98] sm:$0xff] %v3591
            %3984 = vst [vmem:[%s3441 + $0xa0] sm:$0xff] %v3592
            %3985 = vst [vmem:[%s3441 + $0xa8] sm:$0xff] %v3593
            %3986 = vst [vmem:[%s3441 + $0xb0] sm:$0xff] %v3594
            %3987 = vst [vmem:[%s3441 + $0xb8] sm:$0xff] %v3595
            %3988 = vst [vmem:[%s3441 + $0xc0] sm:$0xff] %v3596
            %3989 = vst [vmem:[%s3441 + $0xc8] sm:$0xff] %v3597
            %3990 = vst [vmem:[%s3441 + $0xd0] sm:$0xff] %v3598
            %3991 = vst [vmem:[%s3441 + $0xd8] sm:$0xff] %v3599
            %3992 = vst [vmem:[%s3441 + $0xe0] sm:$0xff] %v3600
            %3993 = vst [vmem:[%s3441 + $0xe8] sm:$0xff] %v3601
            %3994 = vst [vmem:[%s3441 + $0xf0] sm:$0xff] %v3602
            %3995 = vst [vmem:[%s3441 + $0xf8] sm:$0xff] %v3603
            %3996 = vst [vmem:[%s3441 + $0x100] sm:$0xff] %v3604
            %3997 = vst [vmem:[%s3441 + $0x108] sm:$0xff] %v3605
            %3998 = vst [vmem:[%s3441 + $0x110] sm:$0xff] %v3606
            %3999 = vst [vmem:[%s3441 + $0x118] sm:$0xff] %v3607
            %4000 = vst [vmem:[%s3441 + $0x120] sm:$0xff] %v3608
            %4001 = vst [vmem:[%s3441 + $0x128] sm:$0xff] %v3609
            %4002 = vst [vmem:[%s3441 + $0x130] sm:$0xff] %v3610
            %4003 = vst [vmem:[%s3441 + $0x138] sm:$0xff] %v3611
            %4004 = vst [vmem:[%s3441 + $0x140] sm:$0xff] %v3612
            %4005 = vst [vmem:[%s3441 + $0x148] sm:$0xff] %v3613
            %4006 = vst [vmem:[%s3441 + $0x150] sm:$0xff] %v3614
            %4007 = vst [vmem:[%s3441 + $0x158] sm:$0xff] %v3615
            %4008 = vst [vmem:[%s3441 + $0x160] sm:$0xff] %v3616
            %4009 = vst [vmem:[%s3441 + $0x168] sm:$0xff] %v3617
            %4010 = vst [vmem:[%s3441 + $0x170] sm:$0xff] %v3618
            %4011 = vst [vmem:[%s3441 + $0x178] sm:$0xff] %v3619
            %4012 = vst [vmem:[%s3441 + $0x180] sm:$0xff] %v3620
            %4013 = vst [vmem:[%s3441 + $0x188] sm:$0xff] %v3621
            %4014 = vst [vmem:[%s3441 + $0x190] sm:$0xff] %v3622
            %4015 = vst [vmem:[%s3441 + $0x198] sm:$0xff] %v3623
            %4016 = vst [vmem:[%s3441 + $0x1a0] sm:$0xff] %v3624
            %4017 = vst [vmem:[%s3441 + $0x1a8] sm:$0xff] %v3625
            %4018 = vst [vmem:[%s3441 + $0x1b0] sm:$0xff] %v3626
            %4019 = vst [vmem:[%s3441 + $0x1b8] sm:$0xff] %v3627
            %4020 = vst [vmem:[%s3441 + $0x1c0] sm:$0xff] %v3628
            %4021 = vst [vmem:[%s3441 + $0x1c8] sm:$0xff] %v3629
            %4022 = vst [vmem:[%s3441 + $0x1d0] sm:$0xff] %v3630
            %4023 = vst [vmem:[%s3441 + $0x1d8] sm:$0xff] %v3631
            %4024 = vst [vmem:[%s3441 + $0x1e0] sm:$0xff] %v3632
            %4025 = vst [vmem:[%s3441 + $0x1e8] sm:$0xff] %v3633
            %4026 = vst [vmem:[%s3441 + $0x1f0] sm:$0xff] %v3634
            %4027 = vst [vmem:[%s3441 + $0x1f8] sm:$0xff] %v3635
          $region72: #{tpu_custom_call.1} parent=63 // pred_fallthru
            _
          %p4028 = scmp.eq.s32.totalorder %s22, 4
          // Predicated region
          $region73: #{tpu_custom_call.1} parent=63 // pred_check
            %p4029 = pneg %p4028
          $region74: #{tpu_custom_call.1} parent=63 // pred_check_branch
            %4031 = sbr.rel (%p4029) target = $region76
          $region75: #{tpu_custom_call.1} parent=63 // pred_region
            %v4032 = vlaneseq
            %v4033 = vand.u32 %v4032, 127
            %vm4034 = vcmp.lt.s32.totalorder %v4033, 8
            %v4035 = vsel %vm4034, %v3572, -1e+30
            %v4036 = vsel %vm4034, %v3573, -1e+30
            %v4037 = vsel %vm4034, %v3574, -1e+30
            %v4038 = vsel %vm4034, %v3575, -1e+30
            %v4039 = vsel %vm4034, %v3576, -1e+30
            %v4040 = vsel %vm4034, %v3577, -1e+30
            %v4041 = vsel %vm4034, %v3578, -1e+30
            %v4042 = vsel %vm4034, %v3579, -1e+30
            %v4043 = vsel %vm4034, %v3580, -1e+30
            %v4044 = vsel %vm4034, %v3581, -1e+30
            %v4045 = vsel %vm4034, %v3582, -1e+30
            %v4046 = vsel %vm4034, %v3583, -1e+30
            %v4047 = vsel %vm4034, %v3584, -1e+30
            %v4048 = vsel %vm4034, %v3585, -1e+30
            %v4049 = vsel %vm4034, %v3586, -1e+30
            %v4050 = vsel %vm4034, %v3587, -1e+30
            %v4051 = vsel %vm4034, %v3588, -1e+30
            %v4052 = vsel %vm4034, %v3589, -1e+30
            %v4053 = vsel %vm4034, %v3590, -1e+30
            %v4054 = vsel %vm4034, %v3591, -1e+30
            %v4055 = vsel %vm4034, %v3592, -1e+30
            %v4056 = vsel %vm4034, %v3593, -1e+30
            %v4057 = vsel %vm4034, %v3594, -1e+30
            %v4058 = vsel %vm4034, %v3595, -1e+30
            %v4059 = vsel %vm4034, %v3596, -1e+30
            %v4060 = vsel %vm4034, %v3597, -1e+30
            %v4061 = vsel %vm4034, %v3598, -1e+30
            %v4062 = vsel %vm4034, %v3599, -1e+30
            %v4063 = vsel %vm4034, %v3600, -1e+30
            %v4064 = vsel %vm4034, %v3601, -1e+30
            %v4065 = vsel %vm4034, %v3602, -1e+30
            %v4066 = vsel %vm4034, %v3603, -1e+30
            %v4067 = vsel %vm4034, %v3604, -1e+30
            %v4068 = vsel %vm4034, %v3605, -1e+30
            %v4069 = vsel %vm4034, %v3606, -1e+30
            %v4070 = vsel %vm4034, %v3607, -1e+30
            %v4071 = vsel %vm4034, %v3608, -1e+30
            %v4072 = vsel %vm4034, %v3609, -1e+30
            %v4073 = vsel %vm4034, %v3610, -1e+30
            %v4074 = vsel %vm4034, %v3611, -1e+30
            %v4075 = vsel %vm4034, %v3612, -1e+30
            %v4076 = vsel %vm4034, %v3613, -1e+30
            %v4077 = vsel %vm4034, %v3614, -1e+30
            %v4078 = vsel %vm4034, %v3615, -1e+30
            %v4079 = vsel %vm4034, %v3616, -1e+30
            %v4080 = vsel %vm4034, %v3617, -1e+30
            %v4081 = vsel %vm4034, %v3618, -1e+30
            %v4082 = vsel %vm4034, %v3619, -1e+30
            %v4083 = vsel %vm4034, %v3620, -1e+30
            %v4084 = vsel %vm4034, %v3621, -1e+30
            %v4085 = vsel %vm4034, %v3622, -1e+30
            %v4086 = vsel %vm4034, %v3623, -1e+30
            %v4087 = vsel %vm4034, %v3624, -1e+30
            %v4088 = vsel %vm4034, %v3625, -1e+30
            %v4089 = vsel %vm4034, %v3626, -1e+30
            %v4090 = vsel %vm4034, %v3627, -1e+30
            %v4091 = vsel %vm4034, %v3628, -1e+30
            %v4092 = vsel %vm4034, %v3629, -1e+30
            %v4093 = vsel %vm4034, %v3630, -1e+30
            %v4094 = vsel %vm4034, %v3631, -1e+30
            %v4095 = vsel %vm4034, %v3632, -1e+30
            %v4096 = vsel %vm4034, %v3633, -1e+30
            %v4097 = vsel %vm4034, %v3634, -1e+30
            %v4098 = vsel %vm4034, %v3635, -1e+30
            %4099 = vmax.xlane.f32.xlu0 %v4035
            %v4100 = vpop.xlane.xlu0 %4099
            %4101 = vmax.xlane.f32.xlu0 %v4036
            %v4102 = vpop.xlane.xlu0 %4101
            %4103 = vmax.xlane.f32.xlu0 %v4037
            %v4104 = vpop.xlane.xlu0 %4103
            %4105 = vmax.xlane.f32.xlu0 %v4038
            %v4106 = vpop.xlane.xlu0 %4105
            %4107 = vmax.xlane.f32.xlu0 %v4039
            %v4108 = vpop.xlane.xlu0 %4107
            %4109 = vmax.xlane.f32.xlu0 %v4040
            %v4110 = vpop.xlane.xlu0 %4109
            %4111 = vmax.xlane.f32.xlu0 %v4041
            %v4112 = vpop.xlane.xlu0 %4111
            %4113 = vmax.xlane.f32.xlu0 %v4042
            %v4114 = vpop.xlane.xlu0 %4113
            %4115 = vmax.xlane.f32.xlu0 %v4043
            %v4116 = vpop.xlane.xlu0 %4115
            %4117 = vmax.xlane.f32.xlu0 %v4044
            %v4118 = vpop.xlane.xlu0 %4117
            %4119 = vmax.xlane.f32.xlu0 %v4045
            %v4120 = vpop.xlane.xlu0 %4119
            %4121 = vmax.xlane.f32.xlu0 %v4046
            %v4122 = vpop.xlane.xlu0 %4121
            %4123 = vmax.xlane.f32.xlu0 %v4047
            %v4124 = vpop.xlane.xlu0 %4123
            %4125 = vmax.xlane.f32.xlu0 %v4048
            %v4126 = vpop.xlane.xlu0 %4125
            %4127 = vmax.xlane.f32.xlu0 %v4049
            %v4128 = vpop.xlane.xlu0 %4127
            %4129 = vmax.xlane.f32.xlu0 %v4050
            %v4130 = vpop.xlane.xlu0 %4129
            %4131 = vmax.xlane.f32.xlu0 %v4051
            %v4132 = vpop.xlane.xlu0 %4131
            %4133 = vmax.xlane.f32.xlu0 %v4052
            %v4134 = vpop.xlane.xlu0 %4133
            %4135 = vmax.xlane.f32.xlu0 %v4053
            %v4136 = vpop.xlane.xlu0 %4135
            %4137 = vmax.xlane.f32.xlu0 %v4054
            %v4138 = vpop.xlane.xlu0 %4137
            %4139 = vmax.xlane.f32.xlu0 %v4055
            %v4140 = vpop.xlane.xlu0 %4139
            %4141 = vmax.xlane.f32.xlu0 %v4056
            %v4142 = vpop.xlane.xlu0 %4141
            %4143 = vmax.xlane.f32.xlu0 %v4057
            %v4144 = vpop.xlane.xlu0 %4143
            %4145 = vmax.xlane.f32.xlu0 %v4058
            %v4146 = vpop.xlane.xlu0 %4145
            %4147 = vmax.xlane.f32.xlu0 %v4059
            %v4148 = vpop.xlane.xlu0 %4147
            %4149 = vmax.xlane.f32.xlu0 %v4060
            %v4150 = vpop.xlane.xlu0 %4149
            %4151 = vmax.xlane.f32.xlu0 %v4061
            %v4152 = vpop.xlane.xlu0 %4151
            %4153 = vmax.xlane.f32.xlu0 %v4062
            %v4154 = vpop.xlane.xlu0 %4153
            %4155 = vmax.xlane.f32.xlu0 %v4063
            %v4156 = vpop.xlane.xlu0 %4155
            %4157 = vmax.xlane.f32.xlu0 %v4064
            %v4158 = vpop.xlane.xlu0 %4157
            %4159 = vmax.xlane.f32.xlu0 %v4065
            %v4160 = vpop.xlane.xlu0 %4159
            %4161 = vmax.xlane.f32.xlu0 %v4066
            %v4162 = vpop.xlane.xlu0 %4161
            %4163 = vmax.xlane.f32.xlu0 %v4067
            %v4164 = vpop.xlane.xlu0 %4163
            %4165 = vmax.xlane.f32.xlu0 %v4068
            %v4166 = vpop.xlane.xlu0 %4165
            %4167 = vmax.xlane.f32.xlu0 %v4069
            %v4168 = vpop.xlane.xlu0 %4167
            %4169 = vmax.xlane.f32.xlu0 %v4070
            %v4170 = vpop.xlane.xlu0 %4169
            %4171 = vmax.xlane.f32.xlu0 %v4071
            %v4172 = vpop.xlane.xlu0 %4171
            %4173 = vmax.xlane.f32.xlu0 %v4072
            %v4174 = vpop.xlane.xlu0 %4173
            %4175 = vmax.xlane.f32.xlu0 %v4073
            %v4176 = vpop.xlane.xlu0 %4175
            %4177 = vmax.xlane.f32.xlu0 %v4074
            %v4178 = vpop.xlane.xlu0 %4177
            %4179 = vmax.xlane.f32.xlu0 %v4075
            %v4180 = vpop.xlane.xlu0 %4179
            %4181 = vmax.xlane.f32.xlu0 %v4076
            %v4182 = vpop.xlane.xlu0 %4181
            %4183 = vmax.xlane.f32.xlu0 %v4077
            %v4184 = vpop.xlane.xlu0 %4183
            %4185 = vmax.xlane.f32.xlu0 %v4078
            %v4186 = vpop.xlane.xlu0 %4185
            %4187 = vmax.xlane.f32.xlu0 %v4079
            %v4188 = vpop.xlane.xlu0 %4187
            %4189 = vmax.xlane.f32.xlu0 %v4080
            %v4190 = vpop.xlane.xlu0 %4189
            %4191 = vmax.xlane.f32.xlu0 %v4081
            %v4192 = vpop.xlane.xlu0 %4191
            %4193 = vmax.xlane.f32.xlu0 %v4082
            %v4194 = vpop.xlane.xlu0 %4193
            %4195 = vmax.xlane.f32.xlu0 %v4083
            %v4196 = vpop.xlane.xlu0 %4195
            %4197 = vmax.xlane.f32.xlu0 %v4084
            %v4198 = vpop.xlane.xlu0 %4197
            %4199 = vmax.xlane.f32.xlu0 %v4085
            %v4200 = vpop.xlane.xlu0 %4199
            %4201 = vmax.xlane.f32.xlu0 %v4086
            %v4202 = vpop.xlane.xlu0 %4201
            %4203 = vmax.xlane.f32.xlu0 %v4087
            %v4204 = vpop.xlane.xlu0 %4203
            %4205 = vmax.xlane.f32.xlu0 %v4088
            %v4206 = vpop.xlane.xlu0 %4205
            %4207 = vmax.xlane.f32.xlu0 %v4089
            %v4208 = vpop.xlane.xlu0 %4207
            %4209 = vmax.xlane.f32.xlu0 %v4090
            %v4210 = vpop.xlane.xlu0 %4209
            %4211 = vmax.xlane.f32.xlu0 %v4091
            %v4212 = vpop.xlane.xlu0 %4211
            %4213 = vmax.xlane.f32.xlu0 %v4092
            %v4214 = vpop.xlane.xlu0 %4213
            %4215 = vmax.xlane.f32.xlu0 %v4093
            %v4216 = vpop.xlane.xlu0 %4215
            %4217 = vmax.xlane.f32.xlu0 %v4094
            %v4218 = vpop.xlane.xlu0 %4217
            %4219 = vmax.xlane.f32.xlu0 %v4095
            %v4220 = vpop.xlane.xlu0 %4219
            %4221 = vmax.xlane.f32.xlu0 %v4096
            %v4222 = vpop.xlane.xlu0 %4221
            %4223 = vmax.xlane.f32.xlu0 %v4097
            %v4224 = vpop.xlane.xlu0 %4223
            %4225 = vmax.xlane.f32.xlu0 %v4098
            %v4226 = vpop.xlane.xlu0 %4225
            %v4227 = vsub.f32 %v4035, %v4100
            %v4228 = vsub.f32 %v4036, %v4102
            %v4229 = vsub.f32 %v4037, %v4104
            %v4230 = vsub.f32 %v4038, %v4106
            %v4231 = vsub.f32 %v4039, %v4108
            %v4232 = vsub.f32 %v4040, %v4110
            %v4233 = vsub.f32 %v4041, %v4112
            %v4234 = vsub.f32 %v4042, %v4114
            %v4235 = vsub.f32 %v4043, %v4116
            %v4236 = vsub.f32 %v4044, %v4118
            %v4237 = vsub.f32 %v4045, %v4120
            %v4238 = vsub.f32 %v4046, %v4122
            %v4239 = vsub.f32 %v4047, %v4124
            %v4240 = vsub.f32 %v4048, %v4126
            %v4241 = vsub.f32 %v4049, %v4128
            %v4242 = vsub.f32 %v4050, %v4130
            %v4243 = vsub.f32 %v4051, %v4132
            %v4244 = vsub.f32 %v4052, %v4134
            %v4245 = vsub.f32 %v4053, %v4136
            %v4246 = vsub.f32 %v4054, %v4138
            %v4247 = vsub.f32 %v4055, %v4140
            %v4248 = vsub.f32 %v4056, %v4142
            %v4249 = vsub.f32 %v4057, %v4144
            %v4250 = vsub.f32 %v4058, %v4146
            %v4251 = vsub.f32 %v4059, %v4148
            %v4252 = vsub.f32 %v4060, %v4150
            %v4253 = vsub.f32 %v4061, %v4152
            %v4254 = vsub.f32 %v4062, %v4154
            %v4255 = vsub.f32 %v4063, %v4156
            %v4256 = vsub.f32 %v4064, %v4158
            %v4257 = vsub.f32 %v4065, %v4160
            %v4258 = vsub.f32 %v4066, %v4162
            %v4259 = vsub.f32 %v4067, %v4164
            %v4260 = vsub.f32 %v4068, %v4166
            %v4261 = vsub.f32 %v4069, %v4168
            %v4262 = vsub.f32 %v4070, %v4170
            %v4263 = vsub.f32 %v4071, %v4172
            %v4264 = vsub.f32 %v4072, %v4174
            %v4265 = vsub.f32 %v4073, %v4176
            %v4266 = vsub.f32 %v4074, %v4178
            %v4267 = vsub.f32 %v4075, %v4180
            %v4268 = vsub.f32 %v4076, %v4182
            %v4269 = vsub.f32 %v4077, %v4184
            %v4270 = vsub.f32 %v4078, %v4186
            %v4271 = vsub.f32 %v4079, %v4188
            %v4272 = vsub.f32 %v4080, %v4190
            %v4273 = vsub.f32 %v4081, %v4192
            %v4274 = vsub.f32 %v4082, %v4194
            %v4275 = vsub.f32 %v4083, %v4196
            %v4276 = vsub.f32 %v4084, %v4198
            %v4277 = vsub.f32 %v4085, %v4200
            %v4278 = vsub.f32 %v4086, %v4202
            %v4279 = vsub.f32 %v4087, %v4204
            %v4280 = vsub.f32 %v4088, %v4206
            %v4281 = vsub.f32 %v4089, %v4208
            %v4282 = vsub.f32 %v4090, %v4210
            %v4283 = vsub.f32 %v4091, %v4212
            %v4284 = vsub.f32 %v4092, %v4214
            %v4285 = vsub.f32 %v4093, %v4216
            %v4286 = vsub.f32 %v4094, %v4218
            %v4287 = vsub.f32 %v4095, %v4220
            %v4288 = vsub.f32 %v4096, %v4222
            %v4289 = vsub.f32 %v4097, %v4224
            %v4290 = vsub.f32 %v4098, %v4226
            %v4291 = vmul.f32 %v4227, 1.442695
            %v4292 = vpow.pop %v4291
            %v4293 = vmul.f32 %v4228, 1.442695
            %v4294 = vpow.pop %v4293
            %v4295 = vmul.f32 %v4229, 1.442695
            %v4296 = vpow.pop %v4295
            %v4297 = vmul.f32 %v4230, 1.442695
            %v4298 = vpow.pop %v4297
            %v4299 = vmul.f32 %v4231, 1.442695
            %v4300 = vpow.pop %v4299
            %v4301 = vmul.f32 %v4232, 1.442695
            %v4302 = vpow.pop %v4301
            %v4303 = vmul.f32 %v4233, 1.442695
            %v4304 = vpow.pop %v4303
            %v4305 = vmul.f32 %v4234, 1.442695
            %v4306 = vpow.pop %v4305
            %v4307 = vmul.f32 %v4235, 1.442695
            %v4308 = vpow.pop %v4307
            %v4309 = vmul.f32 %v4236, 1.442695
            %v4310 = vpow.pop %v4309
            %v4311 = vmul.f32 %v4237, 1.442695
            %v4312 = vpow.pop %v4311
            %v4313 = vmul.f32 %v4238, 1.442695
            %v4314 = vpow.pop %v4313
            %v4315 = vmul.f32 %v4239, 1.442695
            %v4316 = vpow.pop %v4315
            %v4317 = vmul.f32 %v4240, 1.442695
            %v4318 = vpow.pop %v4317
            %v4319 = vmul.f32 %v4241, 1.442695
            %v4320 = vpow.pop %v4319
            %v4321 = vmul.f32 %v4242, 1.442695
            %v4322 = vpow.pop %v4321
            %v4323 = vmul.f32 %v4243, 1.442695
            %v4324 = vpow.pop %v4323
            %v4325 = vmul.f32 %v4244, 1.442695
            %v4326 = vpow.pop %v4325
            %v4327 = vmul.f32 %v4245, 1.442695
            %v4328 = vpow.pop %v4327
            %v4329 = vmul.f32 %v4246, 1.442695
            %v4330 = vpow.pop %v4329
            %v4331 = vmul.f32 %v4247, 1.442695
            %v4332 = vpow.pop %v4331
            %v4333 = vmul.f32 %v4248, 1.442695
            %v4334 = vpow.pop %v4333
            %v4335 = vmul.f32 %v4249, 1.442695
            %v4336 = vpow.pop %v4335
            %v4337 = vmul.f32 %v4250, 1.442695
            %v4338 = vpow.pop %v4337
            %v4339 = vmul.f32 %v4251, 1.442695
            %v4340 = vpow.pop %v4339
            %v4341 = vmul.f32 %v4252, 1.442695
            %v4342 = vpow.pop %v4341
            %v4343 = vmul.f32 %v4253, 1.442695
            %v4344 = vpow.pop %v4343
            %v4345 = vmul.f32 %v4254, 1.442695
            %v4346 = vpow.pop %v4345
            %v4347 = vmul.f32 %v4255, 1.442695
            %v4348 = vpow.pop %v4347
            %v4349 = vmul.f32 %v4256, 1.442695
            %v4350 = vpow.pop %v4349
            %v4351 = vmul.f32 %v4257, 1.442695
            %v4352 = vpow.pop %v4351
            %v4353 = vmul.f32 %v4258, 1.442695
            %v4354 = vpow.pop %v4353
            %v4355 = vmul.f32 %v4259, 1.442695
            %v4356 = vpow.pop %v4355
            %v4357 = vmul.f32 %v4260, 1.442695
            %v4358 = vpow.pop %v4357
            %v4359 = vmul.f32 %v4261, 1.442695
            %v4360 = vpow.pop %v4359
            %v4361 = vmul.f32 %v4262, 1.442695
            %v4362 = vpow.pop %v4361
            %v4363 = vmul.f32 %v4263, 1.442695
            %v4364 = vpow.pop %v4363
            %v4365 = vmul.f32 %v4264, 1.442695
            %v4366 = vpow.pop %v4365
            %v4367 = vmul.f32 %v4265, 1.442695
            %v4368 = vpow.pop %v4367
            %v4369 = vmul.f32 %v4266, 1.442695
            %v4370 = vpow.pop %v4369
            %v4371 = vmul.f32 %v4267, 1.442695
            %v4372 = vpow.pop %v4371
            %v4373 = vmul.f32 %v4268, 1.442695
            %v4374 = vpow.pop %v4373
            %v4375 = vmul.f32 %v4269, 1.442695
            %v4376 = vpow.pop %v4375
            %v4377 = vmul.f32 %v4270, 1.442695
            %v4378 = vpow.pop %v4377
            %v4379 = vmul.f32 %v4271, 1.442695
            %v4380 = vpow.pop %v4379
            %v4381 = vmul.f32 %v4272, 1.442695
            %v4382 = vpow.pop %v4381
            %v4383 = vmul.f32 %v4273, 1.442695
            %v4384 = vpow.pop %v4383
            %v4385 = vmul.f32 %v4274, 1.442695
            %v4386 = vpow.pop %v4385
            %v4387 = vmul.f32 %v4275, 1.442695
            %v4388 = vpow.pop %v4387
            %v4389 = vmul.f32 %v4276, 1.442695
            %v4390 = vpow.pop %v4389
            %v4391 = vmul.f32 %v4277, 1.442695
            %v4392 = vpow.pop %v4391
            %v4393 = vmul.f32 %v4278, 1.442695
            %v4394 = vpow.pop %v4393
            %v4395 = vmul.f32 %v4279, 1.442695
            %v4396 = vpow.pop %v4395
            %v4397 = vmul.f32 %v4280, 1.442695
            %v4398 = vpow.pop %v4397
            %v4399 = vmul.f32 %v4281, 1.442695
            %v4400 = vpow.pop %v4399
            %v4401 = vmul.f32 %v4282, 1.442695
            %v4402 = vpow.pop %v4401
            %v4403 = vmul.f32 %v4283, 1.442695
            %v4404 = vpow.pop %v4403
            %v4405 = vmul.f32 %v4284, 1.442695
            %v4406 = vpow.pop %v4405
            %v4407 = vmul.f32 %v4285, 1.442695
            %v4408 = vpow.pop %v4407
            %v4409 = vmul.f32 %v4286, 1.442695
            %v4410 = vpow.pop %v4409
            %v4411 = vmul.f32 %v4287, 1.442695
            %v4412 = vpow.pop %v4411
            %v4413 = vmul.f32 %v4288, 1.442695
            %v4414 = vpow.pop %v4413
            %v4415 = vmul.f32 %v4289, 1.442695
            %v4416 = vpow.pop %v4415
            %v4417 = vmul.f32 %v4290, 1.442695
            %v4418 = vpow.pop %v4417
            %v4419 = vsel %vm4034, %v4292, 0.0
            %v4420 = vsel %vm4034, %v4294, 0.0
            %v4421 = vsel %vm4034, %v4296, 0.0
            %v4422 = vsel %vm4034, %v4298, 0.0
            %v4423 = vsel %vm4034, %v4300, 0.0
            %v4424 = vsel %vm4034, %v4302, 0.0
            %v4425 = vsel %vm4034, %v4304, 0.0
            %v4426 = vsel %vm4034, %v4306, 0.0
            %v4427 = vsel %vm4034, %v4308, 0.0
            %v4428 = vsel %vm4034, %v4310, 0.0
            %v4429 = vsel %vm4034, %v4312, 0.0
            %v4430 = vsel %vm4034, %v4314, 0.0
            %v4431 = vsel %vm4034, %v4316, 0.0
            %v4432 = vsel %vm4034, %v4318, 0.0
            %v4433 = vsel %vm4034, %v4320, 0.0
            %v4434 = vsel %vm4034, %v4322, 0.0
            %v4435 = vsel %vm4034, %v4324, 0.0
            %v4436 = vsel %vm4034, %v4326, 0.0
            %v4437 = vsel %vm4034, %v4328, 0.0
            %v4438 = vsel %vm4034, %v4330, 0.0
            %v4439 = vsel %vm4034, %v4332, 0.0
            %v4440 = vsel %vm4034, %v4334, 0.0
            %v4441 = vsel %vm4034, %v4336, 0.0
            %v4442 = vsel %vm4034, %v4338, 0.0
            %v4443 = vsel %vm4034, %v4340, 0.0
            %v4444 = vsel %vm4034, %v4342, 0.0
            %v4445 = vsel %vm4034, %v4344, 0.0
            %v4446 = vsel %vm4034, %v4346, 0.0
            %v4447 = vsel %vm4034, %v4348, 0.0
            %v4448 = vsel %vm4034, %v4350, 0.0
            %v4449 = vsel %vm4034, %v4352, 0.0
            %v4450 = vsel %vm4034, %v4354, 0.0
            %v4451 = vsel %vm4034, %v4356, 0.0
            %v4452 = vsel %vm4034, %v4358, 0.0
            %v4453 = vsel %vm4034, %v4360, 0.0
            %v4454 = vsel %vm4034, %v4362, 0.0
            %v4455 = vsel %vm4034, %v4364, 0.0
            %v4456 = vsel %vm4034, %v4366, 0.0
            %v4457 = vsel %vm4034, %v4368, 0.0
            %v4458 = vsel %vm4034, %v4370, 0.0
            %v4459 = vsel %vm4034, %v4372, 0.0
            %v4460 = vsel %vm4034, %v4374, 0.0
            %v4461 = vsel %vm4034, %v4376, 0.0
            %v4462 = vsel %vm4034, %v4378, 0.0
            %v4463 = vsel %vm4034, %v4380, 0.0
            %v4464 = vsel %vm4034, %v4382, 0.0
            %v4465 = vsel %vm4034, %v4384, 0.0
            %v4466 = vsel %vm4034, %v4386, 0.0
            %v4467 = vsel %vm4034, %v4388, 0.0
            %v4468 = vsel %vm4034, %v4390, 0.0
            %v4469 = vsel %vm4034, %v4392, 0.0
            %v4470 = vsel %vm4034, %v4394, 0.0
            %v4471 = vsel %vm4034, %v4396, 0.0
            %v4472 = vsel %vm4034, %v4398, 0.0
            %v4473 = vsel %vm4034, %v4400, 0.0
            %v4474 = vsel %vm4034, %v4402, 0.0
            %v4475 = vsel %vm4034, %v4404, 0.0
            %v4476 = vsel %vm4034, %v4406, 0.0
            %v4477 = vsel %vm4034, %v4408, 0.0
            %v4478 = vsel %vm4034, %v4410, 0.0
            %v4479 = vsel %vm4034, %v4412, 0.0
            %v4480 = vsel %vm4034, %v4414, 0.0
            %v4481 = vsel %vm4034, %v4416, 0.0
            %v4482 = vsel %vm4034, %v4418, 0.0
            %4483 = vadd.xlane.f32.xlu0 %v4419
            %v4484 = vpop.xlane.xlu0 %4483
            %4485 = vadd.xlane.f32.xlu0 %v4420
            %v4486 = vpop.xlane.xlu0 %4485
            %4487 = vadd.xlane.f32.xlu0 %v4421
            %v4488 = vpop.xlane.xlu0 %4487
            %4489 = vadd.xlane.f32.xlu0 %v4422
            %v4490 = vpop.xlane.xlu0 %4489
            %4491 = vadd.xlane.f32.xlu0 %v4423
            %v4492 = vpop.xlane.xlu0 %4491
            %4493 = vadd.xlane.f32.xlu0 %v4424
            %v4494 = vpop.xlane.xlu0 %4493
            %4495 = vadd.xlane.f32.xlu0 %v4425
            %v4496 = vpop.xlane.xlu0 %4495
            %4497 = vadd.xlane.f32.xlu0 %v4426
            %v4498 = vpop.xlane.xlu0 %4497
            %4499 = vadd.xlane.f32.xlu0 %v4427
            %v4500 = vpop.xlane.xlu0 %4499
            %4501 = vadd.xlane.f32.xlu0 %v4428
            %v4502 = vpop.xlane.xlu0 %4501
            %4503 = vadd.xlane.f32.xlu0 %v4429
            %v4504 = vpop.xlane.xlu0 %4503
            %4505 = vadd.xlane.f32.xlu0 %v4430
            %v4506 = vpop.xlane.xlu0 %4505
            %4507 = vadd.xlane.f32.xlu0 %v4431
            %v4508 = vpop.xlane.xlu0 %4507
            %4509 = vadd.xlane.f32.xlu0 %v4432
            %v4510 = vpop.xlane.xlu0 %4509
            %4511 = vadd.xlane.f32.xlu0 %v4433
            %v4512 = vpop.xlane.xlu0 %4511
            %4513 = vadd.xlane.f32.xlu0 %v4434
            %v4514 = vpop.xlane.xlu0 %4513
            %4515 = vadd.xlane.f32.xlu0 %v4435
            %v4516 = vpop.xlane.xlu0 %4515
            %4517 = vadd.xlane.f32.xlu0 %v4436
            %v4518 = vpop.xlane.xlu0 %4517
            %4519 = vadd.xlane.f32.xlu0 %v4437
            %v4520 = vpop.xlane.xlu0 %4519
            %4521 = vadd.xlane.f32.xlu0 %v4438
            %v4522 = vpop.xlane.xlu0 %4521
            %4523 = vadd.xlane.f32.xlu0 %v4439
            %v4524 = vpop.xlane.xlu0 %4523
            %4525 = vadd.xlane.f32.xlu0 %v4440
            %v4526 = vpop.xlane.xlu0 %4525
            %4527 = vadd.xlane.f32.xlu0 %v4441
            %v4528 = vpop.xlane.xlu0 %4527
            %4529 = vadd.xlane.f32.xlu0 %v4442
            %v4530 = vpop.xlane.xlu0 %4529
            %4531 = vadd.xlane.f32.xlu0 %v4443
            %v4532 = vpop.xlane.xlu0 %4531
            %4533 = vadd.xlane.f32.xlu0 %v4444
            %v4534 = vpop.xlane.xlu0 %4533
            %4535 = vadd.xlane.f32.xlu0 %v4445
            %v4536 = vpop.xlane.xlu0 %4535
            %4537 = vadd.xlane.f32.xlu0 %v4446
            %v4538 = vpop.xlane.xlu0 %4537
            %4539 = vadd.xlane.f32.xlu0 %v4447
            %v4540 = vpop.xlane.xlu0 %4539
            %4541 = vadd.xlane.f32.xlu0 %v4448
            %v4542 = vpop.xlane.xlu0 %4541
            %4543 = vadd.xlane.f32.xlu0 %v4449
            %v4544 = vpop.xlane.xlu0 %4543
            %4545 = vadd.xlane.f32.xlu0 %v4450
            %v4546 = vpop.xlane.xlu0 %4545
            %4547 = vadd.xlane.f32.xlu0 %v4451
            %v4548 = vpop.xlane.xlu0 %4547
            %4549 = vadd.xlane.f32.xlu0 %v4452
            %v4550 = vpop.xlane.xlu0 %4549
            %4551 = vadd.xlane.f32.xlu0 %v4453
            %v4552 = vpop.xlane.xlu0 %4551
            %4553 = vadd.xlane.f32.xlu0 %v4454
            %v4554 = vpop.xlane.xlu0 %4553
            %4555 = vadd.xlane.f32.xlu0 %v4455
            %v4556 = vpop.xlane.xlu0 %4555
            %4557 = vadd.xlane.f32.xlu0 %v4456
            %v4558 = vpop.xlane.xlu0 %4557
            %4559 = vadd.xlane.f32.xlu0 %v4457
            %v4560 = vpop.xlane.xlu0 %4559
            %4561 = vadd.xlane.f32.xlu0 %v4458
            %v4562 = vpop.xlane.xlu0 %4561
            %4563 = vadd.xlane.f32.xlu0 %v4459
            %v4564 = vpop.xlane.xlu0 %4563
            %4565 = vadd.xlane.f32.xlu0 %v4460
            %v4566 = vpop.xlane.xlu0 %4565
            %4567 = vadd.xlane.f32.xlu0 %v4461
            %v4568 = vpop.xlane.xlu0 %4567
            %4569 = vadd.xlane.f32.xlu0 %v4462
            %v4570 = vpop.xlane.xlu0 %4569
            %4571 = vadd.xlane.f32.xlu0 %v4463
            %v4572 = vpop.xlane.xlu0 %4571
            %4573 = vadd.xlane.f32.xlu0 %v4464
            %v4574 = vpop.xlane.xlu0 %4573
            %4575 = vadd.xlane.f32.xlu0 %v4465
            %v4576 = vpop.xlane.xlu0 %4575
            %4577 = vadd.xlane.f32.xlu0 %v4466
            %v4578 = vpop.xlane.xlu0 %4577
            %4579 = vadd.xlane.f32.xlu0 %v4467
            %v4580 = vpop.xlane.xlu0 %4579
            %4581 = vadd.xlane.f32.xlu0 %v4468
            %v4582 = vpop.xlane.xlu0 %4581
            %4583 = vadd.xlane.f32.xlu0 %v4469
            %v4584 = vpop.xlane.xlu0 %4583
            %4585 = vadd.xlane.f32.xlu0 %v4470
            %v4586 = vpop.xlane.xlu0 %4585
            %4587 = vadd.xlane.f32.xlu0 %v4471
            %v4588 = vpop.xlane.xlu0 %4587
            %4589 = vadd.xlane.f32.xlu0 %v4472
            %v4590 = vpop.xlane.xlu0 %4589
            %4591 = vadd.xlane.f32.xlu0 %v4473
            %v4592 = vpop.xlane.xlu0 %4591
            %4593 = vadd.xlane.f32.xlu0 %v4474
            %v4594 = vpop.xlane.xlu0 %4593
            %4595 = vadd.xlane.f32.xlu0 %v4475
            %v4596 = vpop.xlane.xlu0 %4595
            %4597 = vadd.xlane.f32.xlu0 %v4476
            %v4598 = vpop.xlane.xlu0 %4597
            %4599 = vadd.xlane.f32.xlu0 %v4477
            %v4600 = vpop.xlane.xlu0 %4599
            %4601 = vadd.xlane.f32.xlu0 %v4478
            %v4602 = vpop.xlane.xlu0 %4601
            %4603 = vadd.xlane.f32.xlu0 %v4479
            %v4604 = vpop.xlane.xlu0 %4603
            %4605 = vadd.xlane.f32.xlu0 %v4480
            %v4606 = vpop.xlane.xlu0 %4605
            %4607 = vadd.xlane.f32.xlu0 %v4481
            %v4608 = vpop.xlane.xlu0 %4607
            %4609 = vadd.xlane.f32.xlu0 %v4482
            %v4610 = vpop.xlane.xlu0 %4609
            %v4611 = vlog2.pop %v4484
            %v4612 = vmul.f32 %v4611, 0.6931472
            %v4613 = vlog2.pop %v4486
            %v4614 = vmul.f32 %v4613, 0.6931472
            %v4615 = vlog2.pop %v4488
            %v4616 = vmul.f32 %v4615, 0.6931472
            %v4617 = vlog2.pop %v4490
            %v4618 = vmul.f32 %v4617, 0.6931472
            %v4619 = vlog2.pop %v4492
            %v4620 = vmul.f32 %v4619, 0.6931472
            %v4621 = vlog2.pop %v4494
            %v4622 = vmul.f32 %v4621, 0.6931472
            %v4623 = vlog2.pop %v4496
            %v4624 = vmul.f32 %v4623, 0.6931472
            %v4625 = vlog2.pop %v4498
            %v4626 = vmul.f32 %v4625, 0.6931472
            %v4627 = vlog2.pop %v4500
            %v4628 = vmul.f32 %v4627, 0.6931472
            %v4629 = vlog2.pop %v4502
            %v4630 = vmul.f32 %v4629, 0.6931472
            %v4631 = vlog2.pop %v4504
            %v4632 = vmul.f32 %v4631, 0.6931472
            %v4633 = vlog2.pop %v4506
            %v4634 = vmul.f32 %v4633, 0.6931472
            %v4635 = vlog2.pop %v4508
            %v4636 = vmul.f32 %v4635, 0.6931472
            %v4637 = vlog2.pop %v4510
            %v4638 = vmul.f32 %v4637, 0.6931472
            %v4639 = vlog2.pop %v4512
            %v4640 = vmul.f32 %v4639, 0.6931472
            %v4641 = vlog2.pop %v4514
            %v4642 = vmul.f32 %v4641, 0.6931472
            %v4643 = vlog2.pop %v4516
            %v4644 = vmul.f32 %v4643, 0.6931472
            %v4645 = vlog2.pop %v4518
            %v4646 = vmul.f32 %v4645, 0.6931472
            %v4647 = vlog2.pop %v4520
            %v4648 = vmul.f32 %v4647, 0.6931472
            %v4649 = vlog2.pop %v4522
            %v4650 = vmul.f32 %v4649, 0.6931472
            %v4651 = vlog2.pop %v4524
            %v4652 = vmul.f32 %v4651, 0.6931472
            %v4653 = vlog2.pop %v4526
            %v4654 = vmul.f32 %v4653, 0.6931472
            %v4655 = vlog2.pop %v4528
            %v4656 = vmul.f32 %v4655, 0.6931472
            %v4657 = vlog2.pop %v4530
            %v4658 = vmul.f32 %v4657, 0.6931472
            %v4659 = vlog2.pop %v4532
            %v4660 = vmul.f32 %v4659, 0.6931472
            %v4661 = vlog2.pop %v4534
            %v4662 = vmul.f32 %v4661, 0.6931472
            %v4663 = vlog2.pop %v4536
            %v4664 = vmul.f32 %v4663, 0.6931472
            %v4665 = vlog2.pop %v4538
            %v4666 = vmul.f32 %v4665, 0.6931472
            %v4667 = vlog2.pop %v4540
            %v4668 = vmul.f32 %v4667, 0.6931472
            %v4669 = vlog2.pop %v4542
            %v4670 = vmul.f32 %v4669, 0.6931472
            %v4671 = vlog2.pop %v4544
            %v4672 = vmul.f32 %v4671, 0.6931472
            %v4673 = vlog2.pop %v4546
            %v4674 = vmul.f32 %v4673, 0.6931472
            %v4675 = vlog2.pop %v4548
            %v4676 = vmul.f32 %v4675, 0.6931472
            %v4677 = vlog2.pop %v4550
            %v4678 = vmul.f32 %v4677, 0.6931472
            %v4679 = vlog2.pop %v4552
            %v4680 = vmul.f32 %v4679, 0.6931472
            %v4681 = vlog2.pop %v4554
            %v4682 = vmul.f32 %v4681, 0.6931472
            %v4683 = vlog2.pop %v4556
            %v4684 = vmul.f32 %v4683, 0.6931472
            %v4685 = vlog2.pop %v4558
            %v4686 = vmul.f32 %v4685, 0.6931472
            %v4687 = vlog2.pop %v4560
            %v4688 = vmul.f32 %v4687, 0.6931472
            %v4689 = vlog2.pop %v4562
            %v4690 = vmul.f32 %v4689, 0.6931472
            %v4691 = vlog2.pop %v4564
            %v4692 = vmul.f32 %v4691, 0.6931472
            %v4693 = vlog2.pop %v4566
            %v4694 = vmul.f32 %v4693, 0.6931472
            %v4695 = vlog2.pop %v4568
            %v4696 = vmul.f32 %v4695, 0.6931472
            %v4697 = vlog2.pop %v4570
            %v4698 = vmul.f32 %v4697, 0.6931472
            %v4699 = vlog2.pop %v4572
            %v4700 = vmul.f32 %v4699, 0.6931472
            %v4701 = vlog2.pop %v4574
            %v4702 = vmul.f32 %v4701, 0.6931472
            %v4703 = vlog2.pop %v4576
            %v4704 = vmul.f32 %v4703, 0.6931472
            %v4705 = vlog2.pop %v4578
            %v4706 = vmul.f32 %v4705, 0.6931472
            %v4707 = vlog2.pop %v4580
            %v4708 = vmul.f32 %v4707, 0.6931472
            %v4709 = vlog2.pop %v4582
            %v4710 = vmul.f32 %v4709, 0.6931472
            %v4711 = vlog2.pop %v4584
            %v4712 = vmul.f32 %v4711, 0.6931472
            %v4713 = vlog2.pop %v4586
            %v4714 = vmul.f32 %v4713, 0.6931472
            %v4715 = vlog2.pop %v4588
            %v4716 = vmul.f32 %v4715, 0.6931472
            %v4717 = vlog2.pop %v4590
            %v4718 = vmul.f32 %v4717, 0.6931472
            %v4719 = vlog2.pop %v4592
            %v4720 = vmul.f32 %v4719, 0.6931472
            %v4721 = vlog2.pop %v4594
            %v4722 = vmul.f32 %v4721, 0.6931472
            %v4723 = vlog2.pop %v4596
            %v4724 = vmul.f32 %v4723, 0.6931472
            %v4725 = vlog2.pop %v4598
            %v4726 = vmul.f32 %v4725, 0.6931472
            %v4727 = vlog2.pop %v4600
            %v4728 = vmul.f32 %v4727, 0.6931472
            %v4729 = vlog2.pop %v4602
            %v4730 = vmul.f32 %v4729, 0.6931472
            %v4731 = vlog2.pop %v4604
            %v4732 = vmul.f32 %v4731, 0.6931472
            %v4733 = vlog2.pop %v4606
            %v4734 = vmul.f32 %v4733, 0.6931472
            %v4735 = vlog2.pop %v4608
            %v4736 = vmul.f32 %v4735, 0.6931472
            %v4737 = vlog2.pop %v4610
            %v4738 = vmul.f32 %v4737, 0.6931472
            %v4739 = vsub.f32 %v4227, %v4612
            %v4740 = vsub.f32 %v4228, %v4614
            %v4741 = vsub.f32 %v4229, %v4616
            %v4742 = vsub.f32 %v4230, %v4618
            %v4743 = vsub.f32 %v4231, %v4620
            %v4744 = vsub.f32 %v4232, %v4622
            %v4745 = vsub.f32 %v4233, %v4624
            %v4746 = vsub.f32 %v4234, %v4626
            %v4747 = vsub.f32 %v4235, %v4628
            %v4748 = vsub.f32 %v4236, %v4630
            %v4749 = vsub.f32 %v4237, %v4632
            %v4750 = vsub.f32 %v4238, %v4634
            %v4751 = vsub.f32 %v4239, %v4636
            %v4752 = vsub.f32 %v4240, %v4638
            %v4753 = vsub.f32 %v4241, %v4640
            %v4754 = vsub.f32 %v4242, %v4642
            %v4755 = vsub.f32 %v4243, %v4644
            %v4756 = vsub.f32 %v4244, %v4646
            %v4757 = vsub.f32 %v4245, %v4648
            %v4758 = vsub.f32 %v4246, %v4650
            %v4759 = vsub.f32 %v4247, %v4652
            %v4760 = vsub.f32 %v4248, %v4654
            %v4761 = vsub.f32 %v4249, %v4656
            %v4762 = vsub.f32 %v4250, %v4658
            %v4763 = vsub.f32 %v4251, %v4660
            %v4764 = vsub.f32 %v4252, %v4662
            %v4765 = vsub.f32 %v4253, %v4664
            %v4766 = vsub.f32 %v4254, %v4666
            %v4767 = vsub.f32 %v4255, %v4668
            %v4768 = vsub.f32 %v4256, %v4670
            %v4769 = vsub.f32 %v4257, %v4672
            %v4770 = vsub.f32 %v4258, %v4674
            %v4771 = vsub.f32 %v4259, %v4676
            %v4772 = vsub.f32 %v4260, %v4678
            %v4773 = vsub.f32 %v4261, %v4680
            %v4774 = vsub.f32 %v4262, %v4682
            %v4775 = vsub.f32 %v4263, %v4684
            %v4776 = vsub.f32 %v4264, %v4686
            %v4777 = vsub.f32 %v4265, %v4688
            %v4778 = vsub.f32 %v4266, %v4690
            %v4779 = vsub.f32 %v4267, %v4692
            %v4780 = vsub.f32 %v4268, %v4694
            %v4781 = vsub.f32 %v4269, %v4696
            %v4782 = vsub.f32 %v4270, %v4698
            %v4783 = vsub.f32 %v4271, %v4700
            %v4784 = vsub.f32 %v4272, %v4702
            %v4785 = vsub.f32 %v4273, %v4704
            %v4786 = vsub.f32 %v4274, %v4706
            %v4787 = vsub.f32 %v4275, %v4708
            %v4788 = vsub.f32 %v4276, %v4710
            %v4789 = vsub.f32 %v4277, %v4712
            %v4790 = vsub.f32 %v4278, %v4714
            %v4791 = vsub.f32 %v4279, %v4716
            %v4792 = vsub.f32 %v4280, %v4718
            %v4793 = vsub.f32 %v4281, %v4720
            %v4794 = vsub.f32 %v4282, %v4722
            %v4795 = vsub.f32 %v4283, %v4724
            %v4796 = vsub.f32 %v4284, %v4726
            %v4797 = vsub.f32 %v4285, %v4728
            %v4798 = vsub.f32 %v4286, %v4730
            %v4799 = vsub.f32 %v4287, %v4732
            %v4800 = vsub.f32 %v4288, %v4734
            %v4801 = vsub.f32 %v4289, %v4736
            %v4802 = vsub.f32 %v4290, %v4738
            %4803 = vst [vmem:[#allocation5] sm:$0xff] %v4739
            %4804 = vst [vmem:[#allocation5 + $0x8] sm:$0xff] %v4740
            %4805 = vst [vmem:[#allocation5 + $0x10] sm:$0xff] %v4741
            %4806 = vst [vmem:[#allocation5 + $0x18] sm:$0xff] %v4742
            %4807 = vst [vmem:[#allocation5 + $0x20] sm:$0xff] %v4743
            %4808 = vst [vmem:[#allocation5 + $0x28] sm:$0xff] %v4744
            %4809 = vst [vmem:[#allocation5 + $0x30] sm:$0xff] %v4745
            %4810 = vst [vmem:[#allocation5 + $0x38] sm:$0xff] %v4746
            %4811 = vst [vmem:[#allocation5 + $0x40] sm:$0xff] %v4747
            %4812 = vst [vmem:[#allocation5 + $0x48] sm:$0xff] %v4748
            %4813 = vst [vmem:[#allocation5 + $0x50] sm:$0xff] %v4749
            %4814 = vst [vmem:[#allocation5 + $0x58] sm:$0xff] %v4750
            %4815 = vst [vmem:[#allocation5 + $0x60] sm:$0xff] %v4751
            %4816 = vst [vmem:[#allocation5 + $0x68] sm:$0xff] %v4752
            %4817 = vst [vmem:[#allocation5 + $0x70] sm:$0xff] %v4753
            %4818 = vst [vmem:[#allocation5 + $0x78] sm:$0xff] %v4754
            %4819 = vst [vmem:[#allocation5 + $0x80] sm:$0xff] %v4755
            %4820 = vst [vmem:[#allocation5 + $0x88] sm:$0xff] %v4756
            %4821 = vst [vmem:[#allocation5 + $0x90] sm:$0xff] %v4757
            %4822 = vst [vmem:[#allocation5 + $0x98] sm:$0xff] %v4758
            %4823 = vst [vmem:[#allocation5 + $0xa0] sm:$0xff] %v4759
            %4824 = vst [vmem:[#allocation5 + $0xa8] sm:$0xff] %v4760
            %4825 = vst [vmem:[#allocation5 + $0xb0] sm:$0xff] %v4761
            %4826 = vst [vmem:[#allocation5 + $0xb8] sm:$0xff] %v4762
            %4827 = vst [vmem:[#allocation5 + $0xc0] sm:$0xff] %v4763
            %4828 = vst [vmem:[#allocation5 + $0xc8] sm:$0xff] %v4764
            %4829 = vst [vmem:[#allocation5 + $0xd0] sm:$0xff] %v4765
            %4830 = vst [vmem:[#allocation5 + $0xd8] sm:$0xff] %v4766
            %4831 = vst [vmem:[#allocation5 + $0xe0] sm:$0xff] %v4767
            %4832 = vst [vmem:[#allocation5 + $0xe8] sm:$0xff] %v4768
            %4833 = vst [vmem:[#allocation5 + $0xf0] sm:$0xff] %v4769
            %4834 = vst [vmem:[#allocation5 + $0xf8] sm:$0xff] %v4770
            %4835 = vst [vmem:[#allocation5 + $0x100] sm:$0xff] %v4771
            %4836 = vst [vmem:[#allocation5 + $0x108] sm:$0xff] %v4772
            %4837 = vst [vmem:[#allocation5 + $0x110] sm:$0xff] %v4773
            %4838 = vst [vmem:[#allocation5 + $0x118] sm:$0xff] %v4774
            %4839 = vst [vmem:[#allocation5 + $0x120] sm:$0xff] %v4775
            %4840 = vst [vmem:[#allocation5 + $0x128] sm:$0xff] %v4776
            %4841 = vst [vmem:[#allocation5 + $0x130] sm:$0xff] %v4777
            %4842 = vst [vmem:[#allocation5 + $0x138] sm:$0xff] %v4778
            %4843 = vst [vmem:[#allocation5 + $0x140] sm:$0xff] %v4779
            %4844 = vst [vmem:[#allocation5 + $0x148] sm:$0xff] %v4780
            %4845 = vst [vmem:[#allocation5 + $0x150] sm:$0xff] %v4781
            %4846 = vst [vmem:[#allocation5 + $0x158] sm:$0xff] %v4782
            %4847 = vst [vmem:[#allocation5 + $0x160] sm:$0xff] %v4783
            %4848 = vst [vmem:[#allocation5 + $0x168] sm:$0xff] %v4784
            %4849 = vst [vmem:[#allocation5 + $0x170] sm:$0xff] %v4785
            %4850 = vst [vmem:[#allocation5 + $0x178] sm:$0xff] %v4786
            %4851 = vst [vmem:[#allocation5 + $0x180] sm:$0xff] %v4787
            %4852 = vst [vmem:[#allocation5 + $0x188] sm:$0xff] %v4788
            %4853 = vst [vmem:[#allocation5 + $0x190] sm:$0xff] %v4789
            %4854 = vst [vmem:[#allocation5 + $0x198] sm:$0xff] %v4790
            %4855 = vst [vmem:[#allocation5 + $0x1a0] sm:$0xff] %v4791
            %4856 = vst [vmem:[#allocation5 + $0x1a8] sm:$0xff] %v4792
            %4857 = vst [vmem:[#allocation5 + $0x1b0] sm:$0xff] %v4793
            %4858 = vst [vmem:[#allocation5 + $0x1b8] sm:$0xff] %v4794
            %4859 = vst [vmem:[#allocation5 + $0x1c0] sm:$0xff] %v4795
            %4860 = vst [vmem:[#allocation5 + $0x1c8] sm:$0xff] %v4796
            %4861 = vst [vmem:[#allocation5 + $0x1d0] sm:$0xff] %v4797
            %4862 = vst [vmem:[#allocation5 + $0x1d8] sm:$0xff] %v4798
            %4863 = vst [vmem:[#allocation5 + $0x1e0] sm:$0xff] %v4799
            %4864 = vst [vmem:[#allocation5 + $0x1e8] sm:$0xff] %v4800
            %4865 = vst [vmem:[#allocation5 + $0x1f0] sm:$0xff] %v4801
            %4866 = vst [vmem:[#allocation5 + $0x1f8] sm:$0xff] %v4802
            %s4867 = smul.addr %s173, 16
            %s4868 = scalar_lea.hbm %s7, %s4867
            %s4869 = scalar_lea.sflag [#allocation6], 1
            // Predicated region
            $region77: #{tpu_custom_call.1} parent=75 // pred_check
              _
            $region78: #{tpu_custom_call.1} parent=75 // pred_check_branch
              %4871 = sbr.rel target = $region80
            $region79: #{tpu_custom_call.1} parent=75 // pred_region
              %4872 = sst [smem:[#allocation11]] [#allocation14]
              %4873 = sst [smem:[#allocation12]] [#allocation13]
            $region80: #{tpu_custom_call.1} parent=75 // pred_fallthru
              _
            %4875 = shalt.err (0)
            %s4877 = sshll.u32 [#allocation5], 4
            %s4878 = int_to_ptr.vmem [resolvable:$true] %s4877
            %4880 = dma.vmem_to_hbm [thread:$0]  %s4878, 8192, %s4868, %s4869
            %s4881 = smul.u32 512, 1
            %s4882 = sshll.u32 %s4881, 4
            %4883 = dma.done %s4869, %s4882
          $region76: #{tpu_custom_call.1} parent=63 // pred_fallthru
            _
        $region64: #{tpu_custom_call.1} parent=43 // pred_fallthru
          _
      $region44: #{tpu_custom_call.1} parent=5 // pred_fallthru
        _
    $region6: #{tpu_custom_call.1} parent=1 // loop_footer
      %s18 = sadd.s32 1, %s14
    $region7: #{tpu_custom_call.1} parent=1 // loop_footer_branch
      %13 = sbr.rel target = $region3
    $region8: #{tpu_custom_call.1} parent=1 // loop_exit
      _
    %4884 = vsyncpa [#allocation8], 1
    %s4885 = scalar_lea.sflag [#allocation8], 1
    %4886 = vsyncpa %s4885, 1
  %4887 = vsyncmov [#allocation6]
  %s4888 = vpop.sfrf %4887
  %p4889 = scmp.eq.s32.totalorder %s4888, 0
  %p4890 = pneg %p4889
  %4892 = shalt.err (%p4890)
  %s4893 = scalar_lea.sflag [#allocation6], 1
  %4894 = vsyncmov %s4893
  %s4895 = vpop.sfrf %4894
  %p4896 = scmp.eq.s32.totalorder %s4895, 0
  %p4897 = pneg %p4896
  %4899 = shalt.err (%p4897)

</llo_original>
